<compile_context>
chip_gen: v5e
topology: v5e:2x2
jax: 0.10.0
libtpu: 0.0.40
codegen_flags: <defaults>
</compile_context>

<pallas_src>
import functools
import math

import jax
import jax.numpy as jnp
from jax import lax
from jax.experimental import pallas as pl
from jax.experimental.pallas import tpu as pltpu

LANE = 128
SUBLANE = 8


def _round_up(x, m):
    return (x + m - 1) // m * m


def _pad_dim(a, axis, target):
    pad = target - a.shape[axis]
    if pad <= 0:
        return a
    widths = [(0, 0)] * a.ndim
    widths[axis] = (0, pad)
    return jnp.pad(a, widths)


def _gelu_exact(x):
    # nn.GELU() default: exact erf formulation (dtype-preserving)
    return 0.5 * x * (1.0 + lax.erf(x * 0.7071067811865476))


def _layer_norm_2pass(x, gamma, beta, cmask, inv_c, eps):
    # Two-pass LayerNorm over the (zero-padded) channel axis.  `cmask` zeroes
    # the padded lanes (which would otherwise hold -mean) so the variance only
    # sums over the real channels; gamma/beta are zero-padded so the output is
    # exactly 0 on padded lanes.
    mean = jnp.sum(x, axis=-1, keepdims=True) * inv_c
    xc = (x - mean) * cmask
    var = jnp.sum(xc * xc, axis=-1, keepdims=True) * inv_c
    return xc * lax.rsqrt(var + eps) * gamma + beta


# --------------------------------------------------------------------------
# Fused kernel: all residual blocks + last_norm + post_net on one time tile
# --------------------------------------------------------------------------
def _conv_blocks_kernel(xl_ref, xc_ref, xr_ref, g_ref, bt_ref, w1_ref, b1_ref,
                        w2_ref, b2_ref, wp_ref, bp_ref, o_ref, *,
                        dilations, n_sub, kernel_size, post_kernel_size, halo,
                        t_tile, seq_len, channels, ln_eps, mxu_dtype):
    K = kernel_size
    Kp = post_kernel_size
    H = halo
    Cp = xc_ref.shape[-1]
    C2p = w1_ref.shape[-1]
    Op = wp_ref.shape[-1]
    W = t_tile + 2 * H
    inv_c = 1.0 / channels

    # channel-validity mask (padded lanes must not contribute to the LN var)
    cmask = (lax.broadcasted_iota(jnp.int32, (1, Cp), 1) < channels
             ).astype(jnp.float32)

    # halo'd window of the residual stream, assembled once per tile
    xw = jnp.concatenate([xl_ref[0], xc_ref[0], xr_ref[0]], axis=0)   # [W, Cp]

    # nonpadding mask from the (original) block input -- reused by every
    # residual block and by the final stage.  Identical to PyTorch's per-block
    # recompute unless a residual update zeroes an entire row exactly.
    mask = (jnp.sum(jnp.abs(xw), axis=-1, keepdims=True) > 0.0
            ).astype(jnp.float32)

    # rows whose global time index lies outside [0, seq_len) act as the convs'
    # zero padding; the conv padding is applied AFTER LayerNorm, so this is a
    # separate mask from `mask` (LN(0) = beta != 0 at in-range all-zero rows).
    g0 = pl.program_id(0) * t_tile - H
    gidx = g0 + lax.broadcasted_iota(jnp.int32, (W, 1), 0)
    inr = jnp.logical_and(gidx >= 0, gidx < seq_len).astype(jnp.float32)

    cur = xw           # residual-stream window (f32)
    off = 0            # offset of cur[0] inside the original window
    li = 0             # flat (block, sub-block) index into the stacked weights
    for d in dilations:
        p = d * (K - 1) // 2
        for _ in range(n_sub):
            L = cur.shape[0]
            Lout = L - 2 * p
            h = _layer_norm_2pass(cur, g_ref[li], bt_ref[li], cmask, inv_c,
                                  ln_eps)
            hq = (h * inr[off:off + L]).astype(mxu_dtype)
            # dilated Conv1d C -> 2C as K shifted-tap MXU matmuls
            # (K**-0.5 and the conv bias are pre-folded into w1/b1)
            acc = jnp.zeros((Lout, C2p), jnp.float32) + b1_ref[li]
            for k in range(K):
                acc = acc + jnp.dot(hq[k * d:k * d + Lout, :], w1_ref[li, k],
                                    preferred_element_type=jnp.float32)
            # GELU (exact erf), evaluated in the MXU dtype (bf16 on perf path)
            a = _gelu_exact(acc.astype(mxu_dtype))
            # 1x1 Conv1d 2C -> C, residual add, nonpadding mask
            y = jnp.dot(a, w2_ref[li],
                        preferred_element_type=jnp.float32) + b2_ref[li]
            cur = (cur[p:p + Lout, :] + y) * mask[off + p:off + p + Lout]
            off += p
            li += 1

    # x*nonpad -> last_norm(LN)*nonpad -> post_net Conv1d -> *nonpad
    L = cur.shape[0]
    pp = Kp // 2
    Lout = L - 2 * pp
    m = mask[off:off + L]
    xm = cur * m
    h = _layer_norm_2pass(xm, g_ref[li], bt_ref[li], cmask, inv_c, ln_eps) * m
    hq = (h * inr[off:off + L]).astype(mxu_dtype)
    acc = jnp.zeros((Lout, Op), jnp.float32) + bp_ref[0]
    for k in range(Kp):
        acc = acc + jnp.dot(hq[k:k + Lout, :], wp_ref[k],
                            preferred_element_type=jnp.float32)
    out = acc * mask[off + pp:off + pp + Lout]

    start = H - (off + pp)      # >= 0: summed receptive radius rounds up to H
    o_ref[0] = out[start:start + t_tile, :]


# --------------------------------------------------------------------------
# One-time parameter preparation (transpose / pad / scale-fold / cast / stack)
# --------------------------------------------------------------------------
def prepare_params(params, *, kernel_size, mxu_dtype=jnp.bfloat16):
    K = kernel_size
    blocks = params['blocks']
    C = int(params['last_gamma'].shape[0])
    C2 = int(blocks[0]['w1'].shape[1])
    O = int(params['post_w'].shape[0])
    Cp, C2p, Op = _round_up(C, LANE), _round_up(C2, LANE), _round_up(O, LANE)
    scale = K ** (-0.5)

    gamma = jnp.concatenate([b['gamma'] for b in blocks]
                            + [params['last_gamma'][None, :]], axis=0)  # [S+1,C]
    beta = jnp.concatenate([b['beta'] for b in blocks]
                           + [params['last_beta'][None, :]], axis=0)
    w1 = jnp.concatenate([b['w1'] for b in blocks], axis=0)             # [S,C2,C,K]
    b1 = jnp.concatenate([b['b1'] for b in blocks], axis=0)             # [S,C2]
    w2 = jnp.concatenate([b['w2'] for b in blocks], axis=0)             # [S,C,C2]
    b2 = jnp.concatenate([b['b2'] for b in blocks], axis=0)             # [S,C]

    w1 = jnp.transpose(w1, (0, 3, 2, 1)) * scale                        # [S,K,C,C2]
    w2 = jnp.transpose(w2, (0, 2, 1))                                   # [S,C2,C]
    wp = jnp.transpose(params['post_w'], (2, 1, 0))                     # [Kp,C,O]

    return dict(
        ln_gamma=_pad_dim(gamma.astype(jnp.float32), 1, Cp),
        ln_beta=_pad_dim(beta.astype(jnp.float32), 1, Cp),
        w1=_pad_dim(_pad_dim(w1, 2, Cp), 3, C2p).astype(mxu_dtype),
        b1=_pad_dim(b1.astype(jnp.float32) * scale, 1, C2p),
        w2=_pad_dim(_pad_dim(w2, 1, C2p), 2, Cp).astype(mxu_dtype),
        b2=_pad_dim(b2.astype(jnp.float32), 1, Cp),
        wp=_pad_dim(_pad_dim(wp, 1, Cp), 2, Op).astype(mxu_dtype),
        bp=_pad_dim(params['post_b'].astype(jnp.float32)[None, :], 1, Op),
    )


# --------------------------------------------------------------------------
# Wrapper
# --------------------------------------------------------------------------
def conv_blocks_forward(x_btc, prepped, *, kernel_size, dilations,
                        layers_in_block=2, post_net_kernel=3, channels,
                        out_dims, ln_eps=1e-5, mxu_dtype=jnp.bfloat16,
                        time_tile=1024, vmem_limit_bytes=None):
    """Fused Pallas TPU forward of ConvBlocks.  x_btc: [B,T,H] -> [B,T,out_dims]."""
    B, T, C = x_btc.shape
    K, Kp, n_sub = kernel_size, post_net_kernel, layers_in_block
    assert C == channels
    assert Kp % 2 == 1, "post_net_kernel must be odd for same-length output"
    for d in dilations:
        assert (d * (K - 1)) % 2 == 0, (
            "dilation*(kernel_size-1) must be even for same-length conv")

    Cp = prepped['ln_gamma'].shape[-1]
    Op = prepped['wp'].shape[-1]
    S = prepped['w1'].shape[0]
    assert S == n_sub * len(dilations)
    assert prepped['w1'].dtype == mxu_dtype

    # one halo shared by the whole fused kernel: the SUM of every conv's
    # one-sided receptive radius, rounded up to a sublane multiple.
    halo_exact = sum(n_sub * (d * (K - 1) // 2) for d in dilations) + Kp // 2
    H = max(SUBLANE, _round_up(halo_exact, SUBLANE))

    # v5e/v6e: 1024-2048 works well; on v7x (64 MiB VMEM) prefer <=512 or pass
    # an explicit vmem_limit_bytes once channel counts grow.
    t_tile = max(H, min(_round_up(time_tile, H), _round_up(T, H)))
    Tp = _round_up(T, t_tile)
    nT = Tp // t_tile
    R = t_tile // H

    # activations: channels-last f32, zero-padded to [B, Tp, Cp] (lane dense)
    x = _pad_dim(_pad_dim(x_btc.astype(jnp.float32), 2, Cp), 1, Tp)

    # halo'd window = (last H rows of the previous tile | tile | first H rows
    # of the next tile).  The edge-clamped halo blocks load duplicated real
    # rows; the in-kernel `inr` mask turns them into the convs' zero padding.
    x_specs = [
        pl.BlockSpec((1, H, Cp),
                     lambda t, b: (b, jnp.maximum(t * R - 1, 0), 0)),
        pl.BlockSpec((1, t_tile, Cp), lambda t, b: (b, t, 0)),
        pl.BlockSpec((1, H, Cp),
                     lambda t, b: (b, jnp.minimum((t + 1) * R, nT * R - 1), 0)),
    ]

    def _const(a):
        n = a.ndim
        return pl.BlockSpec(a.shape, lambda t, b: (0,) * n)

    w_names = ('ln_gamma', 'ln_beta', 'w1', 'b1', 'w2', 'b2', 'wp', 'bp')
    w_args = [prepped[k] for k in w_names]

    kern = functools.partial(
        _conv_blocks_kernel, dilations=tuple(dilations), n_sub=n_sub,
        kernel_size=K, post_kernel_size=Kp, halo=H, t_tile=t_tile, seq_len=T,
        channels=C, ln_eps=ln_eps, mxu_dtype=mxu_dtype)

    y = pl.pallas_call(
        kern,
        out_shape=jax.ShapeDtypeStruct((B, Tp, Op), jnp.float32),
        grid=(nT, B),       # time leading -> even split across v7x's 2 TCs
        in_specs=x_specs + [_const(a) for a in w_args],
        out_specs=pl.BlockSpec((1, t_tile, Op), lambda t, b: (b, t, 0)),
        compiler_params=pltpu.CompilerParams(
            dimension_semantics=("parallel", "parallel"),
            vmem_limit_bytes=vmem_limit_bytes),
    )(x, x, x, *w_args)

    return y[:, :T, :out_dims]


# --------------------------------------------------------------------------
# Parameters + pure-JAX reference (mirrors the PyTorch forward, f32)
# --------------------------------------------------------------------------
def init_params(key, channels, out_dims, kernel_size, c_multiple, n_sub,
                num_blocks, post_net_kernel):
    C = channels
    C2 = c_multiple * channels
    K = kernel_size
    blocks = []
    for i in range(num_blocks):
        ks = jax.random.split(jax.random.fold_in(key, i), 6)
        b1w = 1.0 / math.sqrt(C * K)
        b2w = 1.0 / math.sqrt(C2)
        blocks.append(dict(
            gamma=1.0 + 0.1 * jax.random.normal(ks[0], (n_sub, C), jnp.float32),
            beta=0.1 * jax.random.normal(ks[1], (n_sub, C), jnp.float32),
            w1=jax.random.uniform(ks[2], (n_sub, C2, C, K), jnp.float32, -b1w, b1w),
            b1=jax.random.uniform(ks[3], (n_sub, C2), jnp.float32, -b1w, b1w),
            w2=jax.random.uniform(ks[4], (n_sub, C, C2), jnp.float32, -b2w, b2w),
            b2=jax.random.uniform(ks[5], (n_sub, C), jnp.float32, -b2w, b2w),
        ))
    kf = jax.random.split(jax.random.fold_in(key, 10**6), 4)
    bpw = 1.0 / math.sqrt(C * post_net_kernel)
    return dict(
        blocks=blocks,
        last_gamma=1.0 + 0.1 * jax.random.normal(kf[0], (C,), jnp.float32),
        last_beta=0.1 * jax.random.normal(kf[1], (C,), jnp.float32),
        post_w=jax.random.uniform(kf[2], (out_dims, C, post_net_kernel),
                                  jnp.float32, -bpw, bpw),
        post_b=jax.random.uniform(kf[3], (out_dims,), jnp.float32, -bpw, bpw),
    )


def _conv1d_ref(x_btc, w_oik, bias, dilation, padding):
    w = jnp.transpose(w_oik, (2, 1, 0))  # [K, I, O]
    out = lax.conv_general_dilated(
        x_btc, w, window_strides=(1,), padding=[(padding, padding)],
        rhs_dilation=(dilation,), dimension_numbers=('NWC', 'WIO', 'NWC'),
        precision=lax.Precision.HIGHEST)
    return out + bias


def _ln_ref(x, gamma, beta, eps):
    mean = jnp.mean(x, axis=-1, keepdims=True)
    var = jnp.mean((x - mean) ** 2, axis=-1, keepdims=True)
    return (x - mean) / jnp.sqrt(var + eps) * gamma + beta


def conv_blocks_reference(x_btc, params, *, kernel_size, dilations,
                          post_net_kernel=3, ln_eps=1e-5):
    x = x_btc.astype(jnp.float32)
    K = kernel_size
    nonpad_cb = (jnp.sum(jnp.abs(x), axis=-1, keepdims=True) > 0).astype(jnp.float32)
    for blk, d in zip(params['blocks'], dilations):
        p = d * (K - 1) // 2
        nonpad = (jnp.sum(jnp.abs(x), axis=-1, keepdims=True) > 0).astype(jnp.float32)
        for j in range(blk['gamma'].shape[0]):
            h = _ln_ref(x, blk['gamma'][j], blk['beta'][j], ln_eps)
            h = _conv1d_ref(h, blk['w1'][j], blk['b1'][j], d, p)
            h = h * (K ** (-0.5))
            h = _gelu_exact(h)
            h = _conv1d_ref(h, blk['w2'][j][:, :, None], blk['b2'][j], 1, 0)
            x = (x + h) * nonpad
    x = x * nonpad_cb
    x = _ln_ref(x, params['last_gamma'], params['last_beta'], ln_eps) * nonpad_cb
    x = _conv1d_ref(x, params['post_w'], params['post_b'], 1,
                    post_net_kernel // 2) * nonpad_cb
    return x


# --------------------------------------------------------------------------
if __name__ == "__main__":
    B, T, HID, OUT = 2, 40, 48, 32            # batch, time, hidden, out_dims
    K, DILATIONS, N_SUB, C_MULT, KP = 3, (1, 2), 2, 2, 3

    key = jax.random.PRNGKey(0)
    kx, kp = jax.random.split(key)
    x = jax.random.normal(kx, (B, T, HID), jnp.float32)
    # exercise the nonpadding-mask path: trailing zeros on batch 0, leading AND
    # trailing zeros on batch 1 (T is also not a multiple of the time tile).
    t_idx = jnp.arange(T)
    valid = jnp.stack([(t_idx < T - 8),
                       (t_idx >= 3) & (t_idx < T - 12)], axis=0)
    x = x * valid.astype(jnp.float32)[:, :, None]

    params = init_params(kp, HID, OUT, K, C_MULT, N_SUB, len(DILATIONS), KP)
    prepped = prepare_params(params, kernel_size=K, mxu_dtype=jnp.bfloat16)

    # time_tile=16 only to exercise the multi-tile / halo path at this tiny T;
    # the default (1024) is used for real sequence lengths.
    fwd = jax.jit(functools.partial(
        conv_blocks_forward, kernel_size=K, dilations=DILATIONS,
        layers_in_block=N_SUB, post_net_kernel=KP, channels=HID, out_dims=OUT,
        mxu_dtype=jnp.bfloat16, time_tile=16))

    out = jax.block_until_ready(fwd(x, prepped))
    assert out.shape == (B, T, OUT), out.shape

    ref = conv_blocks_reference(x, params, kernel_size=K, dilations=DILATIONS,
                                post_net_kernel=KP)
    err = float(jnp.max(jnp.abs(out - ref)))
    assert err < 0.15, f"kernel mismatch vs reference, max abs err={err}"

    print("KERNEL_OK")
</pallas_src>

<mosaic_0001>
module attributes {stable_mosaic.version = 11 : i64} {
  func.func @_conv_blocks_kernel(%arg0: i32, %arg1: i32, %arg2: memref<1x8x128xf32, #tpu.memory_space<vmem>>, %arg3: memref<1x16x128xf32, #tpu.memory_space<vmem>>, %arg4: memref<1x8x128xf32, #tpu.memory_space<vmem>>, %arg5: memref<5x128xf32, #tpu.memory_space<vmem>>, %arg6: memref<5x128xf32, #tpu.memory_space<vmem>>, %arg7: memref<4x3x128x128xbf16, #tpu.memory_space<vmem>>, %arg8: memref<4x128xf32, #tpu.memory_space<vmem>>, %arg9: memref<4x128x128xbf16, #tpu.memory_space<vmem>>, %arg10: memref<4x128xf32, #tpu.memory_space<vmem>>, %arg11: memref<3x128x128xbf16, #tpu.memory_space<vmem>>, %arg12: memref<1x128xf32, #tpu.memory_space<vmem>>, %arg13: memref<1x16x128xf32, #tpu.memory_space<vmem>>) attributes {dimension_semantics = [#tpu.dimension_semantics<parallel>, #tpu.dimension_semantics<parallel>], iteration_bounds = array<i64: 3, 2>, scalar_prefetch = 0 : i64, scratch_operands = 0 : i64, tpu.core_type = #tpu.core_type<tc>, window_params = [{transform_indices = @transform_0, window_bounds = array<i64: 1, 8, 128>}, {transform_indices = @transform_1, window_bounds = array<i64: 1, 16, 128>}, {transform_indices = @transform_2, window_bounds = array<i64: 1, 8, 128>}, {pipeline_mode = #tpu.pipeline_mode<synchronous>, transform_indices = @transform_3, window_bounds = array<i64: 5, 128>}, {pipeline_mode = #tpu.pipeline_mode<synchronous>, transform_indices = @transform_4, window_bounds = array<i64: 5, 128>}, {pipeline_mode = #tpu.pipeline_mode<synchronous>, transform_indices = @transform_5, window_bounds = array<i64: 4, 3, 128, 128>}, {pipeline_mode = #tpu.pipeline_mode<synchronous>, transform_indices = @transform_6, window_bounds = array<i64: 4, 128>}, {pipeline_mode = #tpu.pipeline_mode<synchronous>, transform_indices = @transform_7, window_bounds = array<i64: 4, 128, 128>}, {pipeline_mode = #tpu.pipeline_mode<synchronous>, transform_indices = @transform_8, window_bounds = array<i64: 4, 128>}, {pipeline_mode = #tpu.pipeline_mode<synchronous>, transform_indices = @transform_9, window_bounds = array<i64: 3, 128, 128>}, {pipeline_mode = #tpu.pipeline_mode<synchronous>, transform_indices = @transform_10, window_bounds = array<i64: 1, 128>}, {transform_indices = @transform_11, window_bounds = array<i64: 1, 16, 128>}]} {
    %0 = tpu.iota {dimensions = array<i32: 1>} : vector<1x128xi32>
    %c48_i32 = arith.constant 48 : i32
    %1 = vector.broadcast %c48_i32 : i32 to vector<1x128xi32>
    %2 = arith.cmpi slt, %0, %1 : vector<1x128xi32>
    %3 = arith.extui %2 : vector<1x128xi1> to vector<1x128xi32>
    %4 = arith.sitofp %3 : vector<1x128xi32> to vector<1x128xf32>
    %c0 = arith.constant 0 : index
    %c0_0 = arith.constant 0 : index
    %c0_1 = arith.constant 0 : index
    %5 = vector.load %arg2[%c0, %c0_0, %c0_1] : memref<1x8x128xf32, #tpu.memory_space<vmem>>, vector<1x8x128xf32>
    %6 = vector.shape_cast %5 : vector<1x8x128xf32> to vector<8x128xf32>
    %c0_2 = arith.constant 0 : index
    %c0_3 = arith.constant 0 : index
    %c0_4 = arith.constant 0 : index
    %7 = vector.load %arg3[%c0_2, %c0_3, %c0_4] : memref<1x16x128xf32, #tpu.memory_space<vmem>>, vector<1x16x128xf32>
    %8 = vector.shape_cast %7 : vector<1x16x128xf32> to vector<16x128xf32>
    %c0_5 = arith.constant 0 : index
    %c0_6 = arith.constant 0 : index
    %c0_7 = arith.constant 0 : index
    %9 = vector.load %arg4[%c0_5, %c0_6, %c0_7] : memref<1x8x128xf32, #tpu.memory_space<vmem>>, vector<1x8x128xf32>
    %10 = vector.shape_cast %9 : vector<1x8x128xf32> to vector<8x128xf32>
    %11 = tpu.concatenate %6, %8, %10 in 0 : vector<8x128xf32>, vector<16x128xf32>, vector<8x128xf32> -> vector<32x128xf32>
    %12 = math.absf %11 : vector<32x128xf32>
    %cst = arith.constant dense<0.000000e+00> : vector<32xf32>
    %13 = vector.multi_reduction <add>, %12, %cst [1] : vector<32x128xf32> to vector<32xf32>
    %14 = vector.shape_cast %13 : vector<32xf32> to vector<32x1xf32>
    %cst_8 = arith.constant 0.000000e+00 : f32
    %15 = vector.broadcast %cst_8 : f32 to vector<32x1xf32>
    %16 = arith.cmpf ogt, %14, %15 : vector<32x1xf32>
    %17 = arith.extui %16 : vector<32x1xi1> to vector<32x1xi32>
    %18 = arith.sitofp %17 : vector<32x1xi32> to vector<32x1xf32>
    %c16_i32 = arith.constant 16 : i32
    %19 = arith.muli %arg0, %c16_i32 : i32
    %c8_i32 = arith.constant 8 : i32
    %20 = arith.subi %19, %c8_i32 : i32
    %21 = tpu.iota {dimensions = array<i32: 0>} : vector<32x1xi32>
    %22 = vector.broadcast %20 : i32 to vector<32x1xi32>
    %23 = arith.addi %22, %21 : vector<32x1xi32>
    %c0_i32 = arith.constant 0 : i32
    %24 = vector.broadcast %c0_i32 : i32 to vector<32x1xi32>
    %25 = arith.cmpi sge, %23, %24 : vector<32x1xi32>
    %c40_i32 = arith.constant 40 : i32
    %26 = vector.broadcast %c40_i32 : i32 to vector<32x1xi32>
    %27 = arith.cmpi slt, %23, %26 : vector<32x1xi32>
    %28 = arith.andi %25, %27 : vector<32x1xi1>
    %29 = arith.extui %28 : vector<32x1xi1> to vector<32x1xi32>
    %30 = arith.sitofp %29 : vector<32x1xi32> to vector<32x1xf32>
    %c0_9 = arith.constant 0 : index
    %c0_10 = arith.constant 0 : index
    %31 = vector.load %arg5[%c0_9, %c0_10] : memref<5x128xf32, #tpu.memory_space<vmem>>, vector<1x128xf32>
    %32 = vector.shape_cast %31 : vector<1x128xf32> to vector<128xf32>
    %c0_11 = arith.constant 0 : index
    %c0_12 = arith.constant 0 : index
    %33 = vector.load %arg6[%c0_11, %c0_12] : memref<5x128xf32, #tpu.memory_space<vmem>>, vector<1x128xf32>
    %34 = vector.shape_cast %33 : vector<1x128xf32> to vector<128xf32>
    %cst_13 = arith.constant dense<0.000000e+00> : vector<32xf32>
    %35 = vector.multi_reduction <add>, %11, %cst_13 [1] : vector<32x128xf32> to vector<32xf32>
    %36 = vector.shape_cast %35 : vector<32xf32> to vector<32x1xf32>
    %cst_14 = arith.constant 0.020833334 : f32
    %37 = vector.broadcast %cst_14 : f32 to vector<32x1xf32>
    %38 = arith.mulf %36, %37 : vector<32x1xf32>
    %39 = vector.broadcast %38 : vector<32x1xf32> to vector<32x128xf32>
    %40 = arith.subf %11, %39 : vector<32x128xf32>
    %41 = vector.broadcast %4 : vector<1x128xf32> to vector<32x128xf32>
    %42 = arith.mulf %40, %41 : vector<32x128xf32>
    %43 = arith.mulf %42, %42 : vector<32x128xf32>
    %cst_15 = arith.constant dense<0.000000e+00> : vector<32xf32>
    %44 = vector.multi_reduction <add>, %43, %cst_15 [1] : vector<32x128xf32> to vector<32xf32>
    %45 = vector.shape_cast %44 : vector<32xf32> to vector<32x1xf32>
    %cst_16 = arith.constant 0.020833334 : f32
    %46 = vector.broadcast %cst_16 : f32 to vector<32x1xf32>
    %47 = arith.mulf %45, %46 : vector<32x1xf32>
    %cst_17 = arith.constant 9.99999974E-6 : f32
    %48 = vector.broadcast %cst_17 : f32 to vector<32x1xf32>
    %49 = arith.addf %47, %48 : vector<32x1xf32>
    %50 = math.rsqrt %49 : vector<32x1xf32>
    %51 = vector.broadcast %50 : vector<32x1xf32> to vector<32x128xf32>
    %52 = arith.mulf %42, %51 : vector<32x128xf32>
    %53 = vector.shape_cast %32 : vector<128xf32> to vector<1x128xf32>
    %54 = vector.broadcast %53 : vector<1x128xf32> to vector<32x128xf32>
    %55 = arith.mulf %52, %54 : vector<32x128xf32>
    %56 = vector.shape_cast %34 : vector<128xf32> to vector<1x128xf32>
    %57 = vector.broadcast %56 : vector<1x128xf32> to vector<32x128xf32>
    %58 = arith.addf %55, %57 : vector<32x128xf32>
    %59 = vector.broadcast %30 : vector<32x1xf32> to vector<32x128xf32>
    %60 = arith.mulf %58, %59 : vector<32x128xf32>
    %61 = arith.truncf %60 : vector<32x128xf32> to vector<32x128xbf16>
    %cst_18 = arith.constant 0.000000e+00 : f32
    %62 = vector.broadcast %cst_18 : f32 to vector<30x128xf32>
    %c0_19 = arith.constant 0 : index
    %c0_20 = arith.constant 0 : index
    %63 = vector.load %arg8[%c0_19, %c0_20] : memref<4x128xf32, #tpu.memory_space<vmem>>, vector<1x128xf32>
    %64 = vector.shape_cast %63 : vector<1x128xf32> to vector<128xf32>
    %65 = vector.shape_cast %64 : vector<128xf32> to vector<1x128xf32>
    %66 = vector.broadcast %65 : vector<1x128xf32> to vector<30x128xf32>
    %67 = arith.addf %62, %66 : vector<30x128xf32>
    %68 = vector.extract_strided_slice %61 {offsets = [0, 0], sizes = [30, 128], strides = [1, 1]} : vector<32x128xbf16> to vector<30x128xbf16>
    %c0_21 = arith.constant 0 : index
    %c0_22 = arith.constant 0 : index
    %c0_23 = arith.constant 0 : index
    %c0_24 = arith.constant 0 : index
    %69 = vector.load %arg7[%c0_21, %c0_22, %c0_23, %c0_24] : memref<4x3x128x128xbf16, #tpu.memory_space<vmem>>, vector<1x1x128x128xbf16>
    %70 = vector.shape_cast %69 : vector<1x1x128x128xbf16> to vector<128x128xbf16>
    %cst_25 = arith.constant dense<0.000000e+00> : vector<30x128xf32>
    %71 = tpu.matmul %68, %70, %cst_25 {dimension_numbers = #tpu.dot_dimension_numbers<[1], [0], [0], [1], [0, 0, 1, 1], [], []>} : vector<30x128xbf16>, vector<128x128xbf16>, vector<30x128xf32> -> vector<30x128xf32>
    %72 = arith.addf %67, %71 : vector<30x128xf32>
    %73 = vector.extract_strided_slice %61 {offsets = [1, 0], sizes = [30, 128], strides = [1, 1]} : vector<32x128xbf16> to vector<30x128xbf16>
    %c0_26 = arith.constant 0 : index
    %c1 = arith.constant 1 : index
    %c0_27 = arith.constant 0 : index
    %c0_28 = arith.constant 0 : index
    %74 = vector.load %arg7[%c0_26, %c1, %c0_27, %c0_28] : memref<4x3x128x128xbf16, #tpu.memory_space<vmem>>, vector<1x1x128x128xbf16>
    %75 = vector.shape_cast %74 : vector<1x1x128x128xbf16> to vector<128x128xbf16>
    %cst_29 = arith.constant dense<0.000000e+00> : vector<30x128xf32>
    %76 = tpu.matmul %73, %75, %cst_29 {dimension_numbers = #tpu.dot_dimension_numbers<[1], [0], [0], [1], [0, 0, 1, 1], [], []>} : vector<30x128xbf16>, vector<128x128xbf16>, vector<30x128xf32> -> vector<30x128xf32>
    %77 = arith.addf %72, %76 : vector<30x128xf32>
    %78 = vector.extract_strided_slice %61 {offsets = [2, 0], sizes = [30, 128], strides = [1, 1]} : vector<32x128xbf16> to vector<30x128xbf16>
    %c0_30 = arith.constant 0 : index
    %c2 = arith.constant 2 : index
    %c0_31 = arith.constant 0 : index
    %c0_32 = arith.constant 0 : index
    %79 = vector.load %arg7[%c0_30, %c2, %c0_31, %c0_32] : memref<4x3x128x128xbf16, #tpu.memory_space<vmem>>, vector<1x1x128x128xbf16>
    %80 = vector.shape_cast %79 : vector<1x1x128x128xbf16> to vector<128x128xbf16>
    %cst_33 = arith.constant dense<0.000000e+00> : vector<30x128xf32>
    %81 = tpu.matmul %78, %80, %cst_33 {dimension_numbers = #tpu.dot_dimension_numbers<[1], [0], [0], [1], [0, 0, 1, 1], [], []>} : vector<30x128xbf16>, vector<128x128xbf16>, vector<30x128xf32> -> vector<30x128xf32>
    %82 = arith.addf %77, %81 : vector<30x128xf32>
    %83 = arith.truncf %82 : vector<30x128xf32> to vector<30x128xbf16>
    %cst_34 = arith.constant 5.000000e-01 : bf16
    %84 = vector.broadcast %cst_34 : bf16 to vector<30x128xbf16>
    %85 = arith.mulf %84, %83 : vector<30x128xbf16>
    %cst_35 = arith.constant 7.070310e-01 : bf16
    %86 = vector.broadcast %cst_35 : bf16 to vector<30x128xbf16>
    %87 = arith.mulf %83, %86 : vector<30x128xbf16>
    %88 = math.erf %87 : vector<30x128xbf16>
    %cst_36 = arith.constant 1.000000e+00 : bf16
    %89 = vector.broadcast %cst_36 : bf16 to vector<30x128xbf16>
    %90 = arith.addf %89, %88 : vector<30x128xbf16>
    %91 = arith.mulf %85, %90 : vector<30x128xbf16>
    %c0_37 = arith.constant 0 : index
    %c0_38 = arith.constant 0 : index
    %c0_39 = arith.constant 0 : index
    %92 = vector.load %arg9[%c0_37, %c0_38, %c0_39] : memref<4x128x128xbf16, #tpu.memory_space<vmem>>, vector<1x128x128xbf16>
    %93 = vector.shape_cast %92 : vector<1x128x128xbf16> to vector<128x128xbf16>
    %cst_40 = arith.constant dense<0.000000e+00> : vector<30x128xf32>
    %94 = tpu.matmul %91, %93, %cst_40 {dimension_numbers = #tpu.dot_dimension_numbers<[1], [0], [0], [1], [0, 0, 1, 1], [], []>} : vector<30x128xbf16>, vector<128x128xbf16>, vector<30x128xf32> -> vector<30x128xf32>
    %c0_41 = arith.constant 0 : index
    %c0_42 = arith.constant 0 : index
    %95 = vector.load %arg10[%c0_41, %c0_42] : memref<4x128xf32, #tpu.memory_space<vmem>>, vector<1x128xf32>
    %96 = vector.shape_cast %95 : vector<1x128xf32> to vector<128xf32>
    %97 = vector.shape_cast %96 : vector<128xf32> to vector<1x128xf32>
    %98 = vector.broadcast %97 : vector<1x128xf32> to vector<30x128xf32>
    %99 = arith.addf %94, %98 : vector<30x128xf32>
    %100 = vector.extract_strided_slice %11 {offsets = [1, 0], sizes = [30, 128], strides = [1, 1]} : vector<32x128xf32> to vector<30x128xf32>
    %101 = arith.addf %100, %99 : vector<30x128xf32>
    %102 = vector.extract_strided_slice %18 {offsets = [1, 0], sizes = [30, 1], strides = [1, 1]} : vector<32x1xf32> to vector<30x1xf32>
    %103 = vector.broadcast %102 : vector<30x1xf32> to vector<30x128xf32>
    %104 = arith.mulf %101, %103 : vector<30x128xf32>
    %c1_43 = arith.constant 1 : index
    %c0_44 = arith.constant 0 : index
    %105 = vector.load %arg5[%c1_43, %c0_44] : memref<5x128xf32, #tpu.memory_space<vmem>>, vector<1x128xf32>
    %106 = vector.shape_cast %105 : vector<1x128xf32> to vector<128xf32>
    %c1_45 = arith.constant 1 : index
    %c0_46 = arith.constant 0 : index
    %107 = vector.load %arg6[%c1_45, %c0_46] : memref<5x128xf32, #tpu.memory_space<vmem>>, vector<1x128xf32>
    %108 = vector.shape_cast %107 : vector<1x128xf32> to vector<128xf32>
    %cst_47 = arith.constant dense<0.000000e+00> : vector<30xf32>
    %109 = vector.multi_reduction <add>, %104, %cst_47 [1] : vector<30x128xf32> to vector<30xf32>
    %110 = vector.shape_cast %109 : vector<30xf32> to vector<30x1xf32>
    %cst_48 = arith.constant 0.020833334 : f32
    %111 = vector.broadcast %cst_48 : f32 to vector<30x1xf32>
    %112 = arith.mulf %110, %111 : vector<30x1xf32>
    %113 = vector.broadcast %112 : vector<30x1xf32> to vector<30x128xf32>
    %114 = arith.subf %104, %113 : vector<30x128xf32>
    %115 = vector.broadcast %4 : vector<1x128xf32> to vector<30x128xf32>
    %116 = arith.mulf %114, %115 : vector<30x128xf32>
    %117 = arith.mulf %116, %116 : vector<30x128xf32>
    %cst_49 = arith.constant dense<0.000000e+00> : vector<30xf32>
    %118 = vector.multi_reduction <add>, %117, %cst_49 [1] : vector<30x128xf32> to vector<30xf32>
    %119 = vector.shape_cast %118 : vector<30xf32> to vector<30x1xf32>
    %cst_50 = arith.constant 0.020833334 : f32
    %120 = vector.broadcast %cst_50 : f32 to vector<30x1xf32>
    %121 = arith.mulf %119, %120 : vector<30x1xf32>
    %cst_51 = arith.constant 9.99999974E-6 : f32
    %122 = vector.broadcast %cst_51 : f32 to vector<30x1xf32>
    %123 = arith.addf %121, %122 : vector<30x1xf32>
    %124 = math.rsqrt %123 : vector<30x1xf32>
    %125 = vector.broadcast %124 : vector<30x1xf32> to vector<30x128xf32>
    %126 = arith.mulf %116, %125 : vector<30x128xf32>
    %127 = vector.shape_cast %106 : vector<128xf32> to vector<1x128xf32>
    %128 = vector.broadcast %127 : vector<1x128xf32> to vector<30x128xf32>
    %129 = arith.mulf %126, %128 : vector<30x128xf32>
    %130 = vector.shape_cast %108 : vector<128xf32> to vector<1x128xf32>
    %131 = vector.broadcast %130 : vector<1x128xf32> to vector<30x128xf32>
    %132 = arith.addf %129, %131 : vector<30x128xf32>
    %133 = vector.extract_strided_slice %30 {offsets = [1, 0], sizes = [30, 1], strides = [1, 1]} : vector<32x1xf32> to vector<30x1xf32>
    %134 = vector.broadcast %133 : vector<30x1xf32> to vector<30x128xf32>
    %135 = arith.mulf %132, %134 : vector<30x128xf32>
    %136 = arith.truncf %135 : vector<30x128xf32> to vector<30x128xbf16>
    %cst_52 = arith.constant 0.000000e+00 : f32
    %137 = vector.broadcast %cst_52 : f32 to vector<28x128xf32>
    %c1_53 = arith.constant 1 : index
    %c0_54 = arith.constant 0 : index
    %138 = vector.load %arg8[%c1_53, %c0_54] : memref<4x128xf32, #tpu.memory_space<vmem>>, vector<1x128xf32>
    %139 = vector.shape_cast %138 : vector<1x128xf32> to vector<128xf32>
    %140 = vector.shape_cast %139 : vector<128xf32> to vector<1x128xf32>
    %141 = vector.broadcast %140 : vector<1x128xf32> to vector<28x128xf32>
    %142 = arith.addf %137, %141 : vector<28x128xf32>
    %143 = vector.extract_strided_slice %136 {offsets = [0, 0], sizes = [28, 128], strides = [1, 1]} : vector<30x128xbf16> to vector<28x128xbf16>
    %c1_55 = arith.constant 1 : index
    %c0_56 = arith.constant 0 : index
    %c0_57 = arith.constant 0 : index
    %c0_58 = arith.constant 0 : index
    %144 = vector.load %arg7[%c1_55, %c0_56, %c0_57, %c0_58] : memref<4x3x128x128xbf16, #tpu.memory_space<vmem>>, vector<1x1x128x128xbf16>
    %145 = vector.shape_cast %144 : vector<1x1x128x128xbf16> to vector<128x128xbf16>
    %cst_59 = arith.constant dense<0.000000e+00> : vector<28x128xf32>
    %146 = tpu.matmul %143, %145, %cst_59 {dimension_numbers = #tpu.dot_dimension_numbers<[1], [0], [0], [1], [0, 0, 1, 1], [], []>} : vector<28x128xbf16>, vector<128x128xbf16>, vector<28x128xf32> -> vector<28x128xf32>
    %147 = arith.addf %142, %146 : vector<28x128xf32>
    %148 = vector.extract_strided_slice %136 {offsets = [1, 0], sizes = [28, 128], strides = [1, 1]} : vector<30x128xbf16> to vector<28x128xbf16>
    %c1_60 = arith.constant 1 : index
    %c1_61 = arith.constant 1 : index
    %c0_62 = arith.constant 0 : index
    %c0_63 = arith.constant 0 : index
    %149 = vector.load %arg7[%c1_60, %c1_61, %c0_62, %c0_63] : memref<4x3x128x128xbf16, #tpu.memory_space<vmem>>, vector<1x1x128x128xbf16>
    %150 = vector.shape_cast %149 : vector<1x1x128x128xbf16> to vector<128x128xbf16>
    %cst_64 = arith.constant dense<0.000000e+00> : vector<28x128xf32>
    %151 = tpu.matmul %148, %150, %cst_64 {dimension_numbers = #tpu.dot_dimension_numbers<[1], [0], [0], [1], [0, 0, 1, 1], [], []>} : vector<28x128xbf16>, vector<128x128xbf16>, vector<28x128xf32> -> vector<28x128xf32>
    %152 = arith.addf %147, %151 : vector<28x128xf32>
    %153 = vector.extract_strided_slice %136 {offsets = [2, 0], sizes = [28, 128], strides = [1, 1]} : vector<30x128xbf16> to vector<28x128xbf16>
    %c1_65 = arith.constant 1 : index
    %c2_66 = arith.constant 2 : index
    %c0_67 = arith.constant 0 : index
    %c0_68 = arith.constant 0 : index
    %154 = vector.load %arg7[%c1_65, %c2_66, %c0_67, %c0_68] : memref<4x3x128x128xbf16, #tpu.memory_space<vmem>>, vector<1x1x128x128xbf16>
    %155 = vector.shape_cast %154 : vector<1x1x128x128xbf16> to vector<128x128xbf16>
    %cst_69 = arith.constant dense<0.000000e+00> : vector<28x128xf32>
    %156 = tpu.matmul %153, %155, %cst_69 {dimension_numbers = #tpu.dot_dimension_numbers<[1], [0], [0], [1], [0, 0, 1, 1], [], []>} : vector<28x128xbf16>, vector<128x128xbf16>, vector<28x128xf32> -> vector<28x128xf32>
    %157 = arith.addf %152, %156 : vector<28x128xf32>
    %158 = arith.truncf %157 : vector<28x128xf32> to vector<28x128xbf16>
    %cst_70 = arith.constant 5.000000e-01 : bf16
    %159 = vector.broadcast %cst_70 : bf16 to vector<28x128xbf16>
    %160 = arith.mulf %159, %158 : vector<28x128xbf16>
    %cst_71 = arith.constant 7.070310e-01 : bf16
    %161 = vector.broadcast %cst_71 : bf16 to vector<28x128xbf16>
    %162 = arith.mulf %158, %161 : vector<28x128xbf16>
    %163 = math.erf %162 : vector<28x128xbf16>
    %cst_72 = arith.constant 1.000000e+00 : bf16
    %164 = vector.broadcast %cst_72 : bf16 to vector<28x128xbf16>
    %165 = arith.addf %164, %163 : vector<28x128xbf16>
    %166 = arith.mulf %160, %165 : vector<28x128xbf16>
    %c1_73 = arith.constant 1 : index
    %c0_74 = arith.constant 0 : index
    %c0_75 = arith.constant 0 : index
    %167 = vector.load %arg9[%c1_73, %c0_74, %c0_75] : memref<4x128x128xbf16, #tpu.memory_space<vmem>>, vector<1x128x128xbf16>
    %168 = vector.shape_cast %167 : vector<1x128x128xbf16> to vector<128x128xbf16>
    %cst_76 = arith.constant dense<0.000000e+00> : vector<28x128xf32>
    %169 = tpu.matmul %166, %168, %cst_76 {dimension_numbers = #tpu.dot_dimension_numbers<[1], [0], [0], [1], [0, 0, 1, 1], [], []>} : vector<28x128xbf16>, vector<128x128xbf16>, vector<28x128xf32> -> vector<28x128xf32>
    %c1_77 = arith.constant 1 : index
    %c0_78 = arith.constant 0 : index
    %170 = vector.load %arg10[%c1_77, %c0_78] : memref<4x128xf32, #tpu.memory_space<vmem>>, vector<1x128xf32>
    %171 = vector.shape_cast %170 : vector<1x128xf32> to vector<128xf32>
    %172 = vector.shape_cast %171 : vector<128xf32> to vector<1x128xf32>
    %173 = vector.broadcast %172 : vector<1x128xf32> to vector<28x128xf32>
    %174 = arith.addf %169, %173 : vector<28x128xf32>
    %175 = vector.extract_strided_slice %104 {offsets = [1, 0], sizes = [28, 128], strides = [1, 1]} : vector<30x128xf32> to vector<28x128xf32>
    %176 = arith.addf %175, %174 : vector<28x128xf32>
    %177 = vector.extract_strided_slice %18 {offsets = [2, 0], sizes = [28, 1], strides = [1, 1]} : vector<32x1xf32> to vector<28x1xf32>
    %178 = vector.broadcast %177 : vector<28x1xf32> to vector<28x128xf32>
    %179 = arith.mulf %176, %178 : vector<28x128xf32>
    %c2_79 = arith.constant 2 : index
    %c0_80 = arith.constant 0 : index
    %180 = vector.load %arg5[%c2_79, %c0_80] : memref<5x128xf32, #tpu.memory_space<vmem>>, vector<1x128xf32>
    %181 = vector.shape_cast %180 : vector<1x128xf32> to vector<128xf32>
    %c2_81 = arith.constant 2 : index
    %c0_82 = arith.constant 0 : index
    %182 = vector.load %arg6[%c2_81, %c0_82] : memref<5x128xf32, #tpu.memory_space<vmem>>, vector<1x128xf32>
    %183 = vector.shape_cast %182 : vector<1x128xf32> to vector<128xf32>
    %cst_83 = arith.constant dense<0.000000e+00> : vector<28xf32>
    %184 = vector.multi_reduction <add>, %179, %cst_83 [1] : vector<28x128xf32> to vector<28xf32>
    %185 = vector.shape_cast %184 : vector<28xf32> to vector<28x1xf32>
    %cst_84 = arith.constant 0.020833334 : f32
    %186 = vector.broadcast %cst_84 : f32 to vector<28x1xf32>
    %187 = arith.mulf %185, %186 : vector<28x1xf32>
    %188 = vector.broadcast %187 : vector<28x1xf32> to vector<28x128xf32>
    %189 = arith.subf %179, %188 : vector<28x128xf32>
    %190 = vector.broadcast %4 : vector<1x128xf32> to vector<28x128xf32>
    %191 = arith.mulf %189, %190 : vector<28x128xf32>
    %192 = arith.mulf %191, %191 : vector<28x128xf32>
    %cst_85 = arith.constant dense<0.000000e+00> : vector<28xf32>
    %193 = vector.multi_reduction <add>, %192, %cst_85 [1] : vector<28x128xf32> to vector<28xf32>
    %194 = vector.shape_cast %193 : vector<28xf32> to vector<28x1xf32>
    %cst_86 = arith.constant 0.020833334 : f32
    %195 = vector.broadcast %cst_86 : f32 to vector<28x1xf32>
    %196 = arith.mulf %194, %195 : vector<28x1xf32>
    %cst_87 = arith.constant 9.99999974E-6 : f32
    %197 = vector.broadcast %cst_87 : f32 to vector<28x1xf32>
    %198 = arith.addf %196, %197 : vector<28x1xf32>
    %199 = math.rsqrt %198 : vector<28x1xf32>
    %200 = vector.broadcast %199 : vector<28x1xf32> to vector<28x128xf32>
    %201 = arith.mulf %191, %200 : vector<28x128xf32>
    %202 = vector.shape_cast %181 : vector<128xf32> to vector<1x128xf32>
    %203 = vector.broadcast %202 : vector<1x128xf32> to vector<28x128xf32>
    %204 = arith.mulf %201, %203 : vector<28x128xf32>
    %205 = vector.shape_cast %183 : vector<128xf32> to vector<1x128xf32>
    %206 = vector.broadcast %205 : vector<1x128xf32> to vector<28x128xf32>
    %207 = arith.addf %204, %206 : vector<28x128xf32>
    %208 = vector.extract_strided_slice %30 {offsets = [2, 0], sizes = [28, 1], strides = [1, 1]} : vector<32x1xf32> to vector<28x1xf32>
    %209 = vector.broadcast %208 : vector<28x1xf32> to vector<28x128xf32>
    %210 = arith.mulf %207, %209 : vector<28x128xf32>
    %211 = arith.truncf %210 : vector<28x128xf32> to vector<28x128xbf16>
    %cst_88 = arith.constant 0.000000e+00 : f32
    %212 = vector.broadcast %cst_88 : f32 to vector<24x128xf32>
    %c2_89 = arith.constant 2 : index
    %c0_90 = arith.constant 0 : index
    %213 = vector.load %arg8[%c2_89, %c0_90] : memref<4x128xf32, #tpu.memory_space<vmem>>, vector<1x128xf32>
    %214 = vector.shape_cast %213 : vector<1x128xf32> to vector<128xf32>
    %215 = vector.shape_cast %214 : vector<128xf32> to vector<1x128xf32>
    %216 = vector.broadcast %215 : vector<1x128xf32> to vector<24x128xf32>
    %217 = arith.addf %212, %216 : vector<24x128xf32>
    %218 = vector.extract_strided_slice %211 {offsets = [0, 0], sizes = [24, 128], strides = [1, 1]} : vector<28x128xbf16> to vector<24x128xbf16>
    %c2_91 = arith.constant 2 : index
    %c0_92 = arith.constant 0 : index
    %c0_93 = arith.constant 0 : index
    %c0_94 = arith.constant 0 : index
    %219 = vector.load %arg7[%c2_91, %c0_92, %c0_93, %c0_94] : memref<4x3x128x128xbf16, #tpu.memory_space<vmem>>, vector<1x1x128x128xbf16>
    %220 = vector.shape_cast %219 : vector<1x1x128x128xbf16> to vector<128x128xbf16>
    %cst_95 = arith.constant dense<0.000000e+00> : vector<24x128xf32>
    %221 = tpu.matmul %218, %220, %cst_95 {dimension_numbers = #tpu.dot_dimension_numbers<[1], [0], [0], [1], [0, 0, 1, 1], [], []>} : vector<24x128xbf16>, vector<128x128xbf16>, vector<24x128xf32> -> vector<24x128xf32>
    %222 = arith.addf %217, %221 : vector<24x128xf32>
    %223 = vector.extract_strided_slice %211 {offsets = [2, 0], sizes = [24, 128], strides = [1, 1]} : vector<28x128xbf16> to vector<24x128xbf16>
    %c2_96 = arith.constant 2 : index
    %c1_97 = arith.constant 1 : index
    %c0_98 = arith.constant 0 : index
    %c0_99 = arith.constant 0 : index
    %224 = vector.load %arg7[%c2_96, %c1_97, %c0_98, %c0_99] : memref<4x3x128x128xbf16, #tpu.memory_space<vmem>>, vector<1x1x128x128xbf16>
    %225 = vector.shape_cast %224 : vector<1x1x128x128xbf16> to vector<128x128xbf16>
    %cst_100 = arith.constant dense<0.000000e+00> : vector<24x128xf32>
    %226 = tpu.matmul %223, %225, %cst_100 {dimension_numbers = #tpu.dot_dimension_numbers<[1], [0], [0], [1], [0, 0, 1, 1], [], []>} : vector<24x128xbf16>, vector<128x128xbf16>, vector<24x128xf32> -> vector<24x128xf32>
    %227 = arith.addf %222, %226 : vector<24x128xf32>
    %228 = vector.extract_strided_slice %211 {offsets = [4, 0], sizes = [24, 128], strides = [1, 1]} : vector<28x128xbf16> to vector<24x128xbf16>
    %c2_101 = arith.constant 2 : index
    %c2_102 = arith.constant 2 : index
    %c0_103 = arith.constant 0 : index
    %c0_104 = arith.constant 0 : index
    %229 = vector.load %arg7[%c2_101, %c2_102, %c0_103, %c0_104] : memref<4x3x128x128xbf16, #tpu.memory_space<vmem>>, vector<1x1x128x128xbf16>
    %230 = vector.shape_cast %229 : vector<1x1x128x128xbf16> to vector<128x128xbf16>
    %cst_105 = arith.constant dense<0.000000e+00> : vector<24x128xf32>
    %231 = tpu.matmul %228, %230, %cst_105 {dimension_numbers = #tpu.dot_dimension_numbers<[1], [0], [0], [1], [0, 0, 1, 1], [], []>} : vector<24x128xbf16>, vector<128x128xbf16>, vector<24x128xf32> -> vector<24x128xf32>
    %232 = arith.addf %227, %231 : vector<24x128xf32>
    %233 = arith.truncf %232 : vector<24x128xf32> to vector<24x128xbf16>
    %cst_106 = arith.constant 5.000000e-01 : bf16
    %234 = vector.broadcast %cst_106 : bf16 to vector<24x128xbf16>
    %235 = arith.mulf %234, %233 : vector<24x128xbf16>
    %cst_107 = arith.constant 7.070310e-01 : bf16
    %236 = vector.broadcast %cst_107 : bf16 to vector<24x128xbf16>
    %237 = arith.mulf %233, %236 : vector<24x128xbf16>
    %238 = math.erf %237 : vector<24x128xbf16>
    %cst_108 = arith.constant 1.000000e+00 : bf16
    %239 = vector.broadcast %cst_108 : bf16 to vector<24x128xbf16>
    %240 = arith.addf %239, %238 : vector<24x128xbf16>
    %241 = arith.mulf %235, %240 : vector<24x128xbf16>
    %c2_109 = arith.constant 2 : index
    %c0_110 = arith.constant 0 : index
    %c0_111 = arith.constant 0 : index
    %242 = vector.load %arg9[%c2_109, %c0_110, %c0_111] : memref<4x128x128xbf16, #tpu.memory_space<vmem>>, vector<1x128x128xbf16>
    %243 = vector.shape_cast %242 : vector<1x128x128xbf16> to vector<128x128xbf16>
    %cst_112 = arith.constant dense<0.000000e+00> : vector<24x128xf32>
    %244 = tpu.matmul %241, %243, %cst_112 {dimension_numbers = #tpu.dot_dimension_numbers<[1], [0], [0], [1], [0, 0, 1, 1], [], []>} : vector<24x128xbf16>, vector<128x128xbf16>, vector<24x128xf32> -> vector<24x128xf32>
    %c2_113 = arith.constant 2 : index
    %c0_114 = arith.constant 0 : index
    %245 = vector.load %arg10[%c2_113, %c0_114] : memref<4x128xf32, #tpu.memory_space<vmem>>, vector<1x128xf32>
    %246 = vector.shape_cast %245 : vector<1x128xf32> to vector<128xf32>
    %247 = vector.shape_cast %246 : vector<128xf32> to vector<1x128xf32>
    %248 = vector.broadcast %247 : vector<1x128xf32> to vector<24x128xf32>
    %249 = arith.addf %244, %248 : vector<24x128xf32>
    %250 = vector.extract_strided_slice %179 {offsets = [2, 0], sizes = [24, 128], strides = [1, 1]} : vector<28x128xf32> to vector<24x128xf32>
    %251 = arith.addf %250, %249 : vector<24x128xf32>
    %252 = vector.extract_strided_slice %18 {offsets = [4, 0], sizes = [24, 1], strides = [1, 1]} : vector<32x1xf32> to vector<24x1xf32>
    %253 = vector.broadcast %252 : vector<24x1xf32> to vector<24x128xf32>
    %254 = arith.mulf %251, %253 : vector<24x128xf32>
    %c3 = arith.constant 3 : index
    %c0_115 = arith.constant 0 : index
    %255 = vector.load %arg5[%c3, %c0_115] : memref<5x128xf32, #tpu.memory_space<vmem>>, vector<1x128xf32>
    %256 = vector.shape_cast %255 : vector<1x128xf32> to vector<128xf32>
    %c3_116 = arith.constant 3 : index
    %c0_117 = arith.constant 0 : index
    %257 = vector.load %arg6[%c3_116, %c0_117] : memref<5x128xf32, #tpu.memory_space<vmem>>, vector<1x128xf32>
    %258 = vector.shape_cast %257 : vector<1x128xf32> to vector<128xf32>
    %cst_118 = arith.constant dense<0.000000e+00> : vector<24xf32>
    %259 = vector.multi_reduction <add>, %254, %cst_118 [1] : vector<24x128xf32> to vector<24xf32>
    %260 = vector.shape_cast %259 : vector<24xf32> to vector<24x1xf32>
    %cst_119 = arith.constant 0.020833334 : f32
    %261 = vector.broadcast %cst_119 : f32 to vector<24x1xf32>
    %262 = arith.mulf %260, %261 : vector<24x1xf32>
    %263 = vector.broadcast %262 : vector<24x1xf32> to vector<24x128xf32>
    %264 = arith.subf %254, %263 : vector<24x128xf32>
    %265 = vector.broadcast %4 : vector<1x128xf32> to vector<24x128xf32>
    %266 = arith.mulf %264, %265 : vector<24x128xf32>
    %267 = arith.mulf %266, %266 : vector<24x128xf32>
    %cst_120 = arith.constant dense<0.000000e+00> : vector<24xf32>
    %268 = vector.multi_reduction <add>, %267, %cst_120 [1] : vector<24x128xf32> to vector<24xf32>
    %269 = vector.shape_cast %268 : vector<24xf32> to vector<24x1xf32>
    %cst_121 = arith.constant 0.020833334 : f32
    %270 = vector.broadcast %cst_121 : f32 to vector<24x1xf32>
    %271 = arith.mulf %269, %270 : vector<24x1xf32>
    %cst_122 = arith.constant 9.99999974E-6 : f32
    %272 = vector.broadcast %cst_122 : f32 to vector<24x1xf32>
    %273 = arith.addf %271, %272 : vector<24x1xf32>
    %274 = math.rsqrt %273 : vector<24x1xf32>
    %275 = vector.broadcast %274 : vector<24x1xf32> to vector<24x128xf32>
    %276 = arith.mulf %266, %275 : vector<24x128xf32>
    %277 = vector.shape_cast %256 : vector<128xf32> to vector<1x128xf32>
    %278 = vector.broadcast %277 : vector<1x128xf32> to vector<24x128xf32>
    %279 = arith.mulf %276, %278 : vector<24x128xf32>
    %280 = vector.shape_cast %258 : vector<128xf32> to vector<1x128xf32>
    %281 = vector.broadcast %280 : vector<1x128xf32> to vector<24x128xf32>
    %282 = arith.addf %279, %281 : vector<24x128xf32>
    %283 = vector.extract_strided_slice %30 {offsets = [4, 0], sizes = [24, 1], strides = [1, 1]} : vector<32x1xf32> to vector<24x1xf32>
    %284 = vector.broadcast %283 : vector<24x1xf32> to vector<24x128xf32>
    %285 = arith.mulf %282, %284 : vector<24x128xf32>
    %286 = arith.truncf %285 : vector<24x128xf32> to vector<24x128xbf16>
    %cst_123 = arith.constant 0.000000e+00 : f32
    %287 = vector.broadcast %cst_123 : f32 to vector<20x128xf32>
    %c3_124 = arith.constant 3 : index
    %c0_125 = arith.constant 0 : index
    %288 = vector.load %arg8[%c3_124, %c0_125] : memref<4x128xf32, #tpu.memory_space<vmem>>, vector<1x128xf32>
    %289 = vector.shape_cast %288 : vector<1x128xf32> to vector<128xf32>
    %290 = vector.shape_cast %289 : vector<128xf32> to vector<1x128xf32>
    %291 = vector.broadcast %290 : vector<1x128xf32> to vector<20x128xf32>
    %292 = arith.addf %287, %291 : vector<20x128xf32>
    %293 = vector.extract_strided_slice %286 {offsets = [0, 0], sizes = [20, 128], strides = [1, 1]} : vector<24x128xbf16> to vector<20x128xbf16>
    %c3_126 = arith.constant 3 : index
    %c0_127 = arith.constant 0 : index
    %c0_128 = arith.constant 0 : index
    %c0_129 = arith.constant 0 : index
    %294 = vector.load %arg7[%c3_126, %c0_127, %c0_128, %c0_129] : memref<4x3x128x128xbf16, #tpu.memory_space<vmem>>, vector<1x1x128x128xbf16>
    %295 = vector.shape_cast %294 : vector<1x1x128x128xbf16> to vector<128x128xbf16>
    %cst_130 = arith.constant dense<0.000000e+00> : vector<20x128xf32>
    %296 = tpu.matmul %293, %295, %cst_130 {dimension_numbers = #tpu.dot_dimension_numbers<[1], [0], [0], [1], [0, 0, 1, 1], [], []>} : vector<20x128xbf16>, vector<128x128xbf16>, vector<20x128xf32> -> vector<20x128xf32>
    %297 = arith.addf %292, %296 : vector<20x128xf32>
    %298 = vector.extract_strided_slice %286 {offsets = [2, 0], sizes = [20, 128], strides = [1, 1]} : vector<24x128xbf16> to vector<20x128xbf16>
    %c3_131 = arith.constant 3 : index
    %c1_132 = arith.constant 1 : index
    %c0_133 = arith.constant 0 : index
    %c0_134 = arith.constant 0 : index
    %299 = vector.load %arg7[%c3_131, %c1_132, %c0_133, %c0_134] : memref<4x3x128x128xbf16, #tpu.memory_space<vmem>>, vector<1x1x128x128xbf16>
    %300 = vector.shape_cast %299 : vector<1x1x128x128xbf16> to vector<128x128xbf16>
    %cst_135 = arith.constant dense<0.000000e+00> : vector<20x128xf32>
    %301 = tpu.matmul %298, %300, %cst_135 {dimension_numbers = #tpu.dot_dimension_numbers<[1], [0], [0], [1], [0, 0, 1, 1], [], []>} : vector<20x128xbf16>, vector<128x128xbf16>, vector<20x128xf32> -> vector<20x128xf32>
    %302 = arith.addf %297, %301 : vector<20x128xf32>
    %303 = vector.extract_strided_slice %286 {offsets = [4, 0], sizes = [20, 128], strides = [1, 1]} : vector<24x128xbf16> to vector<20x128xbf16>
    %c3_136 = arith.constant 3 : index
    %c2_137 = arith.constant 2 : index
    %c0_138 = arith.constant 0 : index
    %c0_139 = arith.constant 0 : index
    %304 = vector.load %arg7[%c3_136, %c2_137, %c0_138, %c0_139] : memref<4x3x128x128xbf16, #tpu.memory_space<vmem>>, vector<1x1x128x128xbf16>
    %305 = vector.shape_cast %304 : vector<1x1x128x128xbf16> to vector<128x128xbf16>
    %cst_140 = arith.constant dense<0.000000e+00> : vector<20x128xf32>
    %306 = tpu.matmul %303, %305, %cst_140 {dimension_numbers = #tpu.dot_dimension_numbers<[1], [0], [0], [1], [0, 0, 1, 1], [], []>} : vector<20x128xbf16>, vector<128x128xbf16>, vector<20x128xf32> -> vector<20x128xf32>
    %307 = arith.addf %302, %306 : vector<20x128xf32>
    %308 = arith.truncf %307 : vector<20x128xf32> to vector<20x128xbf16>
    %cst_141 = arith.constant 5.000000e-01 : bf16
    %309 = vector.broadcast %cst_141 : bf16 to vector<20x128xbf16>
    %310 = arith.mulf %309, %308 : vector<20x128xbf16>
    %cst_142 = arith.constant 7.070310e-01 : bf16
    %311 = vector.broadcast %cst_142 : bf16 to vector<20x128xbf16>
    %312 = arith.mulf %308, %311 : vector<20x128xbf16>
    %313 = math.erf %312 : vector<20x128xbf16>
    %cst_143 = arith.constant 1.000000e+00 : bf16
    %314 = vector.broadcast %cst_143 : bf16 to vector<20x128xbf16>
    %315 = arith.addf %314, %313 : vector<20x128xbf16>
    %316 = arith.mulf %310, %315 : vector<20x128xbf16>
    %c3_144 = arith.constant 3 : index
    %c0_145 = arith.constant 0 : index
    %c0_146 = arith.constant 0 : index
    %317 = vector.load %arg9[%c3_144, %c0_145, %c0_146] : memref<4x128x128xbf16, #tpu.memory_space<vmem>>, vector<1x128x128xbf16>
    %318 = vector.shape_cast %317 : vector<1x128x128xbf16> to vector<128x128xbf16>
    %cst_147 = arith.constant dense<0.000000e+00> : vector<20x128xf32>
    %319 = tpu.matmul %316, %318, %cst_147 {dimension_numbers = #tpu.dot_dimension_numbers<[1], [0], [0], [1], [0, 0, 1, 1], [], []>} : vector<20x128xbf16>, vector<128x128xbf16>, vector<20x128xf32> -> vector<20x128xf32>
    %c3_148 = arith.constant 3 : index
    %c0_149 = arith.constant 0 : index
    %320 = vector.load %arg10[%c3_148, %c0_149] : memref<4x128xf32, #tpu.memory_space<vmem>>, vector<1x128xf32>
    %321 = vector.shape_cast %320 : vector<1x128xf32> to vector<128xf32>
    %322 = vector.shape_cast %321 : vector<128xf32> to vector<1x128xf32>
    %323 = vector.broadcast %322 : vector<1x128xf32> to vector<20x128xf32>
    %324 = arith.addf %319, %323 : vector<20x128xf32>
    %325 = vector.extract_strided_slice %254 {offsets = [2, 0], sizes = [20, 128], strides = [1, 1]} : vector<24x128xf32> to vector<20x128xf32>
    %326 = arith.addf %325, %324 : vector<20x128xf32>
    %327 = vector.extract_strided_slice %18 {offsets = [6, 0], sizes = [20, 1], strides = [1, 1]} : vector<32x1xf32> to vector<20x1xf32>
    %328 = vector.broadcast %327 : vector<20x1xf32> to vector<20x128xf32>
    %329 = arith.mulf %326, %328 : vector<20x128xf32>
    %330 = vector.extract_strided_slice %18 {offsets = [6, 0], sizes = [20, 1], strides = [1, 1]} : vector<32x1xf32> to vector<20x1xf32>
    %331 = vector.broadcast %330 : vector<20x1xf32> to vector<20x128xf32>
    %332 = arith.mulf %329, %331 : vector<20x128xf32>
    %c4 = arith.constant 4 : index
    %c0_150 = arith.constant 0 : index
    %333 = vector.load %arg5[%c4, %c0_150] : memref<5x128xf32, #tpu.memory_space<vmem>>, vector<1x128xf32>
    %334 = vector.shape_cast %333 : vector<1x128xf32> to vector<128xf32>
    %c4_151 = arith.constant 4 : index
    %c0_152 = arith.constant 0 : index
    %335 = vector.load %arg6[%c4_151, %c0_152] : memref<5x128xf32, #tpu.memory_space<vmem>>, vector<1x128xf32>
    %336 = vector.shape_cast %335 : vector<1x128xf32> to vector<128xf32>
    %cst_153 = arith.constant dense<0.000000e+00> : vector<20xf32>
    %337 = vector.multi_reduction <add>, %332, %cst_153 [1] : vector<20x128xf32> to vector<20xf32>
    %338 = vector.shape_cast %337 : vector<20xf32> to vector<20x1xf32>
    %cst_154 = arith.constant 0.020833334 : f32
    %339 = vector.broadcast %cst_154 : f32 to vector<20x1xf32>
    %340 = arith.mulf %338, %339 : vector<20x1xf32>
    %341 = vector.broadcast %340 : vector<20x1xf32> to vector<20x128xf32>
    %342 = arith.subf %332, %341 : vector<20x128xf32>
    %343 = vector.broadcast %4 : vector<1x128xf32> to vector<20x128xf32>
    %344 = arith.mulf %342, %343 : vector<20x128xf32>
    %345 = arith.mulf %344, %344 : vector<20x128xf32>
    %cst_155 = arith.constant dense<0.000000e+00> : vector<20xf32>
    %346 = vector.multi_reduction <add>, %345, %cst_155 [1] : vector<20x128xf32> to vector<20xf32>
    %347 = vector.shape_cast %346 : vector<20xf32> to vector<20x1xf32>
    %cst_156 = arith.constant 0.020833334 : f32
    %348 = vector.broadcast %cst_156 : f32 to vector<20x1xf32>
    %349 = arith.mulf %347, %348 : vector<20x1xf32>
    %cst_157 = arith.constant 9.99999974E-6 : f32
    %350 = vector.broadcast %cst_157 : f32 to vector<20x1xf32>
    %351 = arith.addf %349, %350 : vector<20x1xf32>
    %352 = math.rsqrt %351 : vector<20x1xf32>
    %353 = vector.broadcast %352 : vector<20x1xf32> to vector<20x128xf32>
    %354 = arith.mulf %344, %353 : vector<20x128xf32>
    %355 = vector.shape_cast %334 : vector<128xf32> to vector<1x128xf32>
    %356 = vector.broadcast %355 : vector<1x128xf32> to vector<20x128xf32>
    %357 = arith.mulf %354, %356 : vector<20x128xf32>
    %358 = vector.shape_cast %336 : vector<128xf32> to vector<1x128xf32>
    %359 = vector.broadcast %358 : vector<1x128xf32> to vector<20x128xf32>
    %360 = arith.addf %357, %359 : vector<20x128xf32>
    %361 = vector.broadcast %330 : vector<20x1xf32> to vector<20x128xf32>
    %362 = arith.mulf %360, %361 : vector<20x128xf32>
    %363 = vector.extract_strided_slice %30 {offsets = [6, 0], sizes = [20, 1], strides = [1, 1]} : vector<32x1xf32> to vector<20x1xf32>
    %364 = vector.broadcast %363 : vector<20x1xf32> to vector<20x128xf32>
    %365 = arith.mulf %362, %364 : vector<20x128xf32>
    %366 = arith.truncf %365 : vector<20x128xf32> to vector<20x128xbf16>
    %cst_158 = arith.constant 0.000000e+00 : f32
    %367 = vector.broadcast %cst_158 : f32 to vector<18x128xf32>
    %c0_159 = arith.constant 0 : index
    %c0_160 = arith.constant 0 : index
    %368 = vector.load %arg12[%c0_159, %c0_160] : memref<1x128xf32, #tpu.memory_space<vmem>>, vector<1x128xf32>
    %369 = vector.shape_cast %368 : vector<1x128xf32> to vector<128xf32>
    %370 = vector.shape_cast %369 : vector<128xf32> to vector<1x128xf32>
    %371 = vector.broadcast %370 : vector<1x128xf32> to vector<18x128xf32>
    %372 = arith.addf %367, %371 : vector<18x128xf32>
    %373 = vector.extract_strided_slice %366 {offsets = [0, 0], sizes = [18, 128], strides = [1, 1]} : vector<20x128xbf16> to vector<18x128xbf16>
    %c0_161 = arith.constant 0 : index
    %c0_162 = arith.constant 0 : index
    %c0_163 = arith.constant 0 : index
    %374 = vector.load %arg11[%c0_161, %c0_162, %c0_163] : memref<3x128x128xbf16, #tpu.memory_space<vmem>>, vector<1x128x128xbf16>
    %375 = vector.shape_cast %374 : vector<1x128x128xbf16> to vector<128x128xbf16>
    %cst_164 = arith.constant dense<0.000000e+00> : vector<18x128xf32>
    %376 = tpu.matmul %373, %375, %cst_164 {dimension_numbers = #tpu.dot_dimension_numbers<[1], [0], [0], [1], [0, 0, 1, 1], [], []>} : vector<18x128xbf16>, vector<128x128xbf16>, vector<18x128xf32> -> vector<18x128xf32>
    %377 = arith.addf %372, %376 : vector<18x128xf32>
    %378 = vector.extract_strided_slice %366 {offsets = [1, 0], sizes = [18, 128], strides = [1, 1]} : vector<20x128xbf16> to vector<18x128xbf16>
    %c1_165 = arith.constant 1 : index
    %c0_166 = arith.constant 0 : index
    %c0_167 = arith.constant 0 : index
    %379 = vector.load %arg11[%c1_165, %c0_166, %c0_167] : memref<3x128x128xbf16, #tpu.memory_space<vmem>>, vector<1x128x128xbf16>
    %380 = vector.shape_cast %379 : vector<1x128x128xbf16> to vector<128x128xbf16>
    %cst_168 = arith.constant dense<0.000000e+00> : vector<18x128xf32>
    %381 = tpu.matmul %378, %380, %cst_168 {dimension_numbers = #tpu.dot_dimension_numbers<[1], [0], [0], [1], [0, 0, 1, 1], [], []>} : vector<18x128xbf16>, vector<128x128xbf16>, vector<18x128xf32> -> vector<18x128xf32>
    %382 = arith.addf %377, %381 : vector<18x128xf32>
    %383 = vector.extract_strided_slice %366 {offsets = [2, 0], sizes = [18, 128], strides = [1, 1]} : vector<20x128xbf16> to vector<18x128xbf16>
    %c2_169 = arith.constant 2 : index
    %c0_170 = arith.constant 0 : index
    %c0_171 = arith.constant 0 : index
    %384 = vector.load %arg11[%c2_169, %c0_170, %c0_171] : memref<3x128x128xbf16, #tpu.memory_space<vmem>>, vector<1x128x128xbf16>
    %385 = vector.shape_cast %384 : vector<1x128x128xbf16> to vector<128x128xbf16>
    %cst_172 = arith.constant dense<0.000000e+00> : vector<18x128xf32>
    %386 = tpu.matmul %383, %385, %cst_172 {dimension_numbers = #tpu.dot_dimension_numbers<[1], [0], [0], [1], [0, 0, 1, 1], [], []>} : vector<18x128xbf16>, vector<128x128xbf16>, vector<18x128xf32> -> vector<18x128xf32>
    %387 = arith.addf %382, %386 : vector<18x128xf32>
    %388 = vector.extract_strided_slice %18 {offsets = [7, 0], sizes = [18, 1], strides = [1, 1]} : vector<32x1xf32> to vector<18x1xf32>
    %389 = vector.broadcast %388 : vector<18x1xf32> to vector<18x128xf32>
    %390 = arith.mulf %387, %389 : vector<18x128xf32>
    %391 = vector.extract_strided_slice %390 {offsets = [1, 0], sizes = [16, 128], strides = [1, 1]} : vector<18x128xf32> to vector<16x128xf32>
    %c0_173 = arith.constant 0 : index
    %c0_174 = arith.constant 0 : index
    %c0_175 = arith.constant 0 : index
    %392 = vector.load %arg13[%c0_173, %c0_174, %c0_175] : memref<1x16x128xf32, #tpu.memory_space<vmem>>, vector<1x16x128xf32>
    %393 = vector.shape_cast %392 : vector<1x16x128xf32> to vector<16x128xf32>
    %394 = vector.shape_cast %391 : vector<16x128xf32> to vector<1x16x128xf32>
    tpu.vector_store %arg13[%c0_173, %c0_174, %c0_175], %394 {strides = array<i32>} : memref<1x16x128xf32, #tpu.memory_space<vmem>>, vector<1x16x128xf32>,
    return
  }
  func.func @transform_0(%arg0: i32, %arg1: i32) -> (i32, i32, i32) {
    %c2_i32 = arith.constant 2 : i32
    %0 = arith.muli %arg0, %c2_i32 : i32
    %c1_i32 = arith.constant 1 : i32
    %1 = arith.subi %0, %c1_i32 : i32
    %c0_i32 = arith.constant 0 : i32
    %2 = arith.maxsi %1, %c0_i32 : i32
    %c0_i32_0 = arith.constant 0 : i32
    %c0_i32_1 = arith.constant 0 : i32
    return %arg1, %2, %c0_i32_0 : i32, i32, i32
  }
  func.func @transform_1(%arg0: i32, %arg1: i32) -> (i32, i32, i32) {
    %c0_i32 = arith.constant 0 : i32
    %c0_i32_0 = arith.constant 0 : i32
    return %arg1, %arg0, %c0_i32 : i32, i32, i32
  }
  func.func @transform_2(%arg0: i32, %arg1: i32) -> (i32, i32, i32) {
    %c1_i32 = arith.constant 1 : i32
    %0 = arith.addi %arg0, %c1_i32 : i32
    %c2_i32 = arith.constant 2 : i32
    %1 = arith.muli %0, %c2_i32 : i32
    %c5_i32 = arith.constant 5 : i32
    %2 = arith.minsi %1, %c5_i32 : i32
    %c0_i32 = arith.constant 0 : i32
    %c0_i32_0 = arith.constant 0 : i32
    return %arg1, %2, %c0_i32 : i32, i32, i32
  }
  func.func @transform_3(%arg0: i32, %arg1: i32) -> (i32, i32) {
    %c0_i32 = arith.constant 0 : i32
    %c0_i32_0 = arith.constant 0 : i32
    %c0_i32_1 = arith.constant 0 : i32
    return %c0_i32, %c0_i32_0 : i32, i32
  }
  func.func @transform_4(%arg0: i32, %arg1: i32) -> (i32, i32) {
    %c0_i32 = arith.constant 0 : i32
    %c0_i32_0 = arith.constant 0 : i32
    %c0_i32_1 = arith.constant 0 : i32
    return %c0_i32, %c0_i32_0 : i32, i32
  }
  func.func @transform_5(%arg0: i32, %arg1: i32) -> (i32, i32, i32, i32) {
    %c0_i32 = arith.constant 0 : i32
    %c0_i32_0 = arith.constant 0 : i32
    %c0_i32_1 = arith.constant 0 : i32
    %c0_i32_2 = arith.constant 0 : i32
    %c0_i32_3 = arith.constant 0 : i32
    return %c0_i32, %c0_i32_0, %c0_i32_1, %c0_i32_2 : i32, i32, i32, i32
  }
  func.func @transform_6(%arg0: i32, %arg1: i32) -> (i32, i32) {
    %c0_i32 = arith.constant 0 : i32
    %c0_i32_0 = arith.constant 0 : i32
    %c0_i32_1 = arith.constant 0 : i32
    return %c0_i32, %c0_i32_0 : i32, i32
  }
  func.func @transform_7(%arg0: i32, %arg1: i32) -> (i32, i32, i32) {
    %c0_i32 = arith.constant 0 : i32
    %c0_i32_0 = arith.constant 0 : i32
    %c0_i32_1 = arith.constant 0 : i32
    %c0_i32_2 = arith.constant 0 : i32
    return %c0_i32, %c0_i32_0, %c0_i32_1 : i32, i32, i32
  }
  func.func @transform_8(%arg0: i32, %arg1: i32) -> (i32, i32) {
    %c0_i32 = arith.constant 0 : i32
    %c0_i32_0 = arith.constant 0 : i32
    %c0_i32_1 = arith.constant 0 : i32
    return %c0_i32, %c0_i32_0 : i32, i32
  }
  func.func @transform_9(%arg0: i32, %arg1: i32) -> (i32, i32, i32) {
    %c0_i32 = arith.constant 0 : i32
    %c0_i32_0 = arith.constant 0 : i32
    %c0_i32_1 = arith.constant 0 : i32
    %c0_i32_2 = arith.constant 0 : i32
    return %c0_i32, %c0_i32_0, %c0_i32_1 : i32, i32, i32
  }
  func.func @transform_10(%arg0: i32, %arg1: i32) -> (i32, i32) {
    %c0_i32 = arith.constant 0 : i32
    %c0_i32_0 = arith.constant 0 : i32
    %c0_i32_1 = arith.constant 0 : i32
    return %c0_i32, %c0_i32_0 : i32, i32
  }
  func.func @transform_11(%arg0: i32, %arg1: i32) -> (i32, i32, i32) {
    %c0_i32 = arith.constant 0 : i32
    %c0_i32_0 = arith.constant 0 : i32
    return %arg1, %arg0, %c0_i32 : i32, i32, i32
  }
}

</mosaic_0001>

<llo_original>
// kernel: conv_blocks_forward.1
$region0: #{conv_blocks_forward.1}
  #allocation0 [shape = 'u32[]', space=smem, size = 0x4, offset = 0x4, fixed_abs, tag = 'smem constant byte address 0x4 - core index']
  #allocation1 [shape = 'u32[72,128]{1,0:T(1,128)}', space=vmem, size = 0x9000, scoped, tag = 'internal scratch']
  %s0 = inlined_call_operand.vmem [shape: f32[2,48,128], index: 0, kind: input, shape index: {}, may-alias: {0,1,2}]
  %s1 = inlined_call_operand.vmem [shape: f32[2,48,128], index: 1, kind: input, shape index: {}, may-alias: {0,1,2}]
  %s2 = inlined_call_operand.vmem [shape: f32[2,48,128], index: 2, kind: input, shape index: {}, may-alias: {0,1,2}]
  %s3 = inlined_call_operand.vmem [shape: f32[5,128], index: 3, kind: input, shape index: {}]
  %s4 = inlined_call_operand.vmem [shape: f32[5,128], index: 4, kind: input, shape index: {}]
  %s5 = inlined_call_operand.hbm [shape: bf16[4,3,128,128], index: 5, kind: input, shape index: {}]
  %s6 = inlined_call_operand.vmem [shape: f32[4,128], index: 6, kind: input, shape index: {}]
  %s7 = inlined_call_operand.hbm [shape: bf16[4,128,128], index: 7, kind: input, shape index: {}]
  %s8 = inlined_call_operand.vmem [shape: f32[4,128], index: 8, kind: input, shape index: {}]
  %s9 = inlined_call_operand.hbm [shape: bf16[3,128,128], index: 9, kind: input, shape index: {}]
  %s10 = inlined_call_operand.vmem [shape: f32[1,128], index: 10, kind: input, shape index: {}]
  %s11 = inlined_call_operand.vmem [shape: f32[2,48,128], index: 11, kind: output, shape index: {}]
  %s12 = sld [smem:[#allocation0]]
  $region89: #{conv_blocks_forward.1} parent=0
    _
  %s14 = ssub.s32 1, %s12
  %s15 = scalar_select 0, %s14, %s12
  $region1: #{conv_blocks_forward.1} parent=0
    #allocation2 [shape = 'u8[393216]{0}', space=vmem, size = 0x60000, scoped, tag = 'input window, operand 5, single buffered']
    #allocation3 [shape = 's32[2]{0}', space=sflag, size = 0x8, scoped, tag = 'scoped memory for conv_blocks_forward.1']
    #allocation4 [shape = 'u8[131072]{0}', space=vmem, size = 0x20000, scoped, tag = 'input window, operand 7, single buffered']
    #allocation5 [shape = 's32[1]{0}', space=sflag, size = 0x4, scoped, tag = 'scoped memory for conv_blocks_forward.1']
    #allocation6 [shape = 'u8[98304]{0}', space=vmem, size = 0x18000, scoped, tag = 'input window, operand 9, single buffered']
    %16 = vsyncpa [#allocation3], 0
    %17 = vsyncpa [#allocation5], 0
    loop: start=0, step=1, limit=8
    $region2: #{conv_blocks_forward.1} parent=1 // loop_pre_header
      _
    $region3: #{conv_blocks_forward.1} parent=1 // loop_header
      %s19 = sphi 0, %s23
      %p20 = scmp.ge.s32.totalorder %s19, 8
      %s26 = sphi 0, %s38
      %s27 = sphi 0, %s34
      %s28 = sphi 0, %s26
      %s29 = sphi 0, %s27
      %s30 = sphi 0, %s28
      %s31 = sphi 0, %s29
      %s51 = sphi 0, %s53
      %s54 = sphi 0, %s51
      %s55 = sphi 0, %s54
      %s71 = sphi 0, %s55
      %s79 = sphi 0, %s81
      %s82 = sphi 0, %s79
      %s83 = sphi 0, %s82
      %s99 = sphi 0, %s83
      %s115 = sphi 0, %s117
      %s118 = sphi 0, %s115
      %s119 = sphi 0, %s118
      %s135 = sphi 0, %s119
      %s139 = sphi 0, %s139
      %s141 = sphi 0, %s139
      %s142 = sphi 0, %s141
      %s156 = sphi 0, %s142
      %s160 = sphi 0, %s160
      %s162 = sphi 0, %s160
      %s163 = sphi 0, %s162
      %s177 = sphi 0, %s163
      %s181 = sphi 0, %s181
      %s183 = sphi 0, %s181
      %s184 = sphi 0, %s183
      %s198 = sphi 0, %s184
      %s202 = sphi 0, %s202
      %s204 = sphi 0, %s202
      %s205 = sphi 0, %s204
      %s219 = sphi 0, %s205
      %s223 = sphi 0, %s223
      %s225 = sphi 0, %s223
      %s226 = sphi 0, %s225
      %s240 = sphi 0, %s226
      %s244 = sphi 0, %s244
      %s246 = sphi 0, %s244
      %s247 = sphi 0, %s246
      %s261 = sphi 0, %s247
      %s265 = sphi 0, %s265
      %s267 = sphi 0, %s265
      %s268 = sphi 0, %s267
      %s282 = sphi 0, %s268
      %s286 = sphi 0, %s286
      %s288 = sphi 0, %s286
      %s289 = sphi 0, %s288
      %s303 = sphi 0, %s289
      %s311 = sphi 0, %s313
      %s314 = sphi 0, %s311
      %s315 = sphi 0, %s314
      %s331 = sphi 0, %s315
    $region4: #{conv_blocks_forward.1} parent=1 // loop_header_branch
      %22 = sbr.rel (%p20) target = $region8
    $region5: #{conv_blocks_forward.1} parent=1 // loop_body
      %s24 = ssub.s32 %s19, 1
      %s25 = ssub.s32 %s19, 2
      %s32 = sadd.s32 1, %s27
      %p33 = scmp.ge.s32.totalorder %s32, 2
      %s34 = scalar_select %p33, 0, %s32
      %s35 = sadd.s32 1, %s26
      %s36 = scalar_select %p33, %s35, %s26
      %p37 = scmp.ge.s32.totalorder %s36, 3
      %s38 = scalar_select %p37, 0, %s36
      %s39 = smul.u32 %s26, 2
      %s40 = ssub.s32 %s39, 1
      %p41 = scmp.gt.s32.totalorder %s40, 0
      %s42 = scalar_select %p41, %s40, 0
      %s43 = smul.u32 %s38, 2
      %s44 = ssub.s32 %s43, 1
      %p45 = scmp.gt.s32.totalorder %s44, 0
      %s46 = scalar_select %p45, %s44, 0
      %s47 = ssub.s32 %s27, %s34
      %s48 = ssub.s32 %s42, %s46
      %s49 = sor.u32 %s47, %s48
      %p50 = scmp.eq.s32.totalorder %s49, 0
      %s52 = sadd.s32 %s51, 1
      %s53 = scalar_select %p50, %s51, %s52
      %p56 = pneg %p50
      %p57 = scmp.eq.s32.totalorder %s19, 5
      %p58 = por %p56, %p57
      %p59 = scmp.ne.s32.totalorder %s51, %s54
      %p60 = scmp.eq.s32.totalorder %s19, 0
      %p61 = por %p59, %p60
      %p62 = scmp.ne.s32.totalorder %s51, %s54
      %p63 = scmp.eq.s32.totalorder %s24, 5
      %p64 = por %p62, %p63
      %p65 = scmp.ne.s32.totalorder %s54, %s55
      %p66 = scmp.eq.s32.totalorder %s24, 0
      %p67 = por %p65, %p66
      %p68 = scmp.ne.s32.totalorder %s54, %s55
      %p69 = scmp.eq.s32.totalorder %s25, 5
      %p70 = por %p68, %p69
      %p72 = scmp.ne.s32.totalorder %s55, %s71
      %p73 = scmp.eq.s32.totalorder %s25, 0
      %p74 = por %p72, %p73
      %s75 = ssub.s32 %s27, %s34
      %s76 = ssub.s32 %s26, %s38
      %s77 = sor.u32 %s75, %s76
      %p78 = scmp.eq.s32.totalorder %s77, 0
      %s80 = sadd.s32 %s79, 1
      %s81 = scalar_select %p78, %s79, %s80
      %p84 = pneg %p78
      %p85 = scmp.eq.s32.totalorder %s19, 5
      %p86 = por %p84, %p85
      %p87 = scmp.ne.s32.totalorder %s79, %s82
      %p88 = scmp.eq.s32.totalorder %s19, 0
      %p89 = por %p87, %p88
      %p90 = scmp.ne.s32.totalorder %s79, %s82
      %p91 = scmp.eq.s32.totalorder %s24, 5
      %p92 = por %p90, %p91
      %p93 = scmp.ne.s32.totalorder %s82, %s83
      %p94 = scmp.eq.s32.totalorder %s24, 0
      %p95 = por %p93, %p94
      %p96 = scmp.ne.s32.totalorder %s82, %s83
      %p97 = scmp.eq.s32.totalorder %s25, 5
      %p98 = por %p96, %p97
      %p100 = scmp.ne.s32.totalorder %s83, %s99
      %p101 = scmp.eq.s32.totalorder %s25, 0
      %p102 = por %p100, %p101
      %s103 = sadd.s32 %s26, 1
      %s104 = smul.u32 %s103, 2
      %p105 = scmp.lt.s32.totalorder %s104, 5
      %s106 = scalar_select %p105, %s104, 5
      %s107 = sadd.s32 %s38, 1
      %s108 = smul.u32 %s107, 2
      %p109 = scmp.lt.s32.totalorder %s108, 5
      %s110 = scalar_select %p109, %s108, 5
      %s111 = ssub.s32 %s27, %s34
      %s112 = ssub.s32 %s106, %s110
      %s113 = sor.u32 %s111, %s112
      %p114 = scmp.eq.s32.totalorder %s113, 0
      %s116 = sadd.s32 %s115, 1
      %s117 = scalar_select %p114, %s115, %s116
      %p120 = pneg %p114
      %p121 = scmp.eq.s32.totalorder %s19, 5
      %p122 = por %p120, %p121
      %p123 = scmp.ne.s32.totalorder %s115, %s118
      %p124 = scmp.eq.s32.totalorder %s19, 0
      %p125 = por %p123, %p124
      %p126 = scmp.ne.s32.totalorder %s115, %s118
      %p127 = scmp.eq.s32.totalorder %s24, 5
      %p128 = por %p126, %p127
      %p129 = scmp.ne.s32.totalorder %s118, %s119
      %p130 = scmp.eq.s32.totalorder %s24, 0
      %p131 = por %p129, %p130
      %p132 = scmp.ne.s32.totalorder %s118, %s119
      %p133 = scmp.eq.s32.totalorder %s25, 5
      %p134 = por %p132, %p133
      %p136 = scmp.ne.s32.totalorder %s119, %s135
      %p137 = scmp.eq.s32.totalorder %s25, 0
      %p138 = por %p136, %p137
      %s140 = sadd.s32 %s139, 1
      %p143 = scmp.eq.s32.totalorder %s19, 5
      %p144 = scmp.ne.s32.totalorder %s139, %s141
      %p145 = scmp.eq.s32.totalorder %s19, 0
      %p146 = por %p144, %p145
      %p147 = scmp.ne.s32.totalorder %s139, %s141
      %p148 = scmp.eq.s32.totalorder %s24, 5
      %p149 = por %p147, %p148
      %p150 = scmp.ne.s32.totalorder %s141, %s142
      %p151 = scmp.eq.s32.totalorder %s24, 0
      %p152 = por %p150, %p151
      %p153 = scmp.ne.s32.totalorder %s141, %s142
      %p154 = scmp.eq.s32.totalorder %s25, 5
      %p155 = por %p153, %p154
      %p157 = scmp.ne.s32.totalorder %s142, %s156
      %p158 = scmp.eq.s32.totalorder %s25, 0
      %p159 = por %p157, %p158
      %s161 = sadd.s32 %s160, 1
      %p164 = scmp.eq.s32.totalorder %s19, 5
      %p165 = scmp.ne.s32.totalorder %s160, %s162
      %p166 = scmp.eq.s32.totalorder %s19, 0
      %p167 = por %p165, %p166
      %p168 = scmp.ne.s32.totalorder %s160, %s162
      %p169 = scmp.eq.s32.totalorder %s24, 5
      %p170 = por %p168, %p169
      %p171 = scmp.ne.s32.totalorder %s162, %s163
      %p172 = scmp.eq.s32.totalorder %s24, 0
      %p173 = por %p171, %p172
      %p174 = scmp.ne.s32.totalorder %s162, %s163
      %p175 = scmp.eq.s32.totalorder %s25, 5
      %p176 = por %p174, %p175
      %p178 = scmp.ne.s32.totalorder %s163, %s177
      %p179 = scmp.eq.s32.totalorder %s25, 0
      %p180 = por %p178, %p179
      %s182 = sadd.s32 %s181, 1
      %p185 = scmp.eq.s32.totalorder %s19, 5
      %p186 = scmp.ne.s32.totalorder %s181, %s183
      %p187 = scmp.eq.s32.totalorder %s19, 0
      %p188 = por %p186, %p187
      %p189 = scmp.ne.s32.totalorder %s181, %s183
      %p190 = scmp.eq.s32.totalorder %s24, 5
      %p191 = por %p189, %p190
      %p192 = scmp.ne.s32.totalorder %s183, %s184
      %p193 = scmp.eq.s32.totalorder %s24, 0
      %p194 = por %p192, %p193
      %p195 = scmp.ne.s32.totalorder %s183, %s184
      %p196 = scmp.eq.s32.totalorder %s25, 5
      %p197 = por %p195, %p196
      %p199 = scmp.ne.s32.totalorder %s184, %s198
      %p200 = scmp.eq.s32.totalorder %s25, 0
      %p201 = por %p199, %p200
      %s203 = sadd.s32 %s202, 1
      %p206 = scmp.eq.s32.totalorder %s19, 5
      %p207 = scmp.ne.s32.totalorder %s202, %s204
      %p208 = scmp.eq.s32.totalorder %s19, 0
      %p209 = por %p207, %p208
      %p210 = scmp.ne.s32.totalorder %s202, %s204
      %p211 = scmp.eq.s32.totalorder %s24, 5
      %p212 = por %p210, %p211
      %p213 = scmp.ne.s32.totalorder %s204, %s205
      %p214 = scmp.eq.s32.totalorder %s24, 0
      %p215 = por %p213, %p214
      %p216 = scmp.ne.s32.totalorder %s204, %s205
      %p217 = scmp.eq.s32.totalorder %s25, 5
      %p218 = por %p216, %p217
      %p220 = scmp.ne.s32.totalorder %s205, %s219
      %p221 = scmp.eq.s32.totalorder %s25, 0
      %p222 = por %p220, %p221
      %s224 = sadd.s32 %s223, 1
      %p227 = scmp.eq.s32.totalorder %s19, 5
      %p228 = scmp.ne.s32.totalorder %s223, %s225
      %p229 = scmp.eq.s32.totalorder %s19, 0
      %p230 = por %p228, %p229
      %p231 = scmp.ne.s32.totalorder %s223, %s225
      %p232 = scmp.eq.s32.totalorder %s24, 5
      %p233 = por %p231, %p232
      %p234 = scmp.ne.s32.totalorder %s225, %s226
      %p235 = scmp.eq.s32.totalorder %s24, 0
      %p236 = por %p234, %p235
      %p237 = scmp.ne.s32.totalorder %s225, %s226
      %p238 = scmp.eq.s32.totalorder %s25, 5
      %p239 = por %p237, %p238
      %p241 = scmp.ne.s32.totalorder %s226, %s240
      %p242 = scmp.eq.s32.totalorder %s25, 0
      %p243 = por %p241, %p242
      %s245 = sadd.s32 %s244, 1
      %p248 = scmp.eq.s32.totalorder %s19, 5
      %p249 = scmp.ne.s32.totalorder %s244, %s246
      %p250 = scmp.eq.s32.totalorder %s19, 0
      %p251 = por %p249, %p250
      %p252 = scmp.ne.s32.totalorder %s244, %s246
      %p253 = scmp.eq.s32.totalorder %s24, 5
      %p254 = por %p252, %p253
      %p255 = scmp.ne.s32.totalorder %s246, %s247
      %p256 = scmp.eq.s32.totalorder %s24, 0
      %p257 = por %p255, %p256
      %p258 = scmp.ne.s32.totalorder %s246, %s247
      %p259 = scmp.eq.s32.totalorder %s25, 5
      %p260 = por %p258, %p259
      %p262 = scmp.ne.s32.totalorder %s247, %s261
      %p263 = scmp.eq.s32.totalorder %s25, 0
      %p264 = por %p262, %p263
      %s266 = sadd.s32 %s265, 1
      %p269 = scmp.eq.s32.totalorder %s19, 5
      %p270 = scmp.ne.s32.totalorder %s265, %s267
      %p271 = scmp.eq.s32.totalorder %s19, 0
      %p272 = por %p270, %p271
      %p273 = scmp.ne.s32.totalorder %s265, %s267
      %p274 = scmp.eq.s32.totalorder %s24, 5
      %p275 = por %p273, %p274
      %p276 = scmp.ne.s32.totalorder %s267, %s268
      %p277 = scmp.eq.s32.totalorder %s24, 0
      %p278 = por %p276, %p277
      %p279 = scmp.ne.s32.totalorder %s267, %s268
      %p280 = scmp.eq.s32.totalorder %s25, 5
      %p281 = por %p279, %p280
      %p283 = scmp.ne.s32.totalorder %s268, %s282
      %p284 = scmp.eq.s32.totalorder %s25, 0
      %p285 = por %p283, %p284
      %s287 = sadd.s32 %s286, 1
      %p290 = scmp.eq.s32.totalorder %s19, 5
      %p291 = scmp.ne.s32.totalorder %s286, %s288
      %p292 = scmp.eq.s32.totalorder %s19, 0
      %p293 = por %p291, %p292
      %p294 = scmp.ne.s32.totalorder %s286, %s288
      %p295 = scmp.eq.s32.totalorder %s24, 5
      %p296 = por %p294, %p295
      %p297 = scmp.ne.s32.totalorder %s288, %s289
      %p298 = scmp.eq.s32.totalorder %s24, 0
      %p299 = por %p297, %p298
      %p300 = scmp.ne.s32.totalorder %s288, %s289
      %p301 = scmp.eq.s32.totalorder %s25, 5
      %p302 = por %p300, %p301
      %p304 = scmp.ne.s32.totalorder %s289, %s303
      %p305 = scmp.eq.s32.totalorder %s25, 0
      %p306 = por %p304, %p305
      %s307 = ssub.s32 %s27, %s34
      %s308 = ssub.s32 %s26, %s38
      %s309 = sor.u32 %s307, %s308
      %p310 = scmp.eq.s32.totalorder %s309, 0
      %s312 = sadd.s32 %s311, 1
      %s313 = scalar_select %p310, %s311, %s312
      %p316 = pneg %p310
      %p317 = scmp.eq.s32.totalorder %s19, 5
      %p318 = por %p316, %p317
      %p319 = scmp.ne.s32.totalorder %s311, %s314
      %p320 = scmp.eq.s32.totalorder %s19, 0
      %p321 = por %p319, %p320
      %p322 = scmp.ne.s32.totalorder %s311, %s314
      %p323 = scmp.eq.s32.totalorder %s24, 5
      %p324 = por %p322, %p323
      %p325 = scmp.ne.s32.totalorder %s314, %s315
      %p326 = scmp.eq.s32.totalorder %s24, 0
      %p327 = por %p325, %p326
      %p328 = scmp.ne.s32.totalorder %s314, %s315
      %p329 = scmp.eq.s32.totalorder %s25, 5
      %p330 = por %p328, %p329
      %p332 = scmp.ne.s32.totalorder %s315, %s331
      %p333 = scmp.eq.s32.totalorder %s25, 0
      %p334 = por %p332, %p333
      %p335 = scmp.le.s32.totalorder 1, %s19
      %p336 = scmp.lt.s32.totalorder %s19, 7
      %p337 = pnand %p335, %p336
      %p338 = pneg %p337
      // Predicated region
      $region9: #{conv_blocks_forward.1} parent=5 // pred_check
        _
      $region10: #{conv_blocks_forward.1} parent=5 // pred_check_branch
        %340 = sbr.rel (%p337) target = $region12
      $region11: #{conv_blocks_forward.1} parent=5 // pred_region
        %s341 = ssub.s32 %s19, 1
        // Predicated region
        $region13: #{conv_blocks_forward.1} parent=11 // pred_check
          %p342 = pneg %p152
        $region14: #{conv_blocks_forward.1} parent=11 // pred_check_branch
          %344 = sbr.rel (%p342) target = $region16
        $region15: #{conv_blocks_forward.1} parent=11 // pred_region
          _
        $region16: #{conv_blocks_forward.1} parent=11 // pred_fallthru
          _
        // Predicated region
        $region17: #{conv_blocks_forward.1} parent=11 // pred_check
          %p345 = pneg %p173
        $region18: #{conv_blocks_forward.1} parent=11 // pred_check_branch
          %347 = sbr.rel (%p345) target = $region20
        $region19: #{conv_blocks_forward.1} parent=11 // pred_region
          _
        $region20: #{conv_blocks_forward.1} parent=11 // pred_fallthru
          _
        // Predicated region
        $region21: #{conv_blocks_forward.1} parent=11 // pred_check
          %p348 = pneg %p194
        $region22: #{conv_blocks_forward.1} parent=11 // pred_check_branch
          %350 = sbr.rel (%p348) target = $region24
        $region23: #{conv_blocks_forward.1} parent=11 // pred_region
          %352 = vsyncadd [#allocation3], 0
          %s353 = sshll.u32 %s5, 4
          %s354 = int_to_ptr.hbm [resolvable:$true] %s353
          %s355 = sshll.u32 [#allocation2], 4
          %s356 = int_to_ptr.vmem [resolvable:$true] %s355
          %361 = dma.hbm_to_vmem [thread:$0]  %s354, 12288, %s356, [#allocation3], 64, 64, 4
        $region24: #{conv_blocks_forward.1} parent=11 // pred_fallthru
          _
        // Predicated region
        $region25: #{conv_blocks_forward.1} parent=11 // pred_check
          %p362 = pneg %p215
        $region26: #{conv_blocks_forward.1} parent=11 // pred_check_branch
          %364 = sbr.rel (%p362) target = $region28
        $region27: #{conv_blocks_forward.1} parent=11 // pred_region
          _
        $region28: #{conv_blocks_forward.1} parent=11 // pred_fallthru
          _
        // Predicated region
        $region29: #{conv_blocks_forward.1} parent=11 // pred_check
          %p365 = pneg %p236
        $region30: #{conv_blocks_forward.1} parent=11 // pred_check_branch
          %367 = sbr.rel (%p365) target = $region32
        $region31: #{conv_blocks_forward.1} parent=11 // pred_region
          %369 = vsyncadd [#allocation5], 0
          %s370 = sshll.u32 %s7, 4
          %s371 = int_to_ptr.hbm [resolvable:$true] %s370
          %s372 = sshll.u32 [#allocation4], 4
          %s373 = int_to_ptr.vmem [resolvable:$true] %s372
          %378 = dma.hbm_to_vmem [thread:$0]  %s371, 4096, %s373, [#allocation5], 64, 64, 4
        $region32: #{conv_blocks_forward.1} parent=11 // pred_fallthru
          _
        // Predicated region
        $region33: #{conv_blocks_forward.1} parent=11 // pred_check
          %p379 = pneg %p257
        $region34: #{conv_blocks_forward.1} parent=11 // pred_check_branch
          %381 = sbr.rel (%p379) target = $region36
        $region35: #{conv_blocks_forward.1} parent=11 // pred_region
          _
        $region36: #{conv_blocks_forward.1} parent=11 // pred_fallthru
          _
        // Predicated region
        $region37: #{conv_blocks_forward.1} parent=11 // pred_check
          %p382 = pneg %p278
        $region38: #{conv_blocks_forward.1} parent=11 // pred_check_branch
          %384 = sbr.rel (%p382) target = $region40
        $region39: #{conv_blocks_forward.1} parent=11 // pred_region
          %386 = vsyncadd [#allocation5], 0
          %s387 = sshll.u32 %s9, 4
          %s388 = int_to_ptr.hbm [resolvable:$true] %s387
          %s389 = sshll.u32 [#allocation6], 4
          %s390 = int_to_ptr.vmem [resolvable:$true] %s389
          %395 = dma.hbm_to_vmem [thread:$0]  %s388, 3072, %s390, [#allocation5], 64, 64, 4
        $region40: #{conv_blocks_forward.1} parent=11 // pred_fallthru
          _
        // Predicated region
        $region41: #{conv_blocks_forward.1} parent=11 // pred_check
          %p396 = pneg %p299
        $region42: #{conv_blocks_forward.1} parent=11 // pred_check_branch
          %398 = sbr.rel (%p396) target = $region44
        $region43: #{conv_blocks_forward.1} parent=11 // pred_region
          _
        $region44: #{conv_blocks_forward.1} parent=11 // pred_fallthru
          _
      $region12: #{conv_blocks_forward.1} parent=5 // pred_fallthru
        _
      %p399 = scmp.lt.s32.totalorder %s19, 6
      // Predicated region
      $region45: #{conv_blocks_forward.1} parent=5 // pred_check
        %p400 = pneg %p399
      $region46: #{conv_blocks_forward.1} parent=5 // pred_check_branch
        %402 = sbr.rel (%p400) target = $region48
      $region47: #{conv_blocks_forward.1} parent=5 // pred_region
        // Predicated region
        $region49: #{conv_blocks_forward.1} parent=47 // pred_check
          %p403 = pneg %p61
        $region50: #{conv_blocks_forward.1} parent=47 // pred_check_branch
          %405 = sbr.rel (%p403) target = $region52
        $region51: #{conv_blocks_forward.1} parent=47 // pred_region
          %s406 = smul.u32 %s26, 2
          %s407 = ssub.s32 %s406, 1
          %p408 = scmp.gt.s32.totalorder %s407, 0
          %s409 = scalar_select %p408, %s407, 0
          %p410 = scmp.lt.s32.totalorder %s27, 1
          %s411 = scalar_select %p410, %s27, 1
          %p412 = scmp.lt.s32.totalorder %s409, 5
          %s413 = scalar_select %p412, %s409, 5
          %s414 = smul.addr %s411, 6
          %s415 = sadd.s32 %s413, %s414
          %s416 = smul.addr %s415, 8
          %s417 = scalar_lea.vmem %s0, %s416
          %s418 = smul.u32 %s26, 2
          %s419 = ssub.s32 %s418, 1
          %p420 = scmp.gt.s32.totalorder %s419, 0
          %s421 = scalar_select %p420, %s419, 0
        $region52: #{conv_blocks_forward.1} parent=47 // pred_fallthru
          _
        // Predicated region
        $region53: #{conv_blocks_forward.1} parent=47 // pred_check
          %p422 = pneg %p89
        $region54: #{conv_blocks_forward.1} parent=47 // pred_check_branch
          %424 = sbr.rel (%p422) target = $region56
        $region55: #{conv_blocks_forward.1} parent=47 // pred_region
          %s425 = smul.u32 2, %s26
          %p426 = scmp.lt.s32.totalorder %s27, 1
          %s427 = scalar_select %p426, %s27, 1
          %p428 = scmp.lt.s32.totalorder %s425, 5
          %s429 = scalar_select %p428, %s425, 5
          %s430 = smul.addr %s427, 6
          %s431 = sadd.s32 %s429, %s430
          %s432 = smul.addr %s431, 8
          %s433 = scalar_lea.vmem %s1, %s432
          %s434 = smul.u32 2, %s26
        $region56: #{conv_blocks_forward.1} parent=47 // pred_fallthru
          _
        // Predicated region
        $region57: #{conv_blocks_forward.1} parent=47 // pred_check
          %p435 = pneg %p125
        $region58: #{conv_blocks_forward.1} parent=47 // pred_check_branch
          %437 = sbr.rel (%p435) target = $region60
        $region59: #{conv_blocks_forward.1} parent=47 // pred_region
          %s438 = sadd.s32 %s26, 1
          %s439 = smul.u32 %s438, 2
          %p440 = scmp.lt.s32.totalorder %s439, 5
          %s441 = scalar_select %p440, %s439, 5
          %p442 = scmp.lt.s32.totalorder %s27, 1
          %s443 = scalar_select %p442, %s27, 1
          %p444 = scmp.lt.s32.totalorder %s441, 5
          %s445 = scalar_select %p444, %s441, 5
          %s446 = smul.addr %s443, 6
          %s447 = sadd.s32 %s445, %s446
          %s448 = smul.addr %s447, 8
          %s449 = scalar_lea.vmem %s2, %s448
          %s450 = sadd.s32 %s26, 1
          %s451 = smul.u32 %s450, 2
          %p452 = scmp.lt.s32.totalorder %s451, 5
          %s453 = scalar_select %p452, %s451, 5
        $region60: #{conv_blocks_forward.1} parent=47 // pred_fallthru
          _
      $region48: #{conv_blocks_forward.1} parent=5 // pred_fallthru
        _
      %p454 = scmp.le.s32.totalorder 1, %s19
      %p455 = scmp.lt.s32.totalorder %s19, 7
      %p456 = pnand %p454, %p455
      %p457 = pneg %p456
      // Predicated region
      $region61: #{conv_blocks_forward.1} parent=5 // pred_check
        _
      $region62: #{conv_blocks_forward.1} parent=5 // pred_check_branch
        %459 = sbr.rel (%p456) target = $region64
      $region63: #{conv_blocks_forward.1} parent=5 // pred_region
        %s460 = ssub.s32 %s19, 1
        // Predicated region
        $region65: #{conv_blocks_forward.1} parent=63 // pred_check
          %p461 = pneg %p194
        $region66: #{conv_blocks_forward.1} parent=63 // pred_check_branch
          %463 = sbr.rel (%p461) target = $region68
        $region67: #{conv_blocks_forward.1} parent=63 // pred_region
          %465 = dma.done [#allocation3], 12288
        $region68: #{conv_blocks_forward.1} parent=63 // pred_fallthru
          _
        // Predicated region
        $region69: #{conv_blocks_forward.1} parent=63 // pred_check
          %p466 = pneg %p236
        $region70: #{conv_blocks_forward.1} parent=63 // pred_check_branch
          %468 = sbr.rel (%p466) target = $region72
        $region71: #{conv_blocks_forward.1} parent=63 // pred_region
          %470 = dma.done [#allocation5], 4096
        $region72: #{conv_blocks_forward.1} parent=63 // pred_fallthru
          _
        // Predicated region
        $region73: #{conv_blocks_forward.1} parent=63 // pred_check
          %p471 = pneg %p278
        $region74: #{conv_blocks_forward.1} parent=63 // pred_check_branch
          %473 = sbr.rel (%p471) target = $region76
        $region75: #{conv_blocks_forward.1} parent=63 // pred_region
          %475 = dma.done [#allocation5], 3072
        $region76: #{conv_blocks_forward.1} parent=63 // pred_fallthru
          _
        %s476 = smul.u32 %s28, 2
        %s477 = ssub.s32 %s476, 1
        %p478 = scmp.gt.s32.totalorder %s477, 0
        %s479 = scalar_select %p478, %s477, 0
        %p480 = scmp.lt.s32.totalorder %s29, 1
        %s481 = scalar_select %p480, %s29, 1
        %p482 = scmp.lt.s32.totalorder %s479, 5
        %s483 = scalar_select %p482, %s479, 5
        %s484 = smul.addr %s481, 6
        %s485 = sadd.s32 %s483, %s484
        %s486 = smul.addr %s485, 8
        %s487 = scalar_lea.vmem %s0, %s486
        %p488 = pneg %p67
        %p489 = pneg %p64
        %s490 = smul.u32 2, %s28
        %p491 = scmp.lt.s32.totalorder %s29, 1
        %s492 = scalar_select %p491, %s29, 1
        %p493 = scmp.lt.s32.totalorder %s490, 5
        %s494 = scalar_select %p493, %s490, 5
        %s495 = smul.addr %s492, 6
        %s496 = sadd.s32 %s494, %s495
        %s497 = smul.addr %s496, 8
        %s498 = scalar_lea.vmem %s1, %s497
        %p499 = pneg %p95
        %p500 = pneg %p92
        %s501 = sadd.s32 %s28, 1
        %s502 = smul.u32 %s501, 2
        %p503 = scmp.lt.s32.totalorder %s502, 5
        %s504 = scalar_select %p503, %s502, 5
        %p505 = scmp.lt.s32.totalorder %s29, 1
        %s506 = scalar_select %p505, %s29, 1
        %p507 = scmp.lt.s32.totalorder %s504, 5
        %s508 = scalar_select %p507, %s504, 5
        %s509 = smul.addr %s506, 6
        %s510 = sadd.s32 %s508, %s509
        %s511 = smul.addr %s510, 8
        %s512 = scalar_lea.vmem %s2, %s511
        %p513 = pneg %p131
        %p514 = pneg %p128
        %p515 = pneg %p152
        %p516 = pneg %p149
        %p517 = pneg %p173
        %p518 = pneg %p170
        %p519 = pneg %p194
        %p520 = pneg %p191
        %p521 = pneg %p215
        %p522 = pneg %p212
        %p523 = pneg %p236
        %p524 = pneg %p233
        %p525 = pneg %p257
        %p526 = pneg %p254
        %p527 = pneg %p278
        %p528 = pneg %p275
        %p529 = pneg %p299
        %p530 = pneg %p296
        %p531 = pneg %p327
        %p532 = pneg %p324
        %s533 = smul.u32 2, %s28
        %p534 = scmp.lt.s32.totalorder %s29, 1
        %s535 = scalar_select %p534, %s29, 1
        %p536 = scmp.lt.s32.totalorder %s533, 5
        %s537 = scalar_select %p536, %s533, 5
        %s538 = smul.addr %s535, 6
        %s539 = sadd.s32 %s537, %s538
        %s540 = smul.addr %s539, 8
        %s541 = scalar_lea.vmem %s11, %s540
        %s542 = smul.u32 %s28, 2
        %s543 = ssub.s32 %s542, 1
        %p544 = scmp.gt.s32.totalorder %s543, 0
        %s545 = scalar_select %p544, %s543, 0
        %p546 = scmp.lt.s32.totalorder %s29, 1
        %s547 = scalar_select %p546, %s29, 1
        %p548 = scmp.lt.s32.totalorder %s545, 5
        %s549 = scalar_select %p548, %s545, 5
        %s550 = smul.addr %s547, 6
        %s551 = sadd.s32 %s549, %s550
        %s552 = smul.addr %s551, 8
        %s553 = scalar_lea.vmem %s0, %s552
        %s554 = smul.u32 %s28, 2
        %s555 = ssub.s32 %s554, 1
        %p556 = scmp.gt.s32.totalorder %s555, 0
        %s557 = scalar_select %p556, %s555, 0
        %s558 = smul.u32 2, %s28
        %p559 = scmp.lt.s32.totalorder %s29, 1
        %s560 = scalar_select %p559, %s29, 1
        %p561 = scmp.lt.s32.totalorder %s558, 5
        %s562 = scalar_select %p561, %s558, 5
        %s563 = smul.addr %s560, 6
        %s564 = sadd.s32 %s562, %s563
        %s565 = smul.addr %s564, 8
        %s566 = scalar_lea.vmem %s1, %s565
        %s567 = smul.u32 2, %s28
        %s568 = sadd.s32 %s28, 1
        %s569 = smul.u32 %s568, 2
        %p570 = scmp.lt.s32.totalorder %s569, 5
        %s571 = scalar_select %p570, %s569, 5
        %p572 = scmp.lt.s32.totalorder %s29, 1
        %s573 = scalar_select %p572, %s29, 1
        %p574 = scmp.lt.s32.totalorder %s571, 5
        %s575 = scalar_select %p574, %s571, 5
        %s576 = smul.addr %s573, 6
        %s577 = sadd.s32 %s575, %s576
        %s578 = smul.addr %s577, 8
        %s579 = scalar_lea.vmem %s2, %s578
        %s580 = sadd.s32 %s28, 1
        %s581 = smul.u32 %s580, 2
        %p582 = scmp.lt.s32.totalorder %s581, 5
        %s583 = scalar_select %p582, %s581, 5
        %s584 = smul.u32 2, %s28
        %p585 = scmp.lt.s32.totalorder %s29, 1
        %s586 = scalar_select %p585, %s29, 1
        %p587 = scmp.lt.s32.totalorder %s584, 5
        %s588 = scalar_select %p587, %s584, 5
        %s589 = smul.addr %s586, 6
        %s590 = sadd.s32 %s588, %s589
        %s591 = smul.addr %s590, 8
        %s592 = scalar_lea.vmem %s11, %s591
        %s593 = smul.u32 2, %s28
        %v594 = vlaneseq
        %v595 = vand.u32 %v594, 127
        %vm596 = vcmp.lt.s32.totalorder %v595, 48
        %v597 = vsel %vm596, 1, 0
        %v598 = vcvt.s32.f32 %v597
        %v599 = vld [vmem:[%s553] sm:$0xff]
        %v600 = vld [vmem:[%s566] sm:$0xff]
        %v601 = vld [vmem:[%s566 + $0x8] sm:$0xff]
        %v602 = vld [vmem:[%s579] sm:$0xff]
        %v603 = vand.u32 2147483647, %v599
        %v604 = vand.u32 2147483647, %v600
        %v605 = vand.u32 2147483647, %v601
        %v606 = vand.u32 2147483647, %v602
        %607 = vadd.xlane.f32.xlu0 %v603
        %v608 = vpop.xlane.xlu0 %607
        %609 = vadd.xlane.f32.xlu0 %v604
        %v610 = vpop.xlane.xlu0 %609
        %611 = vadd.xlane.f32.xlu0 %v605
        %v612 = vpop.xlane.xlu0 %611
        %613 = vadd.xlane.f32.xlu0 %v606
        %v614 = vpop.xlane.xlu0 %613
        %vm615 = vcmp.gt.f32.partialorder %v608, 0.0
        %vm616 = vcmp.gt.f32.partialorder %v610, 0.0
        %vm617 = vcmp.gt.f32.partialorder %v612, 0.0
        %vm618 = vcmp.gt.f32.partialorder %v614, 0.0
        %v619 = vsel %vm615, 1, 0
        %v620 = vsel %vm616, 1, 0
        %v621 = vsel %vm617, 1, 0
        %v622 = vsel %vm618, 1, 0
        %v623 = vcvt.s32.f32 %v619
        %v624 = vcvt.s32.f32 %v620
        %v625 = vcvt.s32.f32 %v621
        %v626 = vcvt.s32.f32 %v622
        %s627 = smul.u32 %s28, 16
        %s628 = ssub.s32 %s627, 8
        %v629 = vlaneseq
        %v630 = vshrl.u32 %v629, 7
        %v631 = vadd.s32 %v630, 8
        %v632 = vadd.s32 %v630, 16
        %v633 = vadd.s32 %v630, 24
        %v634 = vstv %s628
        %v635 = vadd.s32 %v634, %v630
        %v636 = vadd.s32 %v634, %v631
        %v637 = vadd.s32 %v634, %v632
        %v638 = vadd.s32 %v634, %v633
        %vm639 = vcmp.ge.s32.totalorder %v635, 0
        %vm640 = vcmp.ge.s32.totalorder %v636, 0
        %vm641 = vcmp.ge.s32.totalorder %v637, 0
        %vm642 = vcmp.ge.s32.totalorder %v638, 0
        %vm643 = vcmp.lt.s32.totalorder %v635, 40
        %vm644 = vcmp.lt.s32.totalorder %v636, 40
        %vm645 = vcmp.lt.s32.totalorder %v637, 40
        %vm646 = vcmp.lt.s32.totalorder %v638, 40
        %vm647 = vmand %vm639, %vm643
        %vm648 = vmand %vm640, %vm644
        %vm649 = vmand %vm641, %vm645
        %vm650 = vmand %vm642, %vm646
        %v651 = vsel %vm647, 1, 0
        %v652 = vsel %vm648, 1, 0
        %v653 = vsel %vm649, 1, 0
        %v654 = vsel %vm650, 1, 0
        %v655 = vcvt.s32.f32 %v651
        %v656 = vcvt.s32.f32 %v652
        %v657 = vcvt.s32.f32 %v653
        %v658 = vcvt.s32.f32 %v654
        %v659 = vld [vmem:[%s3] sm:$0x1]
        %v660 = vld [vmem:[%s4] sm:$0x1]
        %661 = vadd.xlane.f32.xlu0 %v599
        %v662 = vpop.xlane.xlu0 %661
        %663 = vadd.xlane.f32.xlu0 %v600
        %v664 = vpop.xlane.xlu0 %663
        %665 = vadd.xlane.f32.xlu0 %v601
        %v666 = vpop.xlane.xlu0 %665
        %667 = vadd.xlane.f32.xlu0 %v602
        %v668 = vpop.xlane.xlu0 %667
        %v669 = vmul.f32 %v662, 0.020833334
        %v670 = vmul.f32 %v664, 0.020833334
        %v671 = vmul.f32 %v666, 0.020833334
        %v672 = vmul.f32 %v668, 0.020833334
        %v673 = vsub.f32 %v599, %v669
        %v674 = vsub.f32 %v600, %v670
        %v675 = vsub.f32 %v601, %v671
        %v676 = vsub.f32 %v602, %v672
        %v677 = vmul.f32 %v673, %v598
        %v678 = vmul.f32 %v674, %v598
        %v679 = vmul.f32 %v675, %v598
        %v680 = vmul.f32 %v676, %v598
        %v681 = vmul.f32 %v677, %v677
        %v682 = vmul.f32 %v678, %v678
        %v683 = vmul.f32 %v679, %v679
        %v684 = vmul.f32 %v680, %v680
        %685 = vadd.xlane.f32.xlu0 %v681
        %v686 = vpop.xlane.xlu0 %685
        %687 = vadd.xlane.f32.xlu0 %v682
        %v688 = vpop.xlane.xlu0 %687
        %689 = vadd.xlane.f32.xlu0 %v683
        %v690 = vpop.xlane.xlu0 %689
        %691 = vadd.xlane.f32.xlu0 %v684
        %v692 = vpop.xlane.xlu0 %691
        %v693 = vmul.f32 %v686, 0.020833334
        %v694 = vmul.f32 %v688, 0.020833334
        %v695 = vmul.f32 %v690, 0.020833334
        %v696 = vmul.f32 %v692, 0.020833334
        %v697 = vadd.f32 %v693, 1e-05
        %v698 = vadd.f32 %v694, 1e-05
        %v699 = vadd.f32 %v695, 1e-05
        %v700 = vadd.f32 %v696, 1e-05
        %v701 = vrsqrt.pop %v697
        %v702 = vmul.f32 %v701, %v697
        %v703 = vmul.f32 %v702, %v701
        %v704 = vmul.f32 0.5, %v703
        %v705 = vsub.f32 1.5, %v704
        %v706 = vmul.f32 %v701, %v705
        %vm707 = vweird.f32 %v697
        %vm708 = vweird.f32 %v701
        %vm709 = vmor %vm707, %vm708
        %v710 = vsel %vm709, %v701, %v706
        %v711 = vrsqrt.pop %v698
        %v712 = vmul.f32 %v711, %v698
        %v713 = vmul.f32 %v712, %v711
        %v714 = vmul.f32 0.5, %v713
        %v715 = vsub.f32 1.5, %v714
        %v716 = vmul.f32 %v711, %v715
        %vm717 = vweird.f32 %v698
        %vm718 = vweird.f32 %v711
        %vm719 = vmor %vm717, %vm718
        %v720 = vsel %vm719, %v711, %v716
        %v721 = vrsqrt.pop %v699
        %v722 = vmul.f32 %v721, %v699
        %v723 = vmul.f32 %v722, %v721
        %v724 = vmul.f32 0.5, %v723
        %v725 = vsub.f32 1.5, %v724
        %v726 = vmul.f32 %v721, %v725
        %vm727 = vweird.f32 %v699
        %vm728 = vweird.f32 %v721
        %vm729 = vmor %vm727, %vm728
        %v730 = vsel %vm729, %v721, %v726
        %v731 = vrsqrt.pop %v700
        %v732 = vmul.f32 %v731, %v700
        %v733 = vmul.f32 %v732, %v731
        %v734 = vmul.f32 0.5, %v733
        %v735 = vsub.f32 1.5, %v734
        %v736 = vmul.f32 %v731, %v735
        %vm737 = vweird.f32 %v700
        %vm738 = vweird.f32 %v731
        %vm739 = vmor %vm737, %vm738
        %v740 = vsel %vm739, %v731, %v736
        %v741 = vmul.f32 %v677, %v710
        %v742 = vmul.f32 %v678, %v720
        %v743 = vmul.f32 %v679, %v730
        %v744 = vmul.f32 %v680, %v740
        %v745 = vperm.slane %v659, 0
        %v746 = vmul.f32 %v741, %v745
        %v747 = vmul.f32 %v742, %v745
        %v748 = vmul.f32 %v743, %v745
        %v749 = vmul.f32 %v744, %v745
        %v750 = vperm.slane %v660, 0
        %v751 = vadd.f32 %v746, %v750
        %v752 = vadd.f32 %v747, %v750
        %v753 = vadd.f32 %v748, %v750
        %v754 = vadd.f32 %v749, %v750
        %v755 = vmul.f32 %v751, %v655
        %v756 = vmul.f32 %v752, %v656
        %v757 = vmul.f32 %v753, %v657
        %v758 = vmul.f32 %v754, %v658
        %v759 = vpack.c.bf16 %v755, %v755
        %v760 = vpack.c.bf16 %v756, %v756
        %v761 = vpack.c.bf16 %v757, %v757
        %v762 = vpack.c.bf16 %v758, %v758
        %v763 = vld [vmem:[%s6] sm:$0x1]
        %v764 = vperm.slane %v763, 0
        %v765 = vadd.f32 %v764, 0.0
        %v766 = vld [vmem:[#allocation2] sm:$0xf]
        %v767 = vld [vmem:[#allocation2 + $0x4] sm:$0xf]
        %v768 = vld [vmem:[#allocation2 + $0x8] sm:$0xf]
        %v769 = vld [vmem:[#allocation2 + $0xc] sm:$0xf]
        %v770 = vld [vmem:[#allocation2 + $0x10] sm:$0xf]
        %v771 = vld [vmem:[#allocation2 + $0x14] sm:$0xf]
        %v772 = vld [vmem:[#allocation2 + $0x18] sm:$0xf]
        %v773 = vld [vmem:[#allocation2 + $0x1c] sm:$0xf]
        %v774 = vld [vmem:[#allocation2 + $0x20] sm:$0xf]
        %v775 = vld [vmem:[#allocation2 + $0x24] sm:$0xf]
        %v776 = vld [vmem:[#allocation2 + $0x28] sm:$0xf]
        %v777 = vld [vmem:[#allocation2 + $0x2c] sm:$0xf]
        %v778 = vld [vmem:[#allocation2 + $0x30] sm:$0xf]
        %v779 = vld [vmem:[#allocation2 + $0x34] sm:$0xf]
        %v780 = vld [vmem:[#allocation2 + $0x38] sm:$0xf]
        %v781 = vld [vmem:[#allocation2 + $0x3c] sm:$0xf]
        %v786 = vunpack.c.l.b16 %v759
        %v787 = vunpack.c.l.b16 %v760
        %v788 = vunpack.c.l.b16 %v761
        %v789 = vunpack.c.l.b16 %v762
        %v790 = vpack.c.b16 %v787, %v786
        %v791 = vpack.c.b16 %v789, %v788
        %v810 = vunpack.c.l.b16 %v766
        %v811 = vunpack.c.l.b16 %v767
        %v812 = vunpack.c.l.b16 %v768
        %v813 = vunpack.c.l.b16 %v769
        %v814 = vunpack.c.l.b16 %v770
        %v815 = vunpack.c.l.b16 %v771
        %v816 = vunpack.c.l.b16 %v772
        %v817 = vunpack.c.l.b16 %v773
        %v818 = vunpack.c.l.b16 %v774
        %v819 = vunpack.c.l.b16 %v775
        %v820 = vunpack.c.l.b16 %v776
        %v821 = vunpack.c.l.b16 %v777
        %v822 = vunpack.c.l.b16 %v778
        %v823 = vunpack.c.l.b16 %v779
        %v824 = vunpack.c.l.b16 %v780
        %v825 = vunpack.c.l.b16 %v781
        %v826 = vpack.c.b16 %v811, %v810
        %v827 = vpack.c.b16 %v813, %v812
        %v828 = vpack.c.b16 %v815, %v814
        %v829 = vpack.c.b16 %v817, %v816
        %v830 = vpack.c.b16 %v819, %v818
        %v831 = vpack.c.b16 %v821, %v820
        %v832 = vpack.c.b16 %v823, %v822
        %v833 = vpack.c.b16 %v825, %v824
        %842 = vmatpush.bf16.msra.mxu0 %v833
        %843 = vmatpush.bf16.msra.mxu0 %v832
        %844 = vmatpush.bf16.msra.mxu0 %v831
        %845 = vmatpush.bf16.msra.mxu0 %v830
        %846 = vmatpush.bf16.msra.mxu0 %v829
        %847 = vmatpush.bf16.msra.mxu0 %v828
        %848 = vmatpush.bf16.msra.mxu0 %v827
        %849 = vmatpush.bf16.msra.mxu0 %v826
        %850 = vmatmul.bf16.gmra.mxu0 %v790
        %v851 = vpop.f32.mrf.mxu0
        %v852 = vadd.f32 0.0, %v851
        %v853 = vpop.f32.mrf.mxu0
        %v854 = vadd.f32 0.0, %v853
        %855 = vmatmul.bf16.gmra.mxu0 %v791
        %v856 = vpop.f32.mrf.mxu0
        %v857 = vadd.f32 0.0, %v856
        %v858 = vpop.f32.mrf.mxu0
        %v859 = vadd.f32 0.0, %v858
        %860 = vdwg.mxu0
        %v861 = vadd.f32 %v765, %v852
        %v862 = vadd.f32 %v765, %v854
        %v863 = vadd.f32 %v765, %v857
        %v864 = vadd.f32 %v765, %v859
        %s865 = scalar_lea.vmem [#allocation2], 64
        %v866 = vld [vmem:[%s865] sm:$0xf]
        %v867 = vld [vmem:[%s865 + $0x4] sm:$0xf]
        %v868 = vld [vmem:[%s865 + $0x8] sm:$0xf]
        %v869 = vld [vmem:[%s865 + $0xc] sm:$0xf]
        %v870 = vld [vmem:[%s865 + $0x10] sm:$0xf]
        %v871 = vld [vmem:[%s865 + $0x14] sm:$0xf]
        %v872 = vld [vmem:[%s865 + $0x18] sm:$0xf]
        %v873 = vld [vmem:[%s865 + $0x1c] sm:$0xf]
        %v874 = vld [vmem:[%s865 + $0x20] sm:$0xf]
        %v875 = vld [vmem:[%s865 + $0x24] sm:$0xf]
        %v876 = vld [vmem:[%s865 + $0x28] sm:$0xf]
        %v877 = vld [vmem:[%s865 + $0x2c] sm:$0xf]
        %v878 = vld [vmem:[%s865 + $0x30] sm:$0xf]
        %v879 = vld [vmem:[%s865 + $0x34] sm:$0xf]
        %v880 = vld [vmem:[%s865 + $0x38] sm:$0xf]
        %v881 = vld [vmem:[%s865 + $0x3c] sm:$0xf]
        %vm882 = vsmask.f32 7424
        %v884 = vshrl.u32 %v790, 16
        %v886 = vshll.u32 %v790, 16
        %v888 = vrot.slane %v886, 1
        %v889 = vor.u32 %v884, %v888
        %v891 = vshll.u32 %v791, 16
        %v893 = vrot.slane %v891, 1
        %v894 = vsel %vm882, %v889, %v893
        %v895 = vshrl.u32 %v791, 16
        %v897 = vor.u32 %v895, %v893
        %v916 = vunpack.c.l.b16 %v866
        %v917 = vunpack.c.l.b16 %v867
        %v918 = vunpack.c.l.b16 %v868
        %v919 = vunpack.c.l.b16 %v869
        %v920 = vunpack.c.l.b16 %v870
        %v921 = vunpack.c.l.b16 %v871
        %v922 = vunpack.c.l.b16 %v872
        %v923 = vunpack.c.l.b16 %v873
        %v924 = vunpack.c.l.b16 %v874
        %v925 = vunpack.c.l.b16 %v875
        %v926 = vunpack.c.l.b16 %v876
        %v927 = vunpack.c.l.b16 %v877
        %v928 = vunpack.c.l.b16 %v878
        %v929 = vunpack.c.l.b16 %v879
        %v930 = vunpack.c.l.b16 %v880
        %v931 = vunpack.c.l.b16 %v881
        %v932 = vpack.c.b16 %v917, %v916
        %v933 = vpack.c.b16 %v919, %v918
        %v934 = vpack.c.b16 %v921, %v920
        %v935 = vpack.c.b16 %v923, %v922
        %v936 = vpack.c.b16 %v925, %v924
        %v937 = vpack.c.b16 %v927, %v926
        %v938 = vpack.c.b16 %v929, %v928
        %v939 = vpack.c.b16 %v931, %v930
        %948 = vmatpush.bf16.msra.mxu0 %v939
        %949 = vmatpush.bf16.msra.mxu0 %v938
        %950 = vmatpush.bf16.msra.mxu0 %v937
        %951 = vmatpush.bf16.msra.mxu0 %v936
        %952 = vmatpush.bf16.msra.mxu0 %v935
        %953 = vmatpush.bf16.msra.mxu0 %v934
        %954 = vmatpush.bf16.msra.mxu0 %v933
        %955 = vmatpush.bf16.msra.mxu0 %v932
        %956 = vmatmul.bf16.gmra.mxu0 %v894
        %v957 = vpop.f32.mrf.mxu0
        %v958 = vadd.f32 0.0, %v957
        %v959 = vpop.f32.mrf.mxu0
        %v960 = vadd.f32 0.0, %v959
        %961 = vmatmul.bf16.gmra.mxu0 %v897
        %v962 = vpop.f32.mrf.mxu0
        %v963 = vadd.f32 0.0, %v962
        %v964 = vpop.f32.mrf.mxu0
        %v965 = vadd.f32 0.0, %v964
        %966 = vdwg.mxu0
        %v967 = vadd.f32 %v861, %v958
        %v968 = vadd.f32 %v862, %v960
        %v969 = vadd.f32 %v863, %v963
        %v970 = vadd.f32 %v864, %v965
        %s971 = scalar_lea.vmem [#allocation2], 128
        %v972 = vld [vmem:[%s971] sm:$0xf]
        %v973 = vld [vmem:[%s971 + $0x4] sm:$0xf]
        %v974 = vld [vmem:[%s971 + $0x8] sm:$0xf]
        %v975 = vld [vmem:[%s971 + $0xc] sm:$0xf]
        %v976 = vld [vmem:[%s971 + $0x10] sm:$0xf]
        %v977 = vld [vmem:[%s971 + $0x14] sm:$0xf]
        %v978 = vld [vmem:[%s971 + $0x18] sm:$0xf]
        %v979 = vld [vmem:[%s971 + $0x1c] sm:$0xf]
        %v980 = vld [vmem:[%s971 + $0x20] sm:$0xf]
        %v981 = vld [vmem:[%s971 + $0x24] sm:$0xf]
        %v982 = vld [vmem:[%s971 + $0x28] sm:$0xf]
        %v983 = vld [vmem:[%s971 + $0x2c] sm:$0xf]
        %v984 = vld [vmem:[%s971 + $0x30] sm:$0xf]
        %v985 = vld [vmem:[%s971 + $0x34] sm:$0xf]
        %v986 = vld [vmem:[%s971 + $0x38] sm:$0xf]
        %v987 = vld [vmem:[%s971 + $0x3c] sm:$0xf]
        %vm988 = vcmask 1046528
        %v989 = vrot.slane %v790, 1
        %v990 = vrot.slane %v791, 1
        %v991 = vsel %vm988, %v989, %v990
        %v1010 = vunpack.c.l.b16 %v972
        %v1011 = vunpack.c.l.b16 %v973
        %v1012 = vunpack.c.l.b16 %v974
        %v1013 = vunpack.c.l.b16 %v975
        %v1014 = vunpack.c.l.b16 %v976
        %v1015 = vunpack.c.l.b16 %v977
        %v1016 = vunpack.c.l.b16 %v978
        %v1017 = vunpack.c.l.b16 %v979
        %v1018 = vunpack.c.l.b16 %v980
        %v1019 = vunpack.c.l.b16 %v981
        %v1020 = vunpack.c.l.b16 %v982
        %v1021 = vunpack.c.l.b16 %v983
        %v1022 = vunpack.c.l.b16 %v984
        %v1023 = vunpack.c.l.b16 %v985
        %v1024 = vunpack.c.l.b16 %v986
        %v1025 = vunpack.c.l.b16 %v987
        %v1026 = vpack.c.b16 %v1011, %v1010
        %v1027 = vpack.c.b16 %v1013, %v1012
        %v1028 = vpack.c.b16 %v1015, %v1014
        %v1029 = vpack.c.b16 %v1017, %v1016
        %v1030 = vpack.c.b16 %v1019, %v1018
        %v1031 = vpack.c.b16 %v1021, %v1020
        %v1032 = vpack.c.b16 %v1023, %v1022
        %v1033 = vpack.c.b16 %v1025, %v1024
        %1042 = vmatpush.bf16.msra.mxu0 %v1033
        %1043 = vmatpush.bf16.msra.mxu0 %v1032
        %1044 = vmatpush.bf16.msra.mxu0 %v1031
        %1045 = vmatpush.bf16.msra.mxu0 %v1030
        %1046 = vmatpush.bf16.msra.mxu0 %v1029
        %1047 = vmatpush.bf16.msra.mxu0 %v1028
        %1048 = vmatpush.bf16.msra.mxu0 %v1027
        %1049 = vmatpush.bf16.msra.mxu0 %v1026
        %1050 = vmatmul.bf16.gmra.mxu0 %v991
        %v1051 = vpop.f32.mrf.mxu0
        %v1052 = vadd.f32 0.0, %v1051
        %v1053 = vpop.f32.mrf.mxu0
        %v1054 = vadd.f32 0.0, %v1053
        %1055 = vmatmul.bf16.gmra.mxu0 %v990
        %v1056 = vpop.f32.mrf.mxu0
        %v1057 = vadd.f32 0.0, %v1056
        %v1058 = vpop.f32.mrf.mxu0
        %v1059 = vadd.f32 0.0, %v1058
        %1060 = vdwg.mxu0
        %v1061 = vadd.f32 %v967, %v1052
        %v1062 = vadd.f32 %v968, %v1054
        %v1063 = vadd.f32 %v969, %v1057
        %v1064 = vadd.f32 %v970, %v1059
        %v1065 = vpack.c.bf16 %v1061, %v1061
        %v1066 = vpack.c.bf16 %v1062, %v1062
        %v1067 = vpack.c.bf16 %v1063, %v1063
        %v1068 = vpack.c.bf16 %v1064, %v1064
        %v1069 = vunpack.c.l.bf16 %v1065
        %v1070 = vunpack.c.l.bf16 %v1066
        %v1071 = vunpack.c.l.bf16 %v1067
        %v1072 = vunpack.c.l.bf16 %v1068
        %v1073 = vmul.f32 %v1069, 0.5
        %v1074 = vmul.f32 %v1070, 0.5
        %v1075 = vmul.f32 %v1071, 0.5
        %v1076 = vmul.f32 %v1072, 0.5
        %v1077 = vpack.c.bf16 %v1073, %v1073
        %v1078 = vpack.c.bf16 %v1074, %v1074
        %v1079 = vpack.c.bf16 %v1075, %v1075
        %v1080 = vpack.c.bf16 %v1076, %v1076
        %v1081 = vmul.f32 %v1069, 0.70703125
        %v1082 = vmul.f32 %v1070, 0.70703125
        %v1083 = vmul.f32 %v1071, 0.70703125
        %v1084 = vmul.f32 %v1072, 0.70703125
        %v1085 = vpack.c.bf16 %v1081, %v1081
        %v1086 = vpack.c.bf16 %v1082, %v1082
        %v1087 = vpack.c.bf16 %v1083, %v1083
        %v1088 = vpack.c.bf16 %v1084, %v1084
        %v1089 = vunpack.c.l.bf16 %v1085
        %v1090 = vunpack.c.l.bf16 %v1086
        %v1091 = vunpack.c.l.bf16 %v1087
        %v1092 = vunpack.c.l.bf16 %v1088
        %v1093 = vmul.f32 %v1089, %v1089
        %v1094 = vmin.f32 16.0, %v1093
        %v1095 = vmul.f32 %v1094, 2.1237322e-06
        %v1096 = vadd.f32 %v1095, 0.00028619796
        %v1097 = vmul.f32 %v1094, %v1096
        %v1098 = vadd.f32 %v1097, 0.0036580483
        %v1099 = vmul.f32 %v1094, %v1098
        %v1100 = vadd.f32 %v1099, 0.05243302
        %v1101 = vmul.f32 %v1094, %v1100
        %v1102 = vadd.f32 %v1101, 0.18741608
        %v1103 = vmul.f32 %v1094, %v1102
        %v1104 = vadd.f32 %v1103, 1.1283791
        %v1105 = vmul.f32 %v1089, %v1104
        %v1106 = vmul.f32 %v1094, 3.8918573e-05
        %v1107 = vadd.f32 %v1106, 0.001143296
        %v1108 = vmul.f32 %v1094, %v1107
        %v1109 = vadd.f32 %v1108, 0.014752088
        %v1110 = vmul.f32 %v1094, %v1109
        %v1111 = vadd.f32 %v1110, 0.112945676
        %v1112 = vmul.f32 %v1094, %v1111
        %v1113 = vadd.f32 %v1112, 0.4994258
        %v1114 = vmul.f32 %v1094, %v1113
        %v1115 = vadd.f32 %v1114, 1.0
        %v1116 = vrcp.pop %v1115
        %v1117 = vmul.f32 %v1115, %v1116
        %v1118 = vsub.f32 1.0, %v1117
        %v1119 = vmul.f32 %v1116, %v1118
        %v1120 = vadd.f32 %v1116, %v1119
        %vm1121 = vweird.f32 %v1115
        %vm1122 = vweird.f32 %v1116
        %vm1123 = vmor %vm1121, %vm1122
        %v1124 = vsel %vm1123, %v1116, %v1120
        %v1125 = vand.u32 2147483647, %v1115
        %vm1126 = vcmp.eq.f32.partialorder %v1125, 8.507059e+37
        %v1127 = vand.u32 %v1115, 2147483648
        %v1128 = vor.u32 1.1754944e-38, %v1127
        %v1129 = vsel %vm1126, %v1128, %v1124
        %v1130 = vmul.f32 %v1105, %v1129
        %v1131 = vmin.f32 %v1130, 1.0
        %v1132 = vmax.f32 %v1131, -1.0
        %v1133 = vmul.f32 %v1090, %v1090
        %v1134 = vmin.f32 16.0, %v1133
        %v1135 = vmul.f32 %v1134, 2.1237322e-06
        %v1136 = vadd.f32 %v1135, 0.00028619796
        %v1137 = vmul.f32 %v1134, %v1136
        %v1138 = vadd.f32 %v1137, 0.0036580483
        %v1139 = vmul.f32 %v1134, %v1138
        %v1140 = vadd.f32 %v1139, 0.05243302
        %v1141 = vmul.f32 %v1134, %v1140
        %v1142 = vadd.f32 %v1141, 0.18741608
        %v1143 = vmul.f32 %v1134, %v1142
        %v1144 = vadd.f32 %v1143, 1.1283791
        %v1145 = vmul.f32 %v1090, %v1144
        %v1146 = vmul.f32 %v1134, 3.8918573e-05
        %v1147 = vadd.f32 %v1146, 0.001143296
        %v1148 = vmul.f32 %v1134, %v1147
        %v1149 = vadd.f32 %v1148, 0.014752088
        %v1150 = vmul.f32 %v1134, %v1149
        %v1151 = vadd.f32 %v1150, 0.112945676
        %v1152 = vmul.f32 %v1134, %v1151
        %v1153 = vadd.f32 %v1152, 0.4994258
        %v1154 = vmul.f32 %v1134, %v1153
        %v1155 = vadd.f32 %v1154, 1.0
        %v1156 = vrcp.pop %v1155
        %v1157 = vmul.f32 %v1155, %v1156
        %v1158 = vsub.f32 1.0, %v1157
        %v1159 = vmul.f32 %v1156, %v1158
        %v1160 = vadd.f32 %v1156, %v1159
        %vm1161 = vweird.f32 %v1155
        %vm1162 = vweird.f32 %v1156
        %vm1163 = vmor %vm1161, %vm1162
        %v1164 = vsel %vm1163, %v1156, %v1160
        %v1165 = vand.u32 2147483647, %v1155
        %vm1166 = vcmp.eq.f32.partialorder %v1165, 8.507059e+37
        %v1167 = vand.u32 %v1155, 2147483648
        %v1168 = vor.u32 1.1754944e-38, %v1167
        %v1169 = vsel %vm1166, %v1168, %v1164
        %v1170 = vmul.f32 %v1145, %v1169
        %v1171 = vmin.f32 %v1170, 1.0
        %v1172 = vmax.f32 %v1171, -1.0
        %v1173 = vmul.f32 %v1091, %v1091
        %v1174 = vmin.f32 16.0, %v1173
        %v1175 = vmul.f32 %v1174, 2.1237322e-06
        %v1176 = vadd.f32 %v1175, 0.00028619796
        %v1177 = vmul.f32 %v1174, %v1176
        %v1178 = vadd.f32 %v1177, 0.0036580483
        %v1179 = vmul.f32 %v1174, %v1178
        %v1180 = vadd.f32 %v1179, 0.05243302
        %v1181 = vmul.f32 %v1174, %v1180
        %v1182 = vadd.f32 %v1181, 0.18741608
        %v1183 = vmul.f32 %v1174, %v1182
        %v1184 = vadd.f32 %v1183, 1.1283791
        %v1185 = vmul.f32 %v1091, %v1184
        %v1186 = vmul.f32 %v1174, 3.8918573e-05
        %v1187 = vadd.f32 %v1186, 0.001143296
        %v1188 = vmul.f32 %v1174, %v1187
        %v1189 = vadd.f32 %v1188, 0.014752088
        %v1190 = vmul.f32 %v1174, %v1189
        %v1191 = vadd.f32 %v1190, 0.112945676
        %v1192 = vmul.f32 %v1174, %v1191
        %v1193 = vadd.f32 %v1192, 0.4994258
        %v1194 = vmul.f32 %v1174, %v1193
        %v1195 = vadd.f32 %v1194, 1.0
        %v1196 = vrcp.pop %v1195
        %v1197 = vmul.f32 %v1195, %v1196
        %v1198 = vsub.f32 1.0, %v1197
        %v1199 = vmul.f32 %v1196, %v1198
        %v1200 = vadd.f32 %v1196, %v1199
        %vm1201 = vweird.f32 %v1195
        %vm1202 = vweird.f32 %v1196
        %vm1203 = vmor %vm1201, %vm1202
        %v1204 = vsel %vm1203, %v1196, %v1200
        %v1205 = vand.u32 2147483647, %v1195
        %vm1206 = vcmp.eq.f32.partialorder %v1205, 8.507059e+37
        %v1207 = vand.u32 %v1195, 2147483648
        %v1208 = vor.u32 1.1754944e-38, %v1207
        %v1209 = vsel %vm1206, %v1208, %v1204
        %v1210 = vmul.f32 %v1185, %v1209
        %v1211 = vmin.f32 %v1210, 1.0
        %v1212 = vmax.f32 %v1211, -1.0
        %v1213 = vmul.f32 %v1092, %v1092
        %v1214 = vmin.f32 16.0, %v1213
        %v1215 = vmul.f32 %v1214, 2.1237322e-06
        %v1216 = vadd.f32 %v1215, 0.00028619796
        %v1217 = vmul.f32 %v1214, %v1216
        %v1218 = vadd.f32 %v1217, 0.0036580483
        %v1219 = vmul.f32 %v1214, %v1218
        %v1220 = vadd.f32 %v1219, 0.05243302
        %v1221 = vmul.f32 %v1214, %v1220
        %v1222 = vadd.f32 %v1221, 0.18741608
        %v1223 = vmul.f32 %v1214, %v1222
        %v1224 = vadd.f32 %v1223, 1.1283791
        %v1225 = vmul.f32 %v1092, %v1224
        %v1226 = vmul.f32 %v1214, 3.8918573e-05
        %v1227 = vadd.f32 %v1226, 0.001143296
        %v1228 = vmul.f32 %v1214, %v1227
        %v1229 = vadd.f32 %v1228, 0.014752088
        %v1230 = vmul.f32 %v1214, %v1229
        %v1231 = vadd.f32 %v1230, 0.112945676
        %v1232 = vmul.f32 %v1214, %v1231
        %v1233 = vadd.f32 %v1232, 0.4994258
        %v1234 = vmul.f32 %v1214, %v1233
        %v1235 = vadd.f32 %v1234, 1.0
        %v1236 = vrcp.pop %v1235
        %v1237 = vmul.f32 %v1235, %v1236
        %v1238 = vsub.f32 1.0, %v1237
        %v1239 = vmul.f32 %v1236, %v1238
        %v1240 = vadd.f32 %v1236, %v1239
        %vm1241 = vweird.f32 %v1235
        %vm1242 = vweird.f32 %v1236
        %vm1243 = vmor %vm1241, %vm1242
        %v1244 = vsel %vm1243, %v1236, %v1240
        %v1245 = vand.u32 2147483647, %v1235
        %vm1246 = vcmp.eq.f32.partialorder %v1245, 8.507059e+37
        %v1247 = vand.u32 %v1235, 2147483648
        %v1248 = vor.u32 1.1754944e-38, %v1247
        %v1249 = vsel %vm1246, %v1248, %v1244
        %v1250 = vmul.f32 %v1225, %v1249
        %v1251 = vmin.f32 %v1250, 1.0
        %v1252 = vmax.f32 %v1251, -1.0
        %v1253 = vpack.c.bf16 %v1132, %v1132
        %v1254 = vpack.c.bf16 %v1172, %v1172
        %v1255 = vpack.c.bf16 %v1212, %v1212
        %v1256 = vpack.c.bf16 %v1252, %v1252
        %v1257 = vunpack.c.l.bf16 %v1253
        %v1258 = vunpack.c.l.bf16 %v1254
        %v1259 = vunpack.c.l.bf16 %v1255
        %v1260 = vunpack.c.l.bf16 %v1256
        %v1261 = vadd.f32 %v1257, 1.0
        %v1262 = vadd.f32 %v1258, 1.0
        %v1263 = vadd.f32 %v1259, 1.0
        %v1264 = vadd.f32 %v1260, 1.0
        %v1265 = vpack.c.bf16 %v1261, %v1261
        %v1266 = vpack.c.bf16 %v1262, %v1262
        %v1267 = vpack.c.bf16 %v1263, %v1263
        %v1268 = vpack.c.bf16 %v1264, %v1264
        %v1269 = vunpack.c.l.bf16 %v1077
        %v1270 = vunpack.c.l.bf16 %v1078
        %v1271 = vunpack.c.l.bf16 %v1079
        %v1272 = vunpack.c.l.bf16 %v1080
        %v1273 = vunpack.c.l.bf16 %v1265
        %v1274 = vunpack.c.l.bf16 %v1266
        %v1275 = vunpack.c.l.bf16 %v1267
        %v1276 = vunpack.c.l.bf16 %v1268
        %v1277 = vmul.f32 %v1269, %v1273
        %v1278 = vmul.f32 %v1270, %v1274
        %v1279 = vmul.f32 %v1271, %v1275
        %v1280 = vmul.f32 %v1272, %v1276
        %v1281 = vpack.c.bf16 %v1278, %v1277
        %v1282 = vpack.c.bf16 %v1280, %v1279
        %v1283 = vld [vmem:[#allocation4] sm:$0xf]
        %v1284 = vld [vmem:[#allocation4 + $0x4] sm:$0xf]
        %v1285 = vld [vmem:[#allocation4 + $0x8] sm:$0xf]
        %v1286 = vld [vmem:[#allocation4 + $0xc] sm:$0xf]
        %v1287 = vld [vmem:[#allocation4 + $0x10] sm:$0xf]
        %v1288 = vld [vmem:[#allocation4 + $0x14] sm:$0xf]
        %v1289 = vld [vmem:[#allocation4 + $0x18] sm:$0xf]
        %v1290 = vld [vmem:[#allocation4 + $0x1c] sm:$0xf]
        %v1291 = vld [vmem:[#allocation4 + $0x20] sm:$0xf]
        %v1292 = vld [vmem:[#allocation4 + $0x24] sm:$0xf]
        %v1293 = vld [vmem:[#allocation4 + $0x28] sm:$0xf]
        %v1294 = vld [vmem:[#allocation4 + $0x2c] sm:$0xf]
        %v1295 = vld [vmem:[#allocation4 + $0x30] sm:$0xf]
        %v1296 = vld [vmem:[#allocation4 + $0x34] sm:$0xf]
        %v1297 = vld [vmem:[#allocation4 + $0x38] sm:$0xf]
        %v1298 = vld [vmem:[#allocation4 + $0x3c] sm:$0xf]
        %v1299 = vld [vmem:[%s8] sm:$0x1]
        %v1300 = vperm.slane %v1299, 0
        %v1317 = vunpack.c.l.b16 %v1283
        %v1318 = vunpack.c.l.b16 %v1284
        %v1319 = vunpack.c.l.b16 %v1285
        %v1320 = vunpack.c.l.b16 %v1286
        %v1321 = vunpack.c.l.b16 %v1287
        %v1322 = vunpack.c.l.b16 %v1288
        %v1323 = vunpack.c.l.b16 %v1289
        %v1324 = vunpack.c.l.b16 %v1290
        %v1325 = vunpack.c.l.b16 %v1291
        %v1326 = vunpack.c.l.b16 %v1292
        %v1327 = vunpack.c.l.b16 %v1293
        %v1328 = vunpack.c.l.b16 %v1294
        %v1329 = vunpack.c.l.b16 %v1295
        %v1330 = vunpack.c.l.b16 %v1296
        %v1331 = vunpack.c.l.b16 %v1297
        %v1332 = vunpack.c.l.b16 %v1298
        %v1333 = vpack.c.b16 %v1318, %v1317
        %v1334 = vpack.c.b16 %v1320, %v1319
        %v1335 = vpack.c.b16 %v1322, %v1321
        %v1336 = vpack.c.b16 %v1324, %v1323
        %v1337 = vpack.c.b16 %v1326, %v1325
        %v1338 = vpack.c.b16 %v1328, %v1327
        %v1339 = vpack.c.b16 %v1330, %v1329
        %v1340 = vpack.c.b16 %v1332, %v1331
        %1349 = vmatpush.bf16.msra.mxu0 %v1340
        %1350 = vmatpush.bf16.msra.mxu0 %v1339
        %1351 = vmatpush.bf16.msra.mxu0 %v1338
        %1352 = vmatpush.bf16.msra.mxu0 %v1337
        %1353 = vmatpush.bf16.msra.mxu0 %v1336
        %1354 = vmatpush.bf16.msra.mxu0 %v1335
        %1355 = vmatpush.bf16.msra.mxu0 %v1334
        %1356 = vmatpush.bf16.msra.mxu0 %v1333
        %1357 = vmatmul.bf16.gmra.mxu0 %v1281
        %v1358 = vpop.f32.mrf.mxu0
        %v1359 = vadd.f32 %v1300, %v1358
        %v1360 = vpop.f32.mrf.mxu0
        %v1361 = vadd.f32 %v1300, %v1360
        %1362 = vmatmul.bf16.gmra.mxu0 %v1282
        %v1363 = vpop.f32.mrf.mxu0
        %v1364 = vadd.f32 %v1300, %v1363
        %v1365 = vpop.f32.mrf.mxu0
        %v1366 = vadd.f32 %v1300, %v1365
        %1367 = vdwg.mxu0
        %vm1372 = vcmask 1040384
        %v1373 = vrot.slane %v1359, 7
        %v1374 = vrot.slane %v1361, 7
        %v1375 = vsel %vm1372, %v1373, %v1374
        %v1376 = vrot.slane %v1364, 7
        %v1377 = vsel %vm1372, %v1374, %v1376
        %v1378 = vrot.slane %v1366, 7
        %v1379 = vsel %vm1372, %v1376, %v1378
        %v1384 = vadd.f32 %v599, %v1373
        %v1385 = vadd.f32 %v600, %v1375
        %v1386 = vadd.f32 %v601, %v1377
        %v1387 = vadd.f32 %v602, %v1379
        %v1388 = vmul.f32 %v1384, %v623
        %v1389 = vmul.f32 %v1385, %v624
        %v1390 = vmul.f32 %v1386, %v625
        %v1391 = vmul.f32 %v1387, %v626
        %v1392 = vld [vmem:[%s3 + $0x1] sm:$0x1]
        %v1393 = vld [vmem:[%s4 + $0x1] sm:$0x1]
        %vm1394 = vcmask 1047553
        %v1395 = vsel %vm1394, %v1388, 0.0
        %1396 = vadd.xlane.f32.xlu0 %v1395
        %v1397 = vpop.xlane.xlu0 %1396
        %1398 = vadd.xlane.f32.xlu0 %v1389
        %v1399 = vpop.xlane.xlu0 %1398
        %1400 = vadd.xlane.f32.xlu0 %v1390
        %v1401 = vpop.xlane.xlu0 %1400
        %vm1402 = vcmask 1046528
        %v1403 = vsel %vm1402, %v1391, 0.0
        %1404 = vadd.xlane.f32.xlu0 %v1403
        %v1405 = vpop.xlane.xlu0 %1404
        %v1406 = vmul.f32 %v1397, 0.020833334
        %v1407 = vmul.f32 %v1399, 0.020833334
        %v1408 = vmul.f32 %v1401, 0.020833334
        %v1409 = vmul.f32 %v1405, 0.020833334
        %v1410 = vsub.f32 %v1388, %v1406
        %v1411 = vsub.f32 %v1389, %v1407
        %v1412 = vsub.f32 %v1390, %v1408
        %v1413 = vsub.f32 %v1391, %v1409
        %v1414 = vmul.f32 %v1410, %v598
        %v1415 = vmul.f32 %v1411, %v598
        %v1416 = vmul.f32 %v1412, %v598
        %v1417 = vmul.f32 %v1413, %v598
        %v1418 = vmul.f32 %v1414, %v1414
        %v1419 = vmul.f32 %v1415, %v1415
        %v1420 = vmul.f32 %v1416, %v1416
        %v1421 = vmul.f32 %v1417, %v1417
        %v1422 = vsel %vm1394, %v1418, 0.0
        %1423 = vadd.xlane.f32.xlu0 %v1422
        %v1424 = vpop.xlane.xlu0 %1423
        %1425 = vadd.xlane.f32.xlu0 %v1419
        %v1426 = vpop.xlane.xlu0 %1425
        %1427 = vadd.xlane.f32.xlu0 %v1420
        %v1428 = vpop.xlane.xlu0 %1427
        %v1429 = vsel %vm1402, %v1421, 0.0
        %1430 = vadd.xlane.f32.xlu0 %v1429
        %v1431 = vpop.xlane.xlu0 %1430
        %v1432 = vmul.f32 %v1424, 0.020833334
        %v1433 = vmul.f32 %v1426, 0.020833334
        %v1434 = vmul.f32 %v1428, 0.020833334
        %v1435 = vmul.f32 %v1431, 0.020833334
        %v1436 = vadd.f32 %v1432, 1e-05
        %v1437 = vadd.f32 %v1433, 1e-05
        %v1438 = vadd.f32 %v1434, 1e-05
        %v1439 = vadd.f32 %v1435, 1e-05
        %v1440 = vrsqrt.pop %v1436
        %v1441 = vmul.f32 %v1440, %v1436
        %v1442 = vmul.f32 %v1441, %v1440
        %v1443 = vmul.f32 0.5, %v1442
        %v1444 = vsub.f32 1.5, %v1443
        %v1445 = vmul.f32 %v1440, %v1444
        %vm1446 = vweird.f32 %v1436
        %vm1447 = vweird.f32 %v1440
        %vm1448 = vmor %vm1446, %vm1447
        %v1449 = vsel %vm1448, %v1440, %v1445
        %v1450 = vrsqrt.pop %v1437
        %v1451 = vmul.f32 %v1450, %v1437
        %v1452 = vmul.f32 %v1451, %v1450
        %v1453 = vmul.f32 0.5, %v1452
        %v1454 = vsub.f32 1.5, %v1453
        %v1455 = vmul.f32 %v1450, %v1454
        %vm1456 = vweird.f32 %v1437
        %vm1457 = vweird.f32 %v1450
        %vm1458 = vmor %vm1456, %vm1457
        %v1459 = vsel %vm1458, %v1450, %v1455
        %v1460 = vrsqrt.pop %v1438
        %v1461 = vmul.f32 %v1460, %v1438
        %v1462 = vmul.f32 %v1461, %v1460
        %v1463 = vmul.f32 0.5, %v1462
        %v1464 = vsub.f32 1.5, %v1463
        %v1465 = vmul.f32 %v1460, %v1464
        %vm1466 = vweird.f32 %v1438
        %vm1467 = vweird.f32 %v1460
        %vm1468 = vmor %vm1466, %vm1467
        %v1469 = vsel %vm1468, %v1460, %v1465
        %v1470 = vrsqrt.pop %v1439
        %v1471 = vmul.f32 %v1470, %v1439
        %v1472 = vmul.f32 %v1471, %v1470
        %v1473 = vmul.f32 0.5, %v1472
        %v1474 = vsub.f32 1.5, %v1473
        %v1475 = vmul.f32 %v1470, %v1474
        %vm1476 = vweird.f32 %v1439
        %vm1477 = vweird.f32 %v1470
        %vm1478 = vmor %vm1476, %vm1477
        %v1479 = vsel %vm1478, %v1470, %v1475
        %v1480 = vmul.f32 %v1414, %v1449
        %v1481 = vmul.f32 %v1415, %v1459
        %v1482 = vmul.f32 %v1416, %v1469
        %v1483 = vmul.f32 %v1417, %v1479
        %v1484 = vperm.slane %v1392, 0
        %v1485 = vmul.f32 %v1480, %v1484
        %v1486 = vmul.f32 %v1481, %v1484
        %v1487 = vmul.f32 %v1482, %v1484
        %v1488 = vmul.f32 %v1483, %v1484
        %v1489 = vperm.slane %v1393, 0
        %v1490 = vadd.f32 %v1485, %v1489
        %v1491 = vadd.f32 %v1486, %v1489
        %v1492 = vadd.f32 %v1487, %v1489
        %v1493 = vadd.f32 %v1488, %v1489
        %v1494 = vmul.f32 %v1490, %v655
        %v1495 = vmul.f32 %v1491, %v656
        %v1496 = vmul.f32 %v1492, %v657
        %v1497 = vmul.f32 %v1493, %v658
        %v1498 = vpack.c.bf16 %v1494, %v1494
        %v1499 = vpack.c.bf16 %v1495, %v1495
        %v1500 = vpack.c.bf16 %v1496, %v1496
        %v1501 = vpack.c.bf16 %v1497, %v1497
        %v1502 = vld [vmem:[%s6 + $0x1] sm:$0x1]
        %v1503 = vperm.slane %v1502, 0
        %v1504 = vadd.f32 %v1503, 0.0
        %s1505 = scalar_lea.vmem [#allocation2], 192
        %v1506 = vld [vmem:[%s1505] sm:$0xf]
        %v1507 = vld [vmem:[%s1505 + $0x4] sm:$0xf]
        %v1508 = vld [vmem:[%s1505 + $0x8] sm:$0xf]
        %v1509 = vld [vmem:[%s1505 + $0xc] sm:$0xf]
        %v1510 = vld [vmem:[%s1505 + $0x10] sm:$0xf]
        %v1511 = vld [vmem:[%s1505 + $0x14] sm:$0xf]
        %v1512 = vld [vmem:[%s1505 + $0x18] sm:$0xf]
        %v1513 = vld [vmem:[%s1505 + $0x1c] sm:$0xf]
        %v1514 = vld [vmem:[%s1505 + $0x20] sm:$0xf]
        %v1515 = vld [vmem:[%s1505 + $0x24] sm:$0xf]
        %v1516 = vld [vmem:[%s1505 + $0x28] sm:$0xf]
        %v1517 = vld [vmem:[%s1505 + $0x2c] sm:$0xf]
        %v1518 = vld [vmem:[%s1505 + $0x30] sm:$0xf]
        %v1519 = vld [vmem:[%s1505 + $0x34] sm:$0xf]
        %v1520 = vld [vmem:[%s1505 + $0x38] sm:$0xf]
        %v1521 = vld [vmem:[%s1505 + $0x3c] sm:$0xf]
        %v1526 = vunpack.c.l.b16 %v1498
        %v1527 = vunpack.c.l.b16 %v1499
        %v1528 = vunpack.c.l.b16 %v1500
        %v1529 = vunpack.c.l.b16 %v1501
        %v1530 = vpack.c.b16 %v1527, %v1526
        %v1531 = vpack.c.b16 %v1529, %v1528
        %v1533 = vshrl.u32 %v1530, 16
        %v1535 = vshll.u32 %v1530, 16
        %v1537 = vrot.slane %v1535, 1
        %v1538 = vor.u32 %v1533, %v1537
        %v1540 = vshll.u32 %v1531, 16
        %v1542 = vrot.slane %v1540, 1
        %v1543 = vsel %vm882, %v1538, %v1542
        %v1544 = vshrl.u32 %v1531, 16
        %v1546 = vor.u32 %v1544, %v1542
        %v1565 = vunpack.c.l.b16 %v1506
        %v1566 = vunpack.c.l.b16 %v1507
        %v1567 = vunpack.c.l.b16 %v1508
        %v1568 = vunpack.c.l.b16 %v1509
        %v1569 = vunpack.c.l.b16 %v1510
        %v1570 = vunpack.c.l.b16 %v1511
        %v1571 = vunpack.c.l.b16 %v1512
        %v1572 = vunpack.c.l.b16 %v1513
        %v1573 = vunpack.c.l.b16 %v1514
        %v1574 = vunpack.c.l.b16 %v1515
        %v1575 = vunpack.c.l.b16 %v1516
        %v1576 = vunpack.c.l.b16 %v1517
        %v1577 = vunpack.c.l.b16 %v1518
        %v1578 = vunpack.c.l.b16 %v1519
        %v1579 = vunpack.c.l.b16 %v1520
        %v1580 = vunpack.c.l.b16 %v1521
        %v1581 = vpack.c.b16 %v1566, %v1565
        %v1582 = vpack.c.b16 %v1568, %v1567
        %v1583 = vpack.c.b16 %v1570, %v1569
        %v1584 = vpack.c.b16 %v1572, %v1571
        %v1585 = vpack.c.b16 %v1574, %v1573
        %v1586 = vpack.c.b16 %v1576, %v1575
        %v1587 = vpack.c.b16 %v1578, %v1577
        %v1588 = vpack.c.b16 %v1580, %v1579
        %1597 = vmatpush.bf16.msra.mxu0 %v1588
        %1598 = vmatpush.bf16.msra.mxu0 %v1587
        %1599 = vmatpush.bf16.msra.mxu0 %v1586
        %1600 = vmatpush.bf16.msra.mxu0 %v1585
        %1601 = vmatpush.bf16.msra.mxu0 %v1584
        %1602 = vmatpush.bf16.msra.mxu0 %v1583
        %1603 = vmatpush.bf16.msra.mxu0 %v1582
        %1604 = vmatpush.bf16.msra.mxu0 %v1581
        %1605 = vmatmul.bf16.gmra.mxu0 %v1543
        %v1606 = vpop.f32.mrf.mxu0
        %v1607 = vadd.f32 0.0, %v1606
        %v1608 = vpop.f32.mrf.mxu0
        %v1609 = vadd.f32 0.0, %v1608
        %1610 = vmatmul.bf16.gmra.mxu0 %v1546
        %v1611 = vpop.f32.mrf.mxu0
        %v1612 = vadd.f32 0.0, %v1611
        %v1613 = vpop.f32.mrf.mxu0
        %v1614 = vadd.f32 0.0, %v1613
        %1615 = vdwg.mxu0
        %v1616 = vadd.f32 %v1504, %v1607
        %v1617 = vadd.f32 %v1504, %v1609
        %v1618 = vadd.f32 %v1504, %v1612
        %v1619 = vadd.f32 %v1504, %v1614
        %s1620 = scalar_lea.vmem [#allocation2], 256
        %v1621 = vld [vmem:[%s1620] sm:$0xf]
        %v1622 = vld [vmem:[%s1620 + $0x4] sm:$0xf]
        %v1623 = vld [vmem:[%s1620 + $0x8] sm:$0xf]
        %v1624 = vld [vmem:[%s1620 + $0xc] sm:$0xf]
        %v1625 = vld [vmem:[%s1620 + $0x10] sm:$0xf]
        %v1626 = vld [vmem:[%s1620 + $0x14] sm:$0xf]
        %v1627 = vld [vmem:[%s1620 + $0x18] sm:$0xf]
        %v1628 = vld [vmem:[%s1620 + $0x1c] sm:$0xf]
        %v1629 = vld [vmem:[%s1620 + $0x20] sm:$0xf]
        %v1630 = vld [vmem:[%s1620 + $0x24] sm:$0xf]
        %v1631 = vld [vmem:[%s1620 + $0x28] sm:$0xf]
        %v1632 = vld [vmem:[%s1620 + $0x2c] sm:$0xf]
        %v1633 = vld [vmem:[%s1620 + $0x30] sm:$0xf]
        %v1634 = vld [vmem:[%s1620 + $0x34] sm:$0xf]
        %v1635 = vld [vmem:[%s1620 + $0x38] sm:$0xf]
        %v1636 = vld [vmem:[%s1620 + $0x3c] sm:$0xf]
        %v1637 = vrot.slane %v1530, 1
        %v1638 = vrot.slane %v1531, 1
        %v1639 = vsel %vm988, %v1637, %v1638
        %v1658 = vunpack.c.l.b16 %v1621
        %v1659 = vunpack.c.l.b16 %v1622
        %v1660 = vunpack.c.l.b16 %v1623
        %v1661 = vunpack.c.l.b16 %v1624
        %v1662 = vunpack.c.l.b16 %v1625
        %v1663 = vunpack.c.l.b16 %v1626
        %v1664 = vunpack.c.l.b16 %v1627
        %v1665 = vunpack.c.l.b16 %v1628
        %v1666 = vunpack.c.l.b16 %v1629
        %v1667 = vunpack.c.l.b16 %v1630
        %v1668 = vunpack.c.l.b16 %v1631
        %v1669 = vunpack.c.l.b16 %v1632
        %v1670 = vunpack.c.l.b16 %v1633
        %v1671 = vunpack.c.l.b16 %v1634
        %v1672 = vunpack.c.l.b16 %v1635
        %v1673 = vunpack.c.l.b16 %v1636
        %v1674 = vpack.c.b16 %v1659, %v1658
        %v1675 = vpack.c.b16 %v1661, %v1660
        %v1676 = vpack.c.b16 %v1663, %v1662
        %v1677 = vpack.c.b16 %v1665, %v1664
        %v1678 = vpack.c.b16 %v1667, %v1666
        %v1679 = vpack.c.b16 %v1669, %v1668
        %v1680 = vpack.c.b16 %v1671, %v1670
        %v1681 = vpack.c.b16 %v1673, %v1672
        %1690 = vmatpush.bf16.msra.mxu0 %v1681
        %1691 = vmatpush.bf16.msra.mxu0 %v1680
        %1692 = vmatpush.bf16.msra.mxu0 %v1679
        %1693 = vmatpush.bf16.msra.mxu0 %v1678
        %1694 = vmatpush.bf16.msra.mxu0 %v1677
        %1695 = vmatpush.bf16.msra.mxu0 %v1676
        %1696 = vmatpush.bf16.msra.mxu0 %v1675
        %1697 = vmatpush.bf16.msra.mxu0 %v1674
        %1698 = vmatmul.bf16.gmra.mxu0 %v1639
        %v1699 = vpop.f32.mrf.mxu0
        %v1700 = vadd.f32 0.0, %v1699
        %v1701 = vpop.f32.mrf.mxu0
        %v1702 = vadd.f32 0.0, %v1701
        %1703 = vmatmul.bf16.gmra.mxu0 %v1638
        %v1704 = vpop.f32.mrf.mxu0
        %v1705 = vadd.f32 0.0, %v1704
        %v1706 = vpop.f32.mrf.mxu0
        %v1707 = vadd.f32 0.0, %v1706
        %1708 = vdwg.mxu0
        %v1709 = vadd.f32 %v1616, %v1700
        %v1710 = vadd.f32 %v1617, %v1702
        %v1711 = vadd.f32 %v1618, %v1705
        %v1712 = vadd.f32 %v1619, %v1707
        %s1713 = scalar_lea.vmem [#allocation2], 320
        %v1714 = vld [vmem:[%s1713] sm:$0xf]
        %v1715 = vld [vmem:[%s1713 + $0x4] sm:$0xf]
        %v1716 = vld [vmem:[%s1713 + $0x8] sm:$0xf]
        %v1717 = vld [vmem:[%s1713 + $0xc] sm:$0xf]
        %v1718 = vld [vmem:[%s1713 + $0x10] sm:$0xf]
        %v1719 = vld [vmem:[%s1713 + $0x14] sm:$0xf]
        %v1720 = vld [vmem:[%s1713 + $0x18] sm:$0xf]
        %v1721 = vld [vmem:[%s1713 + $0x1c] sm:$0xf]
        %v1722 = vld [vmem:[%s1713 + $0x20] sm:$0xf]
        %v1723 = vld [vmem:[%s1713 + $0x24] sm:$0xf]
        %v1724 = vld [vmem:[%s1713 + $0x28] sm:$0xf]
        %v1725 = vld [vmem:[%s1713 + $0x2c] sm:$0xf]
        %v1726 = vld [vmem:[%s1713 + $0x30] sm:$0xf]
        %v1727 = vld [vmem:[%s1713 + $0x34] sm:$0xf]
        %v1728 = vld [vmem:[%s1713 + $0x38] sm:$0xf]
        %v1729 = vld [vmem:[%s1713 + $0x3c] sm:$0xf]
        %vm1730 = vsmask.f32 6400
        %v1731 = vrot.slane %v1533, 1
        %v1732 = vrot.slane %v1535, 2
        %v1733 = vor.u32 %v1731, %v1732
        %v1734 = vrot.slane %v1544, 1
        %v1735 = vrot.slane %v1540, 2
        %v1736 = vor.u32 %v1734, %v1735
        %v1737 = vsel %vm1730, %v1733, %v1736
        %v1756 = vunpack.c.l.b16 %v1714
        %v1757 = vunpack.c.l.b16 %v1715
        %v1758 = vunpack.c.l.b16 %v1716
        %v1759 = vunpack.c.l.b16 %v1717
        %v1760 = vunpack.c.l.b16 %v1718
        %v1761 = vunpack.c.l.b16 %v1719
        %v1762 = vunpack.c.l.b16 %v1720
        %v1763 = vunpack.c.l.b16 %v1721
        %v1764 = vunpack.c.l.b16 %v1722
        %v1765 = vunpack.c.l.b16 %v1723
        %v1766 = vunpack.c.l.b16 %v1724
        %v1767 = vunpack.c.l.b16 %v1725
        %v1768 = vunpack.c.l.b16 %v1726
        %v1769 = vunpack.c.l.b16 %v1727
        %v1770 = vunpack.c.l.b16 %v1728
        %v1771 = vunpack.c.l.b16 %v1729
        %v1772 = vpack.c.b16 %v1757, %v1756
        %v1773 = vpack.c.b16 %v1759, %v1758
        %v1774 = vpack.c.b16 %v1761, %v1760
        %v1775 = vpack.c.b16 %v1763, %v1762
        %v1776 = vpack.c.b16 %v1765, %v1764
        %v1777 = vpack.c.b16 %v1767, %v1766
        %v1778 = vpack.c.b16 %v1769, %v1768
        %v1779 = vpack.c.b16 %v1771, %v1770
        %1788 = vmatpush.bf16.msra.mxu0 %v1779
        %1789 = vmatpush.bf16.msra.mxu0 %v1778
        %1790 = vmatpush.bf16.msra.mxu0 %v1777
        %1791 = vmatpush.bf16.msra.mxu0 %v1776
        %1792 = vmatpush.bf16.msra.mxu0 %v1775
        %1793 = vmatpush.bf16.msra.mxu0 %v1774
        %1794 = vmatpush.bf16.msra.mxu0 %v1773
        %1795 = vmatpush.bf16.msra.mxu0 %v1772
        %1796 = vmatmul.bf16.gmra.mxu0 %v1737
        %v1797 = vpop.f32.mrf.mxu0
        %v1798 = vadd.f32 0.0, %v1797
        %v1799 = vpop.f32.mrf.mxu0
        %v1800 = vadd.f32 0.0, %v1799
        %1801 = vmatmul.bf16.gmra.mxu0 %v1736
        %v1802 = vpop.f32.mrf.mxu0
        %v1803 = vadd.f32 0.0, %v1802
        %v1804 = vpop.f32.mrf.mxu0
        %v1805 = vadd.f32 0.0, %v1804
        %1806 = vdwg.mxu0
        %v1807 = vadd.f32 %v1709, %v1798
        %v1808 = vadd.f32 %v1710, %v1800
        %v1809 = vadd.f32 %v1711, %v1803
        %v1810 = vadd.f32 %v1712, %v1805
        %v1811 = vpack.c.bf16 %v1807, %v1807
        %v1812 = vpack.c.bf16 %v1808, %v1808
        %v1813 = vpack.c.bf16 %v1809, %v1809
        %v1814 = vpack.c.bf16 %v1810, %v1810
        %v1815 = vunpack.c.l.bf16 %v1811
        %v1816 = vunpack.c.l.bf16 %v1812
        %v1817 = vunpack.c.l.bf16 %v1813
        %v1818 = vunpack.c.l.bf16 %v1814
        %v1819 = vmul.f32 %v1815, 0.5
        %v1820 = vmul.f32 %v1816, 0.5
        %v1821 = vmul.f32 %v1817, 0.5
        %v1822 = vmul.f32 %v1818, 0.5
        %v1823 = vpack.c.bf16 %v1819, %v1819
        %v1824 = vpack.c.bf16 %v1820, %v1820
        %v1825 = vpack.c.bf16 %v1821, %v1821
        %v1826 = vpack.c.bf16 %v1822, %v1822
        %v1827 = vmul.f32 %v1815, 0.70703125
        %v1828 = vmul.f32 %v1816, 0.70703125
        %v1829 = vmul.f32 %v1817, 0.70703125
        %v1830 = vmul.f32 %v1818, 0.70703125
        %v1831 = vpack.c.bf16 %v1827, %v1827
        %v1832 = vpack.c.bf16 %v1828, %v1828
        %v1833 = vpack.c.bf16 %v1829, %v1829
        %v1834 = vpack.c.bf16 %v1830, %v1830
        %v1835 = vunpack.c.l.bf16 %v1831
        %v1836 = vunpack.c.l.bf16 %v1832
        %v1837 = vunpack.c.l.bf16 %v1833
        %v1838 = vunpack.c.l.bf16 %v1834
        %v1839 = vmul.f32 %v1835, %v1835
        %v1840 = vmin.f32 16.0, %v1839
        %v1841 = vmul.f32 %v1840, 2.1237322e-06
        %v1842 = vadd.f32 %v1841, 0.00028619796
        %v1843 = vmul.f32 %v1840, %v1842
        %v1844 = vadd.f32 %v1843, 0.0036580483
        %v1845 = vmul.f32 %v1840, %v1844
        %v1846 = vadd.f32 %v1845, 0.05243302
        %v1847 = vmul.f32 %v1840, %v1846
        %v1848 = vadd.f32 %v1847, 0.18741608
        %v1849 = vmul.f32 %v1840, %v1848
        %v1850 = vadd.f32 %v1849, 1.1283791
        %v1851 = vmul.f32 %v1835, %v1850
        %v1852 = vmul.f32 %v1840, 3.8918573e-05
        %v1853 = vadd.f32 %v1852, 0.001143296
        %v1854 = vmul.f32 %v1840, %v1853
        %v1855 = vadd.f32 %v1854, 0.014752088
        %v1856 = vmul.f32 %v1840, %v1855
        %v1857 = vadd.f32 %v1856, 0.112945676
        %v1858 = vmul.f32 %v1840, %v1857
        %v1859 = vadd.f32 %v1858, 0.4994258
        %v1860 = vmul.f32 %v1840, %v1859
        %v1861 = vadd.f32 %v1860, 1.0
        %v1862 = vrcp.pop %v1861
        %v1863 = vmul.f32 %v1861, %v1862
        %v1864 = vsub.f32 1.0, %v1863
        %v1865 = vmul.f32 %v1862, %v1864
        %v1866 = vadd.f32 %v1862, %v1865
        %vm1867 = vweird.f32 %v1861
        %vm1868 = vweird.f32 %v1862
        %vm1869 = vmor %vm1867, %vm1868
        %v1870 = vsel %vm1869, %v1862, %v1866
        %v1871 = vand.u32 2147483647, %v1861
        %vm1872 = vcmp.eq.f32.partialorder %v1871, 8.507059e+37
        %v1873 = vand.u32 %v1861, 2147483648
        %v1874 = vor.u32 1.1754944e-38, %v1873
        %v1875 = vsel %vm1872, %v1874, %v1870
        %v1876 = vmul.f32 %v1851, %v1875
        %v1877 = vmin.f32 %v1876, 1.0
        %v1878 = vmax.f32 %v1877, -1.0
        %v1879 = vmul.f32 %v1836, %v1836
        %v1880 = vmin.f32 16.0, %v1879
        %v1881 = vmul.f32 %v1880, 2.1237322e-06
        %v1882 = vadd.f32 %v1881, 0.00028619796
        %v1883 = vmul.f32 %v1880, %v1882
        %v1884 = vadd.f32 %v1883, 0.0036580483
        %v1885 = vmul.f32 %v1880, %v1884
        %v1886 = vadd.f32 %v1885, 0.05243302
        %v1887 = vmul.f32 %v1880, %v1886
        %v1888 = vadd.f32 %v1887, 0.18741608
        %v1889 = vmul.f32 %v1880, %v1888
        %v1890 = vadd.f32 %v1889, 1.1283791
        %v1891 = vmul.f32 %v1836, %v1890
        %v1892 = vmul.f32 %v1880, 3.8918573e-05
        %v1893 = vadd.f32 %v1892, 0.001143296
        %v1894 = vmul.f32 %v1880, %v1893
        %v1895 = vadd.f32 %v1894, 0.014752088
        %v1896 = vmul.f32 %v1880, %v1895
        %v1897 = vadd.f32 %v1896, 0.112945676
        %v1898 = vmul.f32 %v1880, %v1897
        %v1899 = vadd.f32 %v1898, 0.4994258
        %v1900 = vmul.f32 %v1880, %v1899
        %v1901 = vadd.f32 %v1900, 1.0
        %v1902 = vrcp.pop %v1901
        %v1903 = vmul.f32 %v1901, %v1902
        %v1904 = vsub.f32 1.0, %v1903
        %v1905 = vmul.f32 %v1902, %v1904
        %v1906 = vadd.f32 %v1902, %v1905
        %vm1907 = vweird.f32 %v1901
        %vm1908 = vweird.f32 %v1902
        %vm1909 = vmor %vm1907, %vm1908
        %v1910 = vsel %vm1909, %v1902, %v1906
        %v1911 = vand.u32 2147483647, %v1901
        %vm1912 = vcmp.eq.f32.partialorder %v1911, 8.507059e+37
        %v1913 = vand.u32 %v1901, 2147483648
        %v1914 = vor.u32 1.1754944e-38, %v1913
        %v1915 = vsel %vm1912, %v1914, %v1910
        %v1916 = vmul.f32 %v1891, %v1915
        %v1917 = vmin.f32 %v1916, 1.0
        %v1918 = vmax.f32 %v1917, -1.0
        %v1919 = vmul.f32 %v1837, %v1837
        %v1920 = vmin.f32 16.0, %v1919
        %v1921 = vmul.f32 %v1920, 2.1237322e-06
        %v1922 = vadd.f32 %v1921, 0.00028619796
        %v1923 = vmul.f32 %v1920, %v1922
        %v1924 = vadd.f32 %v1923, 0.0036580483
        %v1925 = vmul.f32 %v1920, %v1924
        %v1926 = vadd.f32 %v1925, 0.05243302
        %v1927 = vmul.f32 %v1920, %v1926
        %v1928 = vadd.f32 %v1927, 0.18741608
        %v1929 = vmul.f32 %v1920, %v1928
        %v1930 = vadd.f32 %v1929, 1.1283791
        %v1931 = vmul.f32 %v1837, %v1930
        %v1932 = vmul.f32 %v1920, 3.8918573e-05
        %v1933 = vadd.f32 %v1932, 0.001143296
        %v1934 = vmul.f32 %v1920, %v1933
        %v1935 = vadd.f32 %v1934, 0.014752088
        %v1936 = vmul.f32 %v1920, %v1935
        %v1937 = vadd.f32 %v1936, 0.112945676
        %v1938 = vmul.f32 %v1920, %v1937
        %v1939 = vadd.f32 %v1938, 0.4994258
        %v1940 = vmul.f32 %v1920, %v1939
        %v1941 = vadd.f32 %v1940, 1.0
        %v1942 = vrcp.pop %v1941
        %v1943 = vmul.f32 %v1941, %v1942
        %v1944 = vsub.f32 1.0, %v1943
        %v1945 = vmul.f32 %v1942, %v1944
        %v1946 = vadd.f32 %v1942, %v1945
        %vm1947 = vweird.f32 %v1941
        %vm1948 = vweird.f32 %v1942
        %vm1949 = vmor %vm1947, %vm1948
        %v1950 = vsel %vm1949, %v1942, %v1946
        %v1951 = vand.u32 2147483647, %v1941
        %vm1952 = vcmp.eq.f32.partialorder %v1951, 8.507059e+37
        %v1953 = vand.u32 %v1941, 2147483648
        %v1954 = vor.u32 1.1754944e-38, %v1953
        %v1955 = vsel %vm1952, %v1954, %v1950
        %v1956 = vmul.f32 %v1931, %v1955
        %v1957 = vmin.f32 %v1956, 1.0
        %v1958 = vmax.f32 %v1957, -1.0
        %v1959 = vmul.f32 %v1838, %v1838
        %v1960 = vmin.f32 16.0, %v1959
        %v1961 = vmul.f32 %v1960, 2.1237322e-06
        %v1962 = vadd.f32 %v1961, 0.00028619796
        %v1963 = vmul.f32 %v1960, %v1962
        %v1964 = vadd.f32 %v1963, 0.0036580483
        %v1965 = vmul.f32 %v1960, %v1964
        %v1966 = vadd.f32 %v1965, 0.05243302
        %v1967 = vmul.f32 %v1960, %v1966
        %v1968 = vadd.f32 %v1967, 0.18741608
        %v1969 = vmul.f32 %v1960, %v1968
        %v1970 = vadd.f32 %v1969, 1.1283791
        %v1971 = vmul.f32 %v1838, %v1970
        %v1972 = vmul.f32 %v1960, 3.8918573e-05
        %v1973 = vadd.f32 %v1972, 0.001143296
        %v1974 = vmul.f32 %v1960, %v1973
        %v1975 = vadd.f32 %v1974, 0.014752088
        %v1976 = vmul.f32 %v1960, %v1975
        %v1977 = vadd.f32 %v1976, 0.112945676
        %v1978 = vmul.f32 %v1960, %v1977
        %v1979 = vadd.f32 %v1978, 0.4994258
        %v1980 = vmul.f32 %v1960, %v1979
        %v1981 = vadd.f32 %v1980, 1.0
        %v1982 = vrcp.pop %v1981
        %v1983 = vmul.f32 %v1981, %v1982
        %v1984 = vsub.f32 1.0, %v1983
        %v1985 = vmul.f32 %v1982, %v1984
        %v1986 = vadd.f32 %v1982, %v1985
        %vm1987 = vweird.f32 %v1981
        %vm1988 = vweird.f32 %v1982
        %vm1989 = vmor %vm1987, %vm1988
        %v1990 = vsel %vm1989, %v1982, %v1986
        %v1991 = vand.u32 2147483647, %v1981
        %vm1992 = vcmp.eq.f32.partialorder %v1991, 8.507059e+37
        %v1993 = vand.u32 %v1981, 2147483648
        %v1994 = vor.u32 1.1754944e-38, %v1993
        %v1995 = vsel %vm1992, %v1994, %v1990
        %v1996 = vmul.f32 %v1971, %v1995
        %v1997 = vmin.f32 %v1996, 1.0
        %v1998 = vmax.f32 %v1997, -1.0
        %v1999 = vpack.c.bf16 %v1878, %v1878
        %v2000 = vpack.c.bf16 %v1918, %v1918
        %v2001 = vpack.c.bf16 %v1958, %v1958
        %v2002 = vpack.c.bf16 %v1998, %v1998
        %v2003 = vunpack.c.l.bf16 %v1999
        %v2004 = vunpack.c.l.bf16 %v2000
        %v2005 = vunpack.c.l.bf16 %v2001
        %v2006 = vunpack.c.l.bf16 %v2002
        %v2007 = vadd.f32 %v2003, 1.0
        %v2008 = vadd.f32 %v2004, 1.0
        %v2009 = vadd.f32 %v2005, 1.0
        %v2010 = vadd.f32 %v2006, 1.0
        %v2011 = vpack.c.bf16 %v2007, %v2007
        %v2012 = vpack.c.bf16 %v2008, %v2008
        %v2013 = vpack.c.bf16 %v2009, %v2009
        %v2014 = vpack.c.bf16 %v2010, %v2010
        %v2015 = vunpack.c.l.bf16 %v1823
        %v2016 = vunpack.c.l.bf16 %v1824
        %v2017 = vunpack.c.l.bf16 %v1825
        %v2018 = vunpack.c.l.bf16 %v1826
        %v2019 = vunpack.c.l.bf16 %v2011
        %v2020 = vunpack.c.l.bf16 %v2012
        %v2021 = vunpack.c.l.bf16 %v2013
        %v2022 = vunpack.c.l.bf16 %v2014
        %v2023 = vmul.f32 %v2015, %v2019
        %v2024 = vmul.f32 %v2016, %v2020
        %v2025 = vmul.f32 %v2017, %v2021
        %v2026 = vmul.f32 %v2018, %v2022
        %v2027 = vpack.c.bf16 %v2024, %v2023
        %v2028 = vpack.c.bf16 %v2026, %v2025
        %s2029 = scalar_lea.vmem [#allocation4], 64
        %v2030 = vld [vmem:[%s2029] sm:$0xf]
        %v2031 = vld [vmem:[%s2029 + $0x4] sm:$0xf]
        %v2032 = vld [vmem:[%s2029 + $0x8] sm:$0xf]
        %v2033 = vld [vmem:[%s2029 + $0xc] sm:$0xf]
        %v2034 = vld [vmem:[%s2029 + $0x10] sm:$0xf]
        %v2035 = vld [vmem:[%s2029 + $0x14] sm:$0xf]
        %v2036 = vld [vmem:[%s2029 + $0x18] sm:$0xf]
        %v2037 = vld [vmem:[%s2029 + $0x1c] sm:$0xf]
        %v2038 = vld [vmem:[%s2029 + $0x20] sm:$0xf]
        %v2039 = vld [vmem:[%s2029 + $0x24] sm:$0xf]
        %v2040 = vld [vmem:[%s2029 + $0x28] sm:$0xf]
        %v2041 = vld [vmem:[%s2029 + $0x2c] sm:$0xf]
        %v2042 = vld [vmem:[%s2029 + $0x30] sm:$0xf]
        %v2043 = vld [vmem:[%s2029 + $0x34] sm:$0xf]
        %v2044 = vld [vmem:[%s2029 + $0x38] sm:$0xf]
        %v2045 = vld [vmem:[%s2029 + $0x3c] sm:$0xf]
        %v2046 = vld [vmem:[%s8 + $0x1] sm:$0x1]
        %v2047 = vperm.slane %v2046, 0
        %v2064 = vunpack.c.l.b16 %v2030
        %v2065 = vunpack.c.l.b16 %v2031
        %v2066 = vunpack.c.l.b16 %v2032
        %v2067 = vunpack.c.l.b16 %v2033
        %v2068 = vunpack.c.l.b16 %v2034
        %v2069 = vunpack.c.l.b16 %v2035
        %v2070 = vunpack.c.l.b16 %v2036
        %v2071 = vunpack.c.l.b16 %v2037
        %v2072 = vunpack.c.l.b16 %v2038
        %v2073 = vunpack.c.l.b16 %v2039
        %v2074 = vunpack.c.l.b16 %v2040
        %v2075 = vunpack.c.l.b16 %v2041
        %v2076 = vunpack.c.l.b16 %v2042
        %v2077 = vunpack.c.l.b16 %v2043
        %v2078 = vunpack.c.l.b16 %v2044
        %v2079 = vunpack.c.l.b16 %v2045
        %v2080 = vpack.c.b16 %v2065, %v2064
        %v2081 = vpack.c.b16 %v2067, %v2066
        %v2082 = vpack.c.b16 %v2069, %v2068
        %v2083 = vpack.c.b16 %v2071, %v2070
        %v2084 = vpack.c.b16 %v2073, %v2072
        %v2085 = vpack.c.b16 %v2075, %v2074
        %v2086 = vpack.c.b16 %v2077, %v2076
        %v2087 = vpack.c.b16 %v2079, %v2078
        %2096 = vmatpush.bf16.msra.mxu0 %v2087
        %2097 = vmatpush.bf16.msra.mxu0 %v2086
        %2098 = vmatpush.bf16.msra.mxu0 %v2085
        %2099 = vmatpush.bf16.msra.mxu0 %v2084
        %2100 = vmatpush.bf16.msra.mxu0 %v2083
        %2101 = vmatpush.bf16.msra.mxu0 %v2082
        %2102 = vmatpush.bf16.msra.mxu0 %v2081
        %2103 = vmatpush.bf16.msra.mxu0 %v2080
        %2104 = vmatmul.bf16.gmra.mxu0 %v2027
        %v2105 = vpop.f32.mrf.mxu0
        %v2106 = vadd.f32 %v2047, %v2105
        %v2107 = vpop.f32.mrf.mxu0
        %v2108 = vadd.f32 %v2047, %v2107
        %2109 = vmatmul.bf16.gmra.mxu0 %v2028
        %v2110 = vpop.f32.mrf.mxu0
        %v2111 = vadd.f32 %v2047, %v2110
        %v2112 = vpop.f32.mrf.mxu0
        %v2113 = vadd.f32 %v2047, %v2112
        %2114 = vdwg.mxu0
        %vm2119 = vcmask 1041408
        %v2120 = vrot.slane %v2106, 6
        %v2121 = vrot.slane %v2108, 6
        %v2122 = vsel %vm2119, %v2120, %v2121
        %v2123 = vrot.slane %v2111, 6
        %v2124 = vsel %vm2119, %v2121, %v2123
        %v2125 = vrot.slane %v2113, 6
        %v2126 = vsel %vm2119, %v2123, %v2125
        %v2131 = vadd.f32 %v1388, %v2120
        %v2132 = vadd.f32 %v1389, %v2122
        %v2133 = vadd.f32 %v1390, %v2124
        %v2134 = vadd.f32 %v1391, %v2126
        %v2135 = vmul.f32 %v2131, %v623
        %v2136 = vmul.f32 %v2132, %v624
        %v2137 = vmul.f32 %v2133, %v625
        %v2138 = vmul.f32 %v2134, %v626
        %v2139 = vld [vmem:[%s3 + $0x2] sm:$0x1]
        %v2140 = vld [vmem:[%s4 + $0x2] sm:$0x1]
        %vm2141 = vcmask 1047554
        %v2142 = vsel %vm2141, %v2135, 0.0
        %2143 = vadd.xlane.f32.xlu0 %v2142
        %v2144 = vpop.xlane.xlu0 %2143
        %2145 = vadd.xlane.f32.xlu0 %v2136
        %v2146 = vpop.xlane.xlu0 %2145
        %2147 = vadd.xlane.f32.xlu0 %v2137
        %v2148 = vpop.xlane.xlu0 %2147
        %vm2149 = vcmask 1045504
        %v2150 = vsel %vm2149, %v2138, 0.0
        %2151 = vadd.xlane.f32.xlu0 %v2150
        %v2152 = vpop.xlane.xlu0 %2151
        %v2153 = vmul.f32 %v2144, 0.020833334
        %v2154 = vmul.f32 %v2146, 0.020833334
        %v2155 = vmul.f32 %v2148, 0.020833334
        %v2156 = vmul.f32 %v2152, 0.020833334
        %v2157 = vsub.f32 %v2135, %v2153
        %v2158 = vsub.f32 %v2136, %v2154
        %v2159 = vsub.f32 %v2137, %v2155
        %v2160 = vsub.f32 %v2138, %v2156
        %v2161 = vmul.f32 %v2157, %v598
        %v2162 = vmul.f32 %v2158, %v598
        %v2163 = vmul.f32 %v2159, %v598
        %v2164 = vmul.f32 %v2160, %v598
        %v2165 = vmul.f32 %v2161, %v2161
        %v2166 = vmul.f32 %v2162, %v2162
        %v2167 = vmul.f32 %v2163, %v2163
        %v2168 = vmul.f32 %v2164, %v2164
        %v2169 = vsel %vm2141, %v2165, 0.0
        %2170 = vadd.xlane.f32.xlu0 %v2169
        %v2171 = vpop.xlane.xlu0 %2170
        %2172 = vadd.xlane.f32.xlu0 %v2166
        %v2173 = vpop.xlane.xlu0 %2172
        %2174 = vadd.xlane.f32.xlu0 %v2167
        %v2175 = vpop.xlane.xlu0 %2174
        %v2176 = vsel %vm2149, %v2168, 0.0
        %2177 = vadd.xlane.f32.xlu0 %v2176
        %v2178 = vpop.xlane.xlu0 %2177
        %v2179 = vmul.f32 %v2171, 0.020833334
        %v2180 = vmul.f32 %v2173, 0.020833334
        %v2181 = vmul.f32 %v2175, 0.020833334
        %v2182 = vmul.f32 %v2178, 0.020833334
        %v2183 = vadd.f32 %v2179, 1e-05
        %v2184 = vadd.f32 %v2180, 1e-05
        %v2185 = vadd.f32 %v2181, 1e-05
        %v2186 = vadd.f32 %v2182, 1e-05
        %v2187 = vrsqrt.pop %v2183
        %v2188 = vmul.f32 %v2187, %v2183
        %v2189 = vmul.f32 %v2188, %v2187
        %v2190 = vmul.f32 0.5, %v2189
        %v2191 = vsub.f32 1.5, %v2190
        %v2192 = vmul.f32 %v2187, %v2191
        %vm2193 = vweird.f32 %v2183
        %vm2194 = vweird.f32 %v2187
        %vm2195 = vmor %vm2193, %vm2194
        %v2196 = vsel %vm2195, %v2187, %v2192
        %v2197 = vrsqrt.pop %v2184
        %v2198 = vmul.f32 %v2197, %v2184
        %v2199 = vmul.f32 %v2198, %v2197
        %v2200 = vmul.f32 0.5, %v2199
        %v2201 = vsub.f32 1.5, %v2200
        %v2202 = vmul.f32 %v2197, %v2201
        %vm2203 = vweird.f32 %v2184
        %vm2204 = vweird.f32 %v2197
        %vm2205 = vmor %vm2203, %vm2204
        %v2206 = vsel %vm2205, %v2197, %v2202
        %v2207 = vrsqrt.pop %v2185
        %v2208 = vmul.f32 %v2207, %v2185
        %v2209 = vmul.f32 %v2208, %v2207
        %v2210 = vmul.f32 0.5, %v2209
        %v2211 = vsub.f32 1.5, %v2210
        %v2212 = vmul.f32 %v2207, %v2211
        %vm2213 = vweird.f32 %v2185
        %vm2214 = vweird.f32 %v2207
        %vm2215 = vmor %vm2213, %vm2214
        %v2216 = vsel %vm2215, %v2207, %v2212
        %v2217 = vrsqrt.pop %v2186
        %v2218 = vmul.f32 %v2217, %v2186
        %v2219 = vmul.f32 %v2218, %v2217
        %v2220 = vmul.f32 0.5, %v2219
        %v2221 = vsub.f32 1.5, %v2220
        %v2222 = vmul.f32 %v2217, %v2221
        %vm2223 = vweird.f32 %v2186
        %vm2224 = vweird.f32 %v2217
        %vm2225 = vmor %vm2223, %vm2224
        %v2226 = vsel %vm2225, %v2217, %v2222
        %v2227 = vmul.f32 %v2161, %v2196
        %v2228 = vmul.f32 %v2162, %v2206
        %v2229 = vmul.f32 %v2163, %v2216
        %v2230 = vmul.f32 %v2164, %v2226
        %v2231 = vperm.slane %v2139, 0
        %v2232 = vmul.f32 %v2227, %v2231
        %v2233 = vmul.f32 %v2228, %v2231
        %v2234 = vmul.f32 %v2229, %v2231
        %v2235 = vmul.f32 %v2230, %v2231
        %v2236 = vperm.slane %v2140, 0
        %v2237 = vadd.f32 %v2232, %v2236
        %v2238 = vadd.f32 %v2233, %v2236
        %v2239 = vadd.f32 %v2234, %v2236
        %v2240 = vadd.f32 %v2235, %v2236
        %v2241 = vmul.f32 %v2237, %v655
        %v2242 = vmul.f32 %v2238, %v656
        %v2243 = vmul.f32 %v2239, %v657
        %v2244 = vmul.f32 %v2240, %v658
        %v2245 = vpack.c.bf16 %v2241, %v2241
        %v2246 = vpack.c.bf16 %v2242, %v2242
        %v2247 = vpack.c.bf16 %v2243, %v2243
        %v2248 = vpack.c.bf16 %v2244, %v2244
        %v2249 = vld [vmem:[%s6 + $0x2] sm:$0x1]
        %v2250 = vperm.slane %v2249, 0
        %v2251 = vadd.f32 %v2250, 0.0
        %s2252 = scalar_lea.vmem [#allocation2], 384
        %v2253 = vld [vmem:[%s2252] sm:$0xf]
        %v2254 = vld [vmem:[%s2252 + $0x4] sm:$0xf]
        %v2255 = vld [vmem:[%s2252 + $0x8] sm:$0xf]
        %v2256 = vld [vmem:[%s2252 + $0xc] sm:$0xf]
        %v2257 = vld [vmem:[%s2252 + $0x10] sm:$0xf]
        %v2258 = vld [vmem:[%s2252 + $0x14] sm:$0xf]
        %v2259 = vld [vmem:[%s2252 + $0x18] sm:$0xf]
        %v2260 = vld [vmem:[%s2252 + $0x1c] sm:$0xf]
        %v2261 = vld [vmem:[%s2252 + $0x20] sm:$0xf]
        %v2262 = vld [vmem:[%s2252 + $0x24] sm:$0xf]
        %v2263 = vld [vmem:[%s2252 + $0x28] sm:$0xf]
        %v2264 = vld [vmem:[%s2252 + $0x2c] sm:$0xf]
        %v2265 = vld [vmem:[%s2252 + $0x30] sm:$0xf]
        %v2266 = vld [vmem:[%s2252 + $0x34] sm:$0xf]
        %v2267 = vld [vmem:[%s2252 + $0x38] sm:$0xf]
        %v2268 = vld [vmem:[%s2252 + $0x3c] sm:$0xf]
        %v2273 = vunpack.c.l.b16 %v2245
        %v2274 = vunpack.c.l.b16 %v2246
        %v2275 = vunpack.c.l.b16 %v2247
        %v2276 = vunpack.c.l.b16 %v2248
        %v2277 = vpack.c.b16 %v2274, %v2273
        %v2278 = vpack.c.b16 %v2276, %v2275
        %v2279 = vrot.slane %v2277, 1
        %v2280 = vrot.slane %v2278, 1
        %v2281 = vsel %vm988, %v2279, %v2280
        %v2300 = vunpack.c.l.b16 %v2253
        %v2301 = vunpack.c.l.b16 %v2254
        %v2302 = vunpack.c.l.b16 %v2255
        %v2303 = vunpack.c.l.b16 %v2256
        %v2304 = vunpack.c.l.b16 %v2257
        %v2305 = vunpack.c.l.b16 %v2258
        %v2306 = vunpack.c.l.b16 %v2259
        %v2307 = vunpack.c.l.b16 %v2260
        %v2308 = vunpack.c.l.b16 %v2261
        %v2309 = vunpack.c.l.b16 %v2262
        %v2310 = vunpack.c.l.b16 %v2263
        %v2311 = vunpack.c.l.b16 %v2264
        %v2312 = vunpack.c.l.b16 %v2265
        %v2313 = vunpack.c.l.b16 %v2266
        %v2314 = vunpack.c.l.b16 %v2267
        %v2315 = vunpack.c.l.b16 %v2268
        %v2316 = vpack.c.b16 %v2301, %v2300
        %v2317 = vpack.c.b16 %v2303, %v2302
        %v2318 = vpack.c.b16 %v2305, %v2304
        %v2319 = vpack.c.b16 %v2307, %v2306
        %v2320 = vpack.c.b16 %v2309, %v2308
        %v2321 = vpack.c.b16 %v2311, %v2310
        %v2322 = vpack.c.b16 %v2313, %v2312
        %v2323 = vpack.c.b16 %v2315, %v2314
        %2332 = vmatpush.bf16.msra.mxu0 %v2323
        %2333 = vmatpush.bf16.msra.mxu0 %v2322
        %2334 = vmatpush.bf16.msra.mxu0 %v2321
        %2335 = vmatpush.bf16.msra.mxu0 %v2320
        %2336 = vmatpush.bf16.msra.mxu0 %v2319
        %2337 = vmatpush.bf16.msra.mxu0 %v2318
        %2338 = vmatpush.bf16.msra.mxu0 %v2317
        %2339 = vmatpush.bf16.msra.mxu0 %v2316
        %2340 = vmatmul.bf16.gmra.mxu0 %v2281
        %v2341 = vpop.f32.mrf.mxu0
        %v2342 = vadd.f32 0.0, %v2341
        %v2343 = vpop.f32.mrf.mxu0
        %v2344 = vadd.f32 0.0, %v2343
        %2345 = vmatmul.bf16.gmra.mxu0 %v2280
        %v2346 = vpop.f32.mrf.mxu0
        %v2347 = vadd.f32 0.0, %v2346
        %v2348 = vpop.f32.mrf.mxu0
        %2349 = vdwg.mxu0
        %v2350 = vadd.f32 %v2251, %v2342
        %v2351 = vadd.f32 %v2251, %v2344
        %v2352 = vadd.f32 %v2251, %v2347
        %s2353 = scalar_lea.vmem [#allocation2], 448
        %v2354 = vld [vmem:[%s2353] sm:$0xf]
        %v2355 = vld [vmem:[%s2353 + $0x4] sm:$0xf]
        %v2356 = vld [vmem:[%s2353 + $0x8] sm:$0xf]
        %v2357 = vld [vmem:[%s2353 + $0xc] sm:$0xf]
        %v2358 = vld [vmem:[%s2353 + $0x10] sm:$0xf]
        %v2359 = vld [vmem:[%s2353 + $0x14] sm:$0xf]
        %v2360 = vld [vmem:[%s2353 + $0x18] sm:$0xf]
        %v2361 = vld [vmem:[%s2353 + $0x1c] sm:$0xf]
        %v2362 = vld [vmem:[%s2353 + $0x20] sm:$0xf]
        %v2363 = vld [vmem:[%s2353 + $0x24] sm:$0xf]
        %v2364 = vld [vmem:[%s2353 + $0x28] sm:$0xf]
        %v2365 = vld [vmem:[%s2353 + $0x2c] sm:$0xf]
        %v2366 = vld [vmem:[%s2353 + $0x30] sm:$0xf]
        %v2367 = vld [vmem:[%s2353 + $0x34] sm:$0xf]
        %v2368 = vld [vmem:[%s2353 + $0x38] sm:$0xf]
        %v2369 = vld [vmem:[%s2353 + $0x3c] sm:$0xf]
        %vm2370 = vcmask 1045504
        %v2371 = vrot.slane %v2277, 2
        %v2372 = vrot.slane %v2278, 2
        %v2373 = vsel %vm2370, %v2371, %v2372
        %v2392 = vunpack.c.l.b16 %v2354
        %v2393 = vunpack.c.l.b16 %v2355
        %v2394 = vunpack.c.l.b16 %v2356
        %v2395 = vunpack.c.l.b16 %v2357
        %v2396 = vunpack.c.l.b16 %v2358
        %v2397 = vunpack.c.l.b16 %v2359
        %v2398 = vunpack.c.l.b16 %v2360
        %v2399 = vunpack.c.l.b16 %v2361
        %v2400 = vunpack.c.l.b16 %v2362
        %v2401 = vunpack.c.l.b16 %v2363
        %v2402 = vunpack.c.l.b16 %v2364
        %v2403 = vunpack.c.l.b16 %v2365
        %v2404 = vunpack.c.l.b16 %v2366
        %v2405 = vunpack.c.l.b16 %v2367
        %v2406 = vunpack.c.l.b16 %v2368
        %v2407 = vunpack.c.l.b16 %v2369
        %v2408 = vpack.c.b16 %v2393, %v2392
        %v2409 = vpack.c.b16 %v2395, %v2394
        %v2410 = vpack.c.b16 %v2397, %v2396
        %v2411 = vpack.c.b16 %v2399, %v2398
        %v2412 = vpack.c.b16 %v2401, %v2400
        %v2413 = vpack.c.b16 %v2403, %v2402
        %v2414 = vpack.c.b16 %v2405, %v2404
        %v2415 = vpack.c.b16 %v2407, %v2406
        %2424 = vmatpush.bf16.msra.mxu0 %v2415
        %2425 = vmatpush.bf16.msra.mxu0 %v2414
        %2426 = vmatpush.bf16.msra.mxu0 %v2413
        %2427 = vmatpush.bf16.msra.mxu0 %v2412
        %2428 = vmatpush.bf16.msra.mxu0 %v2411
        %2429 = vmatpush.bf16.msra.mxu0 %v2410
        %2430 = vmatpush.bf16.msra.mxu0 %v2409
        %2431 = vmatpush.bf16.msra.mxu0 %v2408
        %2432 = vmatmul.bf16.gmra.mxu0 %v2373
        %v2433 = vpop.f32.mrf.mxu0
        %v2434 = vadd.f32 0.0, %v2433
        %v2435 = vpop.f32.mrf.mxu0
        %v2436 = vadd.f32 0.0, %v2435
        %2437 = vmatmul.bf16.gmra.mxu0 %v2372
        %v2438 = vpop.f32.mrf.mxu0
        %v2439 = vadd.f32 0.0, %v2438
        %v2440 = vpop.f32.mrf.mxu0
        %2441 = vdwg.mxu0
        %v2442 = vadd.f32 %v2350, %v2434
        %v2443 = vadd.f32 %v2351, %v2436
        %v2444 = vadd.f32 %v2352, %v2439
        %s2445 = scalar_lea.vmem [#allocation2], 512
        %v2446 = vld [vmem:[%s2445] sm:$0xf]
        %v2447 = vld [vmem:[%s2445 + $0x4] sm:$0xf]
        %v2448 = vld [vmem:[%s2445 + $0x8] sm:$0xf]
        %v2449 = vld [vmem:[%s2445 + $0xc] sm:$0xf]
        %v2450 = vld [vmem:[%s2445 + $0x10] sm:$0xf]
        %v2451 = vld [vmem:[%s2445 + $0x14] sm:$0xf]
        %v2452 = vld [vmem:[%s2445 + $0x18] sm:$0xf]
        %v2453 = vld [vmem:[%s2445 + $0x1c] sm:$0xf]
        %v2454 = vld [vmem:[%s2445 + $0x20] sm:$0xf]
        %v2455 = vld [vmem:[%s2445 + $0x24] sm:$0xf]
        %v2456 = vld [vmem:[%s2445 + $0x28] sm:$0xf]
        %v2457 = vld [vmem:[%s2445 + $0x2c] sm:$0xf]
        %v2458 = vld [vmem:[%s2445 + $0x30] sm:$0xf]
        %v2459 = vld [vmem:[%s2445 + $0x34] sm:$0xf]
        %v2460 = vld [vmem:[%s2445 + $0x38] sm:$0xf]
        %v2461 = vld [vmem:[%s2445 + $0x3c] sm:$0xf]
        %vm2462 = vcmask 1044480
        %v2463 = vrot.slane %v2277, 3
        %v2464 = vrot.slane %v2278, 3
        %v2465 = vsel %vm2462, %v2463, %v2464
        %v2484 = vunpack.c.l.b16 %v2446
        %v2485 = vunpack.c.l.b16 %v2447
        %v2486 = vunpack.c.l.b16 %v2448
        %v2487 = vunpack.c.l.b16 %v2449
        %v2488 = vunpack.c.l.b16 %v2450
        %v2489 = vunpack.c.l.b16 %v2451
        %v2490 = vunpack.c.l.b16 %v2452
        %v2491 = vunpack.c.l.b16 %v2453
        %v2492 = vunpack.c.l.b16 %v2454
        %v2493 = vunpack.c.l.b16 %v2455
        %v2494 = vunpack.c.l.b16 %v2456
        %v2495 = vunpack.c.l.b16 %v2457
        %v2496 = vunpack.c.l.b16 %v2458
        %v2497 = vunpack.c.l.b16 %v2459
        %v2498 = vunpack.c.l.b16 %v2460
        %v2499 = vunpack.c.l.b16 %v2461
        %v2500 = vpack.c.b16 %v2485, %v2484
        %v2501 = vpack.c.b16 %v2487, %v2486
        %v2502 = vpack.c.b16 %v2489, %v2488
        %v2503 = vpack.c.b16 %v2491, %v2490
        %v2504 = vpack.c.b16 %v2493, %v2492
        %v2505 = vpack.c.b16 %v2495, %v2494
        %v2506 = vpack.c.b16 %v2497, %v2496
        %v2507 = vpack.c.b16 %v2499, %v2498
        %2516 = vmatpush.bf16.msra.mxu0 %v2507
        %2517 = vmatpush.bf16.msra.mxu0 %v2506
        %2518 = vmatpush.bf16.msra.mxu0 %v2505
        %2519 = vmatpush.bf16.msra.mxu0 %v2504
        %2520 = vmatpush.bf16.msra.mxu0 %v2503
        %2521 = vmatpush.bf16.msra.mxu0 %v2502
        %2522 = vmatpush.bf16.msra.mxu0 %v2501
        %2523 = vmatpush.bf16.msra.mxu0 %v2500
        %2524 = vmatmul.bf16.gmra.mxu0 %v2465
        %v2525 = vpop.f32.mrf.mxu0
        %v2526 = vadd.f32 0.0, %v2525
        %v2527 = vpop.f32.mrf.mxu0
        %v2528 = vadd.f32 0.0, %v2527
        %2529 = vmatmul.bf16.gmra.mxu0 %v2464
        %v2530 = vpop.f32.mrf.mxu0
        %v2531 = vadd.f32 0.0, %v2530
        %v2532 = vpop.f32.mrf.mxu0
        %2533 = vdwg.mxu0
        %v2534 = vadd.f32 %v2442, %v2526
        %v2535 = vadd.f32 %v2443, %v2528
        %v2536 = vadd.f32 %v2444, %v2531
        %v2537 = vpack.c.bf16 %v2534, %v2534
        %v2538 = vpack.c.bf16 %v2535, %v2535
        %v2539 = vpack.c.bf16 %v2536, %v2536
        %v2540 = vunpack.c.l.bf16 %v2537
        %v2541 = vunpack.c.l.bf16 %v2538
        %v2542 = vunpack.c.l.bf16 %v2539
        %v2543 = vmul.f32 %v2540, 0.5
        %v2544 = vmul.f32 %v2541, 0.5
        %v2545 = vmul.f32 %v2542, 0.5
        %v2546 = vpack.c.bf16 %v2543, %v2543
        %v2547 = vpack.c.bf16 %v2544, %v2544
        %v2548 = vpack.c.bf16 %v2545, %v2545
        %v2549 = vmul.f32 %v2540, 0.70703125
        %v2550 = vmul.f32 %v2541, 0.70703125
        %v2551 = vmul.f32 %v2542, 0.70703125
        %v2552 = vpack.c.bf16 %v2549, %v2549
        %v2553 = vpack.c.bf16 %v2550, %v2550
        %v2554 = vpack.c.bf16 %v2551, %v2551
        %v2555 = vunpack.c.l.bf16 %v2552
        %v2556 = vunpack.c.l.bf16 %v2553
        %v2557 = vunpack.c.l.bf16 %v2554
        %v2558 = vmul.f32 %v2555, %v2555
        %v2559 = vmin.f32 16.0, %v2558
        %v2560 = vmul.f32 %v2559, 2.1237322e-06
        %v2561 = vadd.f32 %v2560, 0.00028619796
        %v2562 = vmul.f32 %v2559, %v2561
        %v2563 = vadd.f32 %v2562, 0.0036580483
        %v2564 = vmul.f32 %v2559, %v2563
        %v2565 = vadd.f32 %v2564, 0.05243302
        %v2566 = vmul.f32 %v2559, %v2565
        %v2567 = vadd.f32 %v2566, 0.18741608
        %v2568 = vmul.f32 %v2559, %v2567
        %v2569 = vadd.f32 %v2568, 1.1283791
        %v2570 = vmul.f32 %v2555, %v2569
        %v2571 = vmul.f32 %v2559, 3.8918573e-05
        %v2572 = vadd.f32 %v2571, 0.001143296
        %v2573 = vmul.f32 %v2559, %v2572
        %v2574 = vadd.f32 %v2573, 0.014752088
        %v2575 = vmul.f32 %v2559, %v2574
        %v2576 = vadd.f32 %v2575, 0.112945676
        %v2577 = vmul.f32 %v2559, %v2576
        %v2578 = vadd.f32 %v2577, 0.4994258
        %v2579 = vmul.f32 %v2559, %v2578
        %v2580 = vadd.f32 %v2579, 1.0
        %v2581 = vrcp.pop %v2580
        %v2582 = vmul.f32 %v2580, %v2581
        %v2583 = vsub.f32 1.0, %v2582
        %v2584 = vmul.f32 %v2581, %v2583
        %v2585 = vadd.f32 %v2581, %v2584
        %vm2586 = vweird.f32 %v2580
        %vm2587 = vweird.f32 %v2581
        %vm2588 = vmor %vm2586, %vm2587
        %v2589 = vsel %vm2588, %v2581, %v2585
        %v2590 = vand.u32 2147483647, %v2580
        %vm2591 = vcmp.eq.f32.partialorder %v2590, 8.507059e+37
        %v2592 = vand.u32 %v2580, 2147483648
        %v2593 = vor.u32 1.1754944e-38, %v2592
        %v2594 = vsel %vm2591, %v2593, %v2589
        %v2595 = vmul.f32 %v2570, %v2594
        %v2596 = vmin.f32 %v2595, 1.0
        %v2597 = vmax.f32 %v2596, -1.0
        %v2598 = vmul.f32 %v2556, %v2556
        %v2599 = vmin.f32 16.0, %v2598
        %v2600 = vmul.f32 %v2599, 2.1237322e-06
        %v2601 = vadd.f32 %v2600, 0.00028619796
        %v2602 = vmul.f32 %v2599, %v2601
        %v2603 = vadd.f32 %v2602, 0.0036580483
        %v2604 = vmul.f32 %v2599, %v2603
        %v2605 = vadd.f32 %v2604, 0.05243302
        %v2606 = vmul.f32 %v2599, %v2605
        %v2607 = vadd.f32 %v2606, 0.18741608
        %v2608 = vmul.f32 %v2599, %v2607
        %v2609 = vadd.f32 %v2608, 1.1283791
        %v2610 = vmul.f32 %v2556, %v2609
        %v2611 = vmul.f32 %v2599, 3.8918573e-05
        %v2612 = vadd.f32 %v2611, 0.001143296
        %v2613 = vmul.f32 %v2599, %v2612
        %v2614 = vadd.f32 %v2613, 0.014752088
        %v2615 = vmul.f32 %v2599, %v2614
        %v2616 = vadd.f32 %v2615, 0.112945676
        %v2617 = vmul.f32 %v2599, %v2616
        %v2618 = vadd.f32 %v2617, 0.4994258
        %v2619 = vmul.f32 %v2599, %v2618
        %v2620 = vadd.f32 %v2619, 1.0
        %v2621 = vrcp.pop %v2620
        %v2622 = vmul.f32 %v2620, %v2621
        %v2623 = vsub.f32 1.0, %v2622
        %v2624 = vmul.f32 %v2621, %v2623
        %v2625 = vadd.f32 %v2621, %v2624
        %vm2626 = vweird.f32 %v2620
        %vm2627 = vweird.f32 %v2621
        %vm2628 = vmor %vm2626, %vm2627
        %v2629 = vsel %vm2628, %v2621, %v2625
        %v2630 = vand.u32 2147483647, %v2620
        %vm2631 = vcmp.eq.f32.partialorder %v2630, 8.507059e+37
        %v2632 = vand.u32 %v2620, 2147483648
        %v2633 = vor.u32 1.1754944e-38, %v2632
        %v2634 = vsel %vm2631, %v2633, %v2629
        %v2635 = vmul.f32 %v2610, %v2634
        %v2636 = vmin.f32 %v2635, 1.0
        %v2637 = vmax.f32 %v2636, -1.0
        %v2638 = vmul.f32 %v2557, %v2557
        %v2639 = vmin.f32 16.0, %v2638
        %v2640 = vmul.f32 %v2639, 2.1237322e-06
        %v2641 = vadd.f32 %v2640, 0.00028619796
        %v2642 = vmul.f32 %v2639, %v2641
        %v2643 = vadd.f32 %v2642, 0.0036580483
        %v2644 = vmul.f32 %v2639, %v2643
        %v2645 = vadd.f32 %v2644, 0.05243302
        %v2646 = vmul.f32 %v2639, %v2645
        %v2647 = vadd.f32 %v2646, 0.18741608
        %v2648 = vmul.f32 %v2639, %v2647
        %v2649 = vadd.f32 %v2648, 1.1283791
        %v2650 = vmul.f32 %v2557, %v2649
        %v2651 = vmul.f32 %v2639, 3.8918573e-05
        %v2652 = vadd.f32 %v2651, 0.001143296
        %v2653 = vmul.f32 %v2639, %v2652
        %v2654 = vadd.f32 %v2653, 0.014752088
        %v2655 = vmul.f32 %v2639, %v2654
        %v2656 = vadd.f32 %v2655, 0.112945676
        %v2657 = vmul.f32 %v2639, %v2656
        %v2658 = vadd.f32 %v2657, 0.4994258
        %v2659 = vmul.f32 %v2639, %v2658
        %v2660 = vadd.f32 %v2659, 1.0
        %v2661 = vrcp.pop %v2660
        %v2662 = vmul.f32 %v2660, %v2661
        %v2663 = vsub.f32 1.0, %v2662
        %v2664 = vmul.f32 %v2661, %v2663
        %v2665 = vadd.f32 %v2661, %v2664
        %vm2666 = vweird.f32 %v2660
        %vm2667 = vweird.f32 %v2661
        %vm2668 = vmor %vm2666, %vm2667
        %v2669 = vsel %vm2668, %v2661, %v2665
        %v2670 = vand.u32 2147483647, %v2660
        %vm2671 = vcmp.eq.f32.partialorder %v2670, 8.507059e+37
        %v2672 = vand.u32 %v2660, 2147483648
        %v2673 = vor.u32 1.1754944e-38, %v2672
        %v2674 = vsel %vm2671, %v2673, %v2669
        %v2675 = vmul.f32 %v2650, %v2674
        %v2676 = vmin.f32 %v2675, 1.0
        %v2677 = vmax.f32 %v2676, -1.0
        %v2678 = vpack.c.bf16 %v2597, %v2597
        %v2679 = vpack.c.bf16 %v2637, %v2637
        %v2680 = vpack.c.bf16 %v2677, %v2677
        %v2681 = vunpack.c.l.bf16 %v2678
        %v2682 = vunpack.c.l.bf16 %v2679
        %v2683 = vunpack.c.l.bf16 %v2680
        %v2684 = vadd.f32 %v2681, 1.0
        %v2685 = vadd.f32 %v2682, 1.0
        %v2686 = vadd.f32 %v2683, 1.0
        %v2687 = vpack.c.bf16 %v2684, %v2684
        %v2688 = vpack.c.bf16 %v2685, %v2685
        %v2689 = vpack.c.bf16 %v2686, %v2686
        %v2690 = vunpack.c.l.bf16 %v2546
        %v2691 = vunpack.c.l.bf16 %v2547
        %v2692 = vunpack.c.l.bf16 %v2548
        %v2693 = vunpack.c.l.bf16 %v2687
        %v2694 = vunpack.c.l.bf16 %v2688
        %v2695 = vunpack.c.l.bf16 %v2689
        %v2696 = vmul.f32 %v2690, %v2693
        %v2697 = vmul.f32 %v2691, %v2694
        %v2698 = vmul.f32 %v2692, %v2695
        %v2699 = vpack.c.bf16 %v2697, %v2696
        %v2700 = vpack.c.bf16 %v2698, %v2698
        %s2701 = scalar_lea.vmem [#allocation4], 128
        %v2702 = vld [vmem:[%s2701] sm:$0xf]
        %v2703 = vld [vmem:[%s2701 + $0x4] sm:$0xf]
        %v2704 = vld [vmem:[%s2701 + $0x8] sm:$0xf]
        %v2705 = vld [vmem:[%s2701 + $0xc] sm:$0xf]
        %v2706 = vld [vmem:[%s2701 + $0x10] sm:$0xf]
        %v2707 = vld [vmem:[%s2701 + $0x14] sm:$0xf]
        %v2708 = vld [vmem:[%s2701 + $0x18] sm:$0xf]
        %v2709 = vld [vmem:[%s2701 + $0x1c] sm:$0xf]
        %v2710 = vld [vmem:[%s2701 + $0x20] sm:$0xf]
        %v2711 = vld [vmem:[%s2701 + $0x24] sm:$0xf]
        %v2712 = vld [vmem:[%s2701 + $0x28] sm:$0xf]
        %v2713 = vld [vmem:[%s2701 + $0x2c] sm:$0xf]
        %v2714 = vld [vmem:[%s2701 + $0x30] sm:$0xf]
        %v2715 = vld [vmem:[%s2701 + $0x34] sm:$0xf]
        %v2716 = vld [vmem:[%s2701 + $0x38] sm:$0xf]
        %v2717 = vld [vmem:[%s2701 + $0x3c] sm:$0xf]
        %v2718 = vld [vmem:[%s8 + $0x2] sm:$0x1]
        %v2719 = vperm.slane %v2718, 0
        %v2736 = vunpack.c.l.b16 %v2702
        %v2737 = vunpack.c.l.b16 %v2703
        %v2738 = vunpack.c.l.b16 %v2704
        %v2739 = vunpack.c.l.b16 %v2705
        %v2740 = vunpack.c.l.b16 %v2706
        %v2741 = vunpack.c.l.b16 %v2707
        %v2742 = vunpack.c.l.b16 %v2708
        %v2743 = vunpack.c.l.b16 %v2709
        %v2744 = vunpack.c.l.b16 %v2710
        %v2745 = vunpack.c.l.b16 %v2711
        %v2746 = vunpack.c.l.b16 %v2712
        %v2747 = vunpack.c.l.b16 %v2713
        %v2748 = vunpack.c.l.b16 %v2714
        %v2749 = vunpack.c.l.b16 %v2715
        %v2750 = vunpack.c.l.b16 %v2716
        %v2751 = vunpack.c.l.b16 %v2717
        %v2752 = vpack.c.b16 %v2737, %v2736
        %v2753 = vpack.c.b16 %v2739, %v2738
        %v2754 = vpack.c.b16 %v2741, %v2740
        %v2755 = vpack.c.b16 %v2743, %v2742
        %v2756 = vpack.c.b16 %v2745, %v2744
        %v2757 = vpack.c.b16 %v2747, %v2746
        %v2758 = vpack.c.b16 %v2749, %v2748
        %v2759 = vpack.c.b16 %v2751, %v2750
        %2768 = vmatpush.bf16.msra.mxu0 %v2759
        %2769 = vmatpush.bf16.msra.mxu0 %v2758
        %2770 = vmatpush.bf16.msra.mxu0 %v2757
        %2771 = vmatpush.bf16.msra.mxu0 %v2756
        %2772 = vmatpush.bf16.msra.mxu0 %v2755
        %2773 = vmatpush.bf16.msra.mxu0 %v2754
        %2774 = vmatpush.bf16.msra.mxu0 %v2753
        %2775 = vmatpush.bf16.msra.mxu0 %v2752
        %2776 = vmatmul.bf16.gmra.mxu0 %v2699
        %v2777 = vpop.f32.mrf.mxu0
        %v2778 = vadd.f32 %v2719, %v2777
        %v2779 = vpop.f32.mrf.mxu0
        %v2780 = vadd.f32 %v2719, %v2779
        %2781 = vmatmul.bf16.gmra.mxu0 %v2700
        %v2782 = vpop.f32.mrf.mxu0
        %v2783 = vadd.f32 %v2719, %v2782
        %v2784 = vpop.f32.mrf.mxu0
        %2785 = vdwg.mxu0
        %vm2789 = vcmask 1043456
        %v2790 = vrot.slane %v2778, 4
        %v2791 = vrot.slane %v2780, 4
        %v2792 = vsel %vm2789, %v2790, %v2791
        %v2793 = vrot.slane %v2783, 4
        %v2794 = vsel %vm2789, %v2791, %v2793
        %v2799 = vadd.f32 %v2135, %v2790
        %v2800 = vadd.f32 %v2136, %v2792
        %v2801 = vadd.f32 %v2137, %v2794
        %v2802 = vadd.f32 %v2138, %v2793
        %v2803 = vmul.f32 %v2799, %v623
        %v2804 = vmul.f32 %v2800, %v624
        %v2805 = vmul.f32 %v2801, %v625
        %v2806 = vmul.f32 %v2802, %v626
        %v2807 = vld [vmem:[%s3 + $0x3] sm:$0x1]
        %v2808 = vld [vmem:[%s4 + $0x3] sm:$0x1]
        %vm2809 = vcmask 1047556
        %v2810 = vsel %vm2809, %v2803, 0.0
        %2811 = vadd.xlane.f32.xlu0 %v2810
        %v2812 = vpop.xlane.xlu0 %2811
        %2813 = vadd.xlane.f32.xlu0 %v2804
        %v2814 = vpop.xlane.xlu0 %2813
        %2815 = vadd.xlane.f32.xlu0 %v2805
        %v2816 = vpop.xlane.xlu0 %2815
        %v2817 = vsel %vm2789, %v2806, 0.0
        %2818 = vadd.xlane.f32.xlu0 %v2817
        %v2819 = vpop.xlane.xlu0 %2818
        %v2820 = vmul.f32 %v2812, 0.020833334
        %v2821 = vmul.f32 %v2814, 0.020833334
        %v2822 = vmul.f32 %v2816, 0.020833334
        %v2823 = vmul.f32 %v2819, 0.020833334
        %v2824 = vsub.f32 %v2803, %v2820
        %v2825 = vsub.f32 %v2804, %v2821
        %v2826 = vsub.f32 %v2805, %v2822
        %v2827 = vsub.f32 %v2806, %v2823
        %v2828 = vmul.f32 %v2824, %v598
        %v2829 = vmul.f32 %v2825, %v598
        %v2830 = vmul.f32 %v2826, %v598
        %v2831 = vmul.f32 %v2827, %v598
        %v2832 = vmul.f32 %v2828, %v2828
        %v2833 = vmul.f32 %v2829, %v2829
        %v2834 = vmul.f32 %v2830, %v2830
        %v2835 = vmul.f32 %v2831, %v2831
        %v2836 = vsel %vm2809, %v2832, 0.0
        %2837 = vadd.xlane.f32.xlu0 %v2836
        %v2838 = vpop.xlane.xlu0 %2837
        %2839 = vadd.xlane.f32.xlu0 %v2833
        %v2840 = vpop.xlane.xlu0 %2839
        %2841 = vadd.xlane.f32.xlu0 %v2834
        %v2842 = vpop.xlane.xlu0 %2841
        %v2843 = vsel %vm2789, %v2835, 0.0
        %2844 = vadd.xlane.f32.xlu0 %v2843
        %v2845 = vpop.xlane.xlu0 %2844
        %v2846 = vmul.f32 %v2838, 0.020833334
        %v2847 = vmul.f32 %v2840, 0.020833334
        %v2848 = vmul.f32 %v2842, 0.020833334
        %v2849 = vmul.f32 %v2845, 0.020833334
        %v2850 = vadd.f32 %v2846, 1e-05
        %v2851 = vadd.f32 %v2847, 1e-05
        %v2852 = vadd.f32 %v2848, 1e-05
        %v2853 = vadd.f32 %v2849, 1e-05
        %v2854 = vrsqrt.pop %v2850
        %v2855 = vmul.f32 %v2854, %v2850
        %v2856 = vmul.f32 %v2855, %v2854
        %v2857 = vmul.f32 0.5, %v2856
        %v2858 = vsub.f32 1.5, %v2857
        %v2859 = vmul.f32 %v2854, %v2858
        %vm2860 = vweird.f32 %v2850
        %vm2861 = vweird.f32 %v2854
        %vm2862 = vmor %vm2860, %vm2861
        %v2863 = vsel %vm2862, %v2854, %v2859
        %v2864 = vrsqrt.pop %v2851
        %v2865 = vmul.f32 %v2864, %v2851
        %v2866 = vmul.f32 %v2865, %v2864
        %v2867 = vmul.f32 0.5, %v2866
        %v2868 = vsub.f32 1.5, %v2867
        %v2869 = vmul.f32 %v2864, %v2868
        %vm2870 = vweird.f32 %v2851
        %vm2871 = vweird.f32 %v2864
        %vm2872 = vmor %vm2870, %vm2871
        %v2873 = vsel %vm2872, %v2864, %v2869
        %v2874 = vrsqrt.pop %v2852
        %v2875 = vmul.f32 %v2874, %v2852
        %v2876 = vmul.f32 %v2875, %v2874
        %v2877 = vmul.f32 0.5, %v2876
        %v2878 = vsub.f32 1.5, %v2877
        %v2879 = vmul.f32 %v2874, %v2878
        %vm2880 = vweird.f32 %v2852
        %vm2881 = vweird.f32 %v2874
        %vm2882 = vmor %vm2880, %vm2881
        %v2883 = vsel %vm2882, %v2874, %v2879
        %v2884 = vrsqrt.pop %v2853
        %v2885 = vmul.f32 %v2884, %v2853
        %v2886 = vmul.f32 %v2885, %v2884
        %v2887 = vmul.f32 0.5, %v2886
        %v2888 = vsub.f32 1.5, %v2887
        %v2889 = vmul.f32 %v2884, %v2888
        %vm2890 = vweird.f32 %v2853
        %vm2891 = vweird.f32 %v2884
        %vm2892 = vmor %vm2890, %vm2891
        %v2893 = vsel %vm2892, %v2884, %v2889
        %v2894 = vmul.f32 %v2828, %v2863
        %v2895 = vmul.f32 %v2829, %v2873
        %v2896 = vmul.f32 %v2830, %v2883
        %v2897 = vmul.f32 %v2831, %v2893
        %v2898 = vperm.slane %v2807, 0
        %v2899 = vmul.f32 %v2894, %v2898
        %v2900 = vmul.f32 %v2895, %v2898
        %v2901 = vmul.f32 %v2896, %v2898
        %v2902 = vmul.f32 %v2897, %v2898
        %v2903 = vperm.slane %v2808, 0
        %v2904 = vadd.f32 %v2899, %v2903
        %v2905 = vadd.f32 %v2900, %v2903
        %v2906 = vadd.f32 %v2901, %v2903
        %v2907 = vadd.f32 %v2902, %v2903
        %v2908 = vmul.f32 %v2904, %v655
        %v2909 = vmul.f32 %v2905, %v656
        %v2910 = vmul.f32 %v2906, %v657
        %v2911 = vmul.f32 %v2907, %v658
        %v2912 = vpack.c.bf16 %v2908, %v2908
        %v2913 = vpack.c.bf16 %v2909, %v2909
        %v2914 = vpack.c.bf16 %v2910, %v2910
        %v2915 = vpack.c.bf16 %v2911, %v2911
        %v2916 = vld [vmem:[%s6 + $0x3] sm:$0x1]
        %v2917 = vperm.slane %v2916, 0
        %v2918 = vadd.f32 %v2917, 0.0
        %s2919 = scalar_lea.vmem [#allocation2], 576
        %v2920 = vld [vmem:[%s2919] sm:$0xf]
        %v2921 = vld [vmem:[%s2919 + $0x4] sm:$0xf]
        %v2922 = vld [vmem:[%s2919 + $0x8] sm:$0xf]
        %v2923 = vld [vmem:[%s2919 + $0xc] sm:$0xf]
        %v2924 = vld [vmem:[%s2919 + $0x10] sm:$0xf]
        %v2925 = vld [vmem:[%s2919 + $0x14] sm:$0xf]
        %v2926 = vld [vmem:[%s2919 + $0x18] sm:$0xf]
        %v2927 = vld [vmem:[%s2919 + $0x1c] sm:$0xf]
        %v2928 = vld [vmem:[%s2919 + $0x20] sm:$0xf]
        %v2929 = vld [vmem:[%s2919 + $0x24] sm:$0xf]
        %v2930 = vld [vmem:[%s2919 + $0x28] sm:$0xf]
        %v2931 = vld [vmem:[%s2919 + $0x2c] sm:$0xf]
        %v2932 = vld [vmem:[%s2919 + $0x30] sm:$0xf]
        %v2933 = vld [vmem:[%s2919 + $0x34] sm:$0xf]
        %v2934 = vld [vmem:[%s2919 + $0x38] sm:$0xf]
        %v2935 = vld [vmem:[%s2919 + $0x3c] sm:$0xf]
        %v2939 = vunpack.c.l.b16 %v2912
        %v2940 = vunpack.c.l.b16 %v2913
        %v2941 = vunpack.c.l.b16 %v2914
        %v2942 = vpack.c.b16 %v2940, %v2939
        %v2943 = vpack.c.b16 %v2941, %v2941
        %v2944 = vrot.slane %v2942, 2
        %v2945 = vrot.slane %v2943, 2
        %v2946 = vsel %vm2370, %v2944, %v2945
        %v2965 = vunpack.c.l.b16 %v2920
        %v2966 = vunpack.c.l.b16 %v2921
        %v2967 = vunpack.c.l.b16 %v2922
        %v2968 = vunpack.c.l.b16 %v2923
        %v2969 = vunpack.c.l.b16 %v2924
        %v2970 = vunpack.c.l.b16 %v2925
        %v2971 = vunpack.c.l.b16 %v2926
        %v2972 = vunpack.c.l.b16 %v2927
        %v2973 = vunpack.c.l.b16 %v2928
        %v2974 = vunpack.c.l.b16 %v2929
        %v2975 = vunpack.c.l.b16 %v2930
        %v2976 = vunpack.c.l.b16 %v2931
        %v2977 = vunpack.c.l.b16 %v2932
        %v2978 = vunpack.c.l.b16 %v2933
        %v2979 = vunpack.c.l.b16 %v2934
        %v2980 = vunpack.c.l.b16 %v2935
        %v2981 = vpack.c.b16 %v2966, %v2965
        %v2982 = vpack.c.b16 %v2968, %v2967
        %v2983 = vpack.c.b16 %v2970, %v2969
        %v2984 = vpack.c.b16 %v2972, %v2971
        %v2985 = vpack.c.b16 %v2974, %v2973
        %v2986 = vpack.c.b16 %v2976, %v2975
        %v2987 = vpack.c.b16 %v2978, %v2977
        %v2988 = vpack.c.b16 %v2980, %v2979
        %2997 = vmatpush.bf16.msra.mxu0 %v2988
        %2998 = vmatpush.bf16.msra.mxu0 %v2987
        %2999 = vmatpush.bf16.msra.mxu0 %v2986
        %3000 = vmatpush.bf16.msra.mxu0 %v2985
        %3001 = vmatpush.bf16.msra.mxu0 %v2984
        %3002 = vmatpush.bf16.msra.mxu0 %v2983
        %3003 = vmatpush.bf16.msra.mxu0 %v2982
        %3004 = vmatpush.bf16.msra.mxu0 %v2981
        %3005 = vmatmul.bf16.gmra.mxu0 %v2946
        %v3006 = vpop.f32.mrf.mxu0
        %v3007 = vadd.f32 0.0, %v3006
        %v3008 = vpop.f32.mrf.mxu0
        %v3009 = vadd.f32 0.0, %v3008
        %3010 = vmatmul.bf16.gmra.mxu0 %v2945
        %v3011 = vpop.f32.mrf.mxu0
        %v3012 = vadd.f32 0.0, %v3011
        %v3013 = vpop.f32.mrf.mxu0
        %3014 = vdwg.mxu0
        %v3015 = vadd.f32 %v2918, %v3007
        %v3016 = vadd.f32 %v2918, %v3009
        %v3017 = vadd.f32 %v2918, %v3012
        %s3018 = scalar_lea.vmem [#allocation2], 640
        %v3019 = vld [vmem:[%s3018] sm:$0xf]
        %v3020 = vld [vmem:[%s3018 + $0x4] sm:$0xf]
        %v3021 = vld [vmem:[%s3018 + $0x8] sm:$0xf]
        %v3022 = vld [vmem:[%s3018 + $0xc] sm:$0xf]
        %v3023 = vld [vmem:[%s3018 + $0x10] sm:$0xf]
        %v3024 = vld [vmem:[%s3018 + $0x14] sm:$0xf]
        %v3025 = vld [vmem:[%s3018 + $0x18] sm:$0xf]
        %v3026 = vld [vmem:[%s3018 + $0x1c] sm:$0xf]
        %v3027 = vld [vmem:[%s3018 + $0x20] sm:$0xf]
        %v3028 = vld [vmem:[%s3018 + $0x24] sm:$0xf]
        %v3029 = vld [vmem:[%s3018 + $0x28] sm:$0xf]
        %v3030 = vld [vmem:[%s3018 + $0x2c] sm:$0xf]
        %v3031 = vld [vmem:[%s3018 + $0x30] sm:$0xf]
        %v3032 = vld [vmem:[%s3018 + $0x34] sm:$0xf]
        %v3033 = vld [vmem:[%s3018 + $0x38] sm:$0xf]
        %v3034 = vld [vmem:[%s3018 + $0x3c] sm:$0xf]
        %v3036 = vunpack.c.l.b16 %v2915
        %v3037 = vpack.c.b16 %v3036, %v2941
        %v3038 = vrot.slane %v2942, 3
        %v3039 = vrot.slane %v3037, 3
        %v3040 = vsel %vm2462, %v3038, %v3039
        %v3059 = vunpack.c.l.b16 %v3019
        %v3060 = vunpack.c.l.b16 %v3020
        %v3061 = vunpack.c.l.b16 %v3021
        %v3062 = vunpack.c.l.b16 %v3022
        %v3063 = vunpack.c.l.b16 %v3023
        %v3064 = vunpack.c.l.b16 %v3024
        %v3065 = vunpack.c.l.b16 %v3025
        %v3066 = vunpack.c.l.b16 %v3026
        %v3067 = vunpack.c.l.b16 %v3027
        %v3068 = vunpack.c.l.b16 %v3028
        %v3069 = vunpack.c.l.b16 %v3029
        %v3070 = vunpack.c.l.b16 %v3030
        %v3071 = vunpack.c.l.b16 %v3031
        %v3072 = vunpack.c.l.b16 %v3032
        %v3073 = vunpack.c.l.b16 %v3033
        %v3074 = vunpack.c.l.b16 %v3034
        %v3075 = vpack.c.b16 %v3060, %v3059
        %v3076 = vpack.c.b16 %v3062, %v3061
        %v3077 = vpack.c.b16 %v3064, %v3063
        %v3078 = vpack.c.b16 %v3066, %v3065
        %v3079 = vpack.c.b16 %v3068, %v3067
        %v3080 = vpack.c.b16 %v3070, %v3069
        %v3081 = vpack.c.b16 %v3072, %v3071
        %v3082 = vpack.c.b16 %v3074, %v3073
        %3091 = vmatpush.bf16.msra.mxu0 %v3082
        %3092 = vmatpush.bf16.msra.mxu0 %v3081
        %3093 = vmatpush.bf16.msra.mxu0 %v3080
        %3094 = vmatpush.bf16.msra.mxu0 %v3079
        %3095 = vmatpush.bf16.msra.mxu0 %v3078
        %3096 = vmatpush.bf16.msra.mxu0 %v3077
        %3097 = vmatpush.bf16.msra.mxu0 %v3076
        %3098 = vmatpush.bf16.msra.mxu0 %v3075
        %3099 = vmatmul.bf16.gmra.mxu0 %v3040
        %v3100 = vpop.f32.mrf.mxu0
        %v3101 = vadd.f32 0.0, %v3100
        %v3102 = vpop.f32.mrf.mxu0
        %v3103 = vadd.f32 0.0, %v3102
        %3104 = vmatmul.bf16.gmra.mxu0 %v3039
        %v3105 = vpop.f32.mrf.mxu0
        %v3106 = vadd.f32 0.0, %v3105
        %v3107 = vpop.f32.mrf.mxu0
        %3108 = vdwg.mxu0
        %v3109 = vadd.f32 %v3015, %v3101
        %v3110 = vadd.f32 %v3016, %v3103
        %v3111 = vadd.f32 %v3017, %v3106
        %s3112 = scalar_lea.vmem [#allocation2], 704
        %v3113 = vld [vmem:[%s3112] sm:$0xf]
        %v3114 = vld [vmem:[%s3112 + $0x4] sm:$0xf]
        %v3115 = vld [vmem:[%s3112 + $0x8] sm:$0xf]
        %v3116 = vld [vmem:[%s3112 + $0xc] sm:$0xf]
        %v3117 = vld [vmem:[%s3112 + $0x10] sm:$0xf]
        %v3118 = vld [vmem:[%s3112 + $0x14] sm:$0xf]
        %v3119 = vld [vmem:[%s3112 + $0x18] sm:$0xf]
        %v3120 = vld [vmem:[%s3112 + $0x1c] sm:$0xf]
        %v3121 = vld [vmem:[%s3112 + $0x20] sm:$0xf]
        %v3122 = vld [vmem:[%s3112 + $0x24] sm:$0xf]
        %v3123 = vld [vmem:[%s3112 + $0x28] sm:$0xf]
        %v3124 = vld [vmem:[%s3112 + $0x2c] sm:$0xf]
        %v3125 = vld [vmem:[%s3112 + $0x30] sm:$0xf]
        %v3126 = vld [vmem:[%s3112 + $0x34] sm:$0xf]
        %v3127 = vld [vmem:[%s3112 + $0x38] sm:$0xf]
        %v3128 = vld [vmem:[%s3112 + $0x3c] sm:$0xf]
        %v3129 = vpack.c.b16 %v2941, %v2940
        %v3130 = vpack.c.b16 %v3036, %v3036
        %v3149 = vunpack.c.l.b16 %v3113
        %v3150 = vunpack.c.l.b16 %v3114
        %v3151 = vunpack.c.l.b16 %v3115
        %v3152 = vunpack.c.l.b16 %v3116
        %v3153 = vunpack.c.l.b16 %v3117
        %v3154 = vunpack.c.l.b16 %v3118
        %v3155 = vunpack.c.l.b16 %v3119
        %v3156 = vunpack.c.l.b16 %v3120
        %v3157 = vunpack.c.l.b16 %v3121
        %v3158 = vunpack.c.l.b16 %v3122
        %v3159 = vunpack.c.l.b16 %v3123
        %v3160 = vunpack.c.l.b16 %v3124
        %v3161 = vunpack.c.l.b16 %v3125
        %v3162 = vunpack.c.l.b16 %v3126
        %v3163 = vunpack.c.l.b16 %v3127
        %v3164 = vunpack.c.l.b16 %v3128
        %v3165 = vpack.c.b16 %v3150, %v3149
        %v3166 = vpack.c.b16 %v3152, %v3151
        %v3167 = vpack.c.b16 %v3154, %v3153
        %v3168 = vpack.c.b16 %v3156, %v3155
        %v3169 = vpack.c.b16 %v3158, %v3157
        %v3170 = vpack.c.b16 %v3160, %v3159
        %v3171 = vpack.c.b16 %v3162, %v3161
        %v3172 = vpack.c.b16 %v3164, %v3163
        %3181 = vmatpush.bf16.msra.mxu0 %v3172
        %3182 = vmatpush.bf16.msra.mxu0 %v3171
        %3183 = vmatpush.bf16.msra.mxu0 %v3170
        %3184 = vmatpush.bf16.msra.mxu0 %v3169
        %3185 = vmatpush.bf16.msra.mxu0 %v3168
        %3186 = vmatpush.bf16.msra.mxu0 %v3167
        %3187 = vmatpush.bf16.msra.mxu0 %v3166
        %3188 = vmatpush.bf16.msra.mxu0 %v3165
        %3189 = vmatmul.bf16.gmra.mxu0 %v3129
        %v3190 = vpop.f32.mrf.mxu0
        %v3191 = vadd.f32 0.0, %v3190
        %v3192 = vpop.f32.mrf.mxu0
        %v3193 = vadd.f32 0.0, %v3192
        %3194 = vmatmul.bf16.gmra.mxu0 %v3130
        %v3195 = vpop.f32.mrf.mxu0
        %v3196 = vadd.f32 0.0, %v3195
        %v3197 = vpop.f32.mrf.mxu0
        %3198 = vdwg.mxu0
        %v3199 = vadd.f32 %v3109, %v3191
        %v3200 = vadd.f32 %v3110, %v3193
        %v3201 = vadd.f32 %v3111, %v3196
        %v3202 = vpack.c.bf16 %v3199, %v3199
        %v3203 = vpack.c.bf16 %v3200, %v3200
        %v3204 = vpack.c.bf16 %v3201, %v3201
        %v3205 = vunpack.c.l.bf16 %v3202
        %v3206 = vunpack.c.l.bf16 %v3203
        %v3207 = vunpack.c.l.bf16 %v3204
        %v3208 = vmul.f32 %v3205, 0.5
        %v3209 = vmul.f32 %v3206, 0.5
        %v3210 = vmul.f32 %v3207, 0.5
        %v3211 = vpack.c.bf16 %v3208, %v3208
        %v3212 = vpack.c.bf16 %v3209, %v3209
        %v3213 = vpack.c.bf16 %v3210, %v3210
        %v3214 = vmul.f32 %v3205, 0.70703125
        %v3215 = vmul.f32 %v3206, 0.70703125
        %v3216 = vmul.f32 %v3207, 0.70703125
        %v3217 = vpack.c.bf16 %v3214, %v3214
        %v3218 = vpack.c.bf16 %v3215, %v3215
        %v3219 = vpack.c.bf16 %v3216, %v3216
        %v3220 = vunpack.c.l.bf16 %v3217
        %v3221 = vunpack.c.l.bf16 %v3218
        %v3222 = vunpack.c.l.bf16 %v3219
        %v3223 = vmul.f32 %v3220, %v3220
        %v3224 = vmin.f32 16.0, %v3223
        %v3225 = vmul.f32 %v3224, 2.1237322e-06
        %v3226 = vadd.f32 %v3225, 0.00028619796
        %v3227 = vmul.f32 %v3224, %v3226
        %v3228 = vadd.f32 %v3227, 0.0036580483
        %v3229 = vmul.f32 %v3224, %v3228
        %v3230 = vadd.f32 %v3229, 0.05243302
        %v3231 = vmul.f32 %v3224, %v3230
        %v3232 = vadd.f32 %v3231, 0.18741608
        %v3233 = vmul.f32 %v3224, %v3232
        %v3234 = vadd.f32 %v3233, 1.1283791
        %v3235 = vmul.f32 %v3220, %v3234
        %v3236 = vmul.f32 %v3224, 3.8918573e-05
        %v3237 = vadd.f32 %v3236, 0.001143296
        %v3238 = vmul.f32 %v3224, %v3237
        %v3239 = vadd.f32 %v3238, 0.014752088
        %v3240 = vmul.f32 %v3224, %v3239
        %v3241 = vadd.f32 %v3240, 0.112945676
        %v3242 = vmul.f32 %v3224, %v3241
        %v3243 = vadd.f32 %v3242, 0.4994258
        %v3244 = vmul.f32 %v3224, %v3243
        %v3245 = vadd.f32 %v3244, 1.0
        %v3246 = vrcp.pop %v3245
        %v3247 = vmul.f32 %v3245, %v3246
        %v3248 = vsub.f32 1.0, %v3247
        %v3249 = vmul.f32 %v3246, %v3248
        %v3250 = vadd.f32 %v3246, %v3249
        %vm3251 = vweird.f32 %v3245
        %vm3252 = vweird.f32 %v3246
        %vm3253 = vmor %vm3251, %vm3252
        %v3254 = vsel %vm3253, %v3246, %v3250
        %v3255 = vand.u32 2147483647, %v3245
        %vm3256 = vcmp.eq.f32.partialorder %v3255, 8.507059e+37
        %v3257 = vand.u32 %v3245, 2147483648
        %v3258 = vor.u32 1.1754944e-38, %v3257
        %v3259 = vsel %vm3256, %v3258, %v3254
        %v3260 = vmul.f32 %v3235, %v3259
        %v3261 = vmin.f32 %v3260, 1.0
        %v3262 = vmax.f32 %v3261, -1.0
        %v3263 = vmul.f32 %v3221, %v3221
        %v3264 = vmin.f32 16.0, %v3263
        %v3265 = vmul.f32 %v3264, 2.1237322e-06
        %v3266 = vadd.f32 %v3265, 0.00028619796
        %v3267 = vmul.f32 %v3264, %v3266
        %v3268 = vadd.f32 %v3267, 0.0036580483
        %v3269 = vmul.f32 %v3264, %v3268
        %v3270 = vadd.f32 %v3269, 0.05243302
        %v3271 = vmul.f32 %v3264, %v3270
        %v3272 = vadd.f32 %v3271, 0.18741608
        %v3273 = vmul.f32 %v3264, %v3272
        %v3274 = vadd.f32 %v3273, 1.1283791
        %v3275 = vmul.f32 %v3221, %v3274
        %v3276 = vmul.f32 %v3264, 3.8918573e-05
        %v3277 = vadd.f32 %v3276, 0.001143296
        %v3278 = vmul.f32 %v3264, %v3277
        %v3279 = vadd.f32 %v3278, 0.014752088
        %v3280 = vmul.f32 %v3264, %v3279
        %v3281 = vadd.f32 %v3280, 0.112945676
        %v3282 = vmul.f32 %v3264, %v3281
        %v3283 = vadd.f32 %v3282, 0.4994258
        %v3284 = vmul.f32 %v3264, %v3283
        %v3285 = vadd.f32 %v3284, 1.0
        %v3286 = vrcp.pop %v3285
        %v3287 = vmul.f32 %v3285, %v3286
        %v3288 = vsub.f32 1.0, %v3287
        %v3289 = vmul.f32 %v3286, %v3288
        %v3290 = vadd.f32 %v3286, %v3289
        %vm3291 = vweird.f32 %v3285
        %vm3292 = vweird.f32 %v3286
        %vm3293 = vmor %vm3291, %vm3292
        %v3294 = vsel %vm3293, %v3286, %v3290
        %v3295 = vand.u32 2147483647, %v3285
        %vm3296 = vcmp.eq.f32.partialorder %v3295, 8.507059e+37
        %v3297 = vand.u32 %v3285, 2147483648
        %v3298 = vor.u32 1.1754944e-38, %v3297
        %v3299 = vsel %vm3296, %v3298, %v3294
        %v3300 = vmul.f32 %v3275, %v3299
        %v3301 = vmin.f32 %v3300, 1.0
        %v3302 = vmax.f32 %v3301, -1.0
        %v3303 = vmul.f32 %v3222, %v3222
        %v3304 = vmin.f32 16.0, %v3303
        %v3305 = vmul.f32 %v3304, 2.1237322e-06
        %v3306 = vadd.f32 %v3305, 0.00028619796
        %v3307 = vmul.f32 %v3304, %v3306
        %v3308 = vadd.f32 %v3307, 0.0036580483
        %v3309 = vmul.f32 %v3304, %v3308
        %v3310 = vadd.f32 %v3309, 0.05243302
        %v3311 = vmul.f32 %v3304, %v3310
        %v3312 = vadd.f32 %v3311, 0.18741608
        %v3313 = vmul.f32 %v3304, %v3312
        %v3314 = vadd.f32 %v3313, 1.1283791
        %v3315 = vmul.f32 %v3222, %v3314
        %v3316 = vmul.f32 %v3304, 3.8918573e-05
        %v3317 = vadd.f32 %v3316, 0.001143296
        %v3318 = vmul.f32 %v3304, %v3317
        %v3319 = vadd.f32 %v3318, 0.014752088
        %v3320 = vmul.f32 %v3304, %v3319
        %v3321 = vadd.f32 %v3320, 0.112945676
        %v3322 = vmul.f32 %v3304, %v3321
        %v3323 = vadd.f32 %v3322, 0.4994258
        %v3324 = vmul.f32 %v3304, %v3323
        %v3325 = vadd.f32 %v3324, 1.0
        %v3326 = vrcp.pop %v3325
        %v3327 = vmul.f32 %v3325, %v3326
        %v3328 = vsub.f32 1.0, %v3327
        %v3329 = vmul.f32 %v3326, %v3328
        %v3330 = vadd.f32 %v3326, %v3329
        %vm3331 = vweird.f32 %v3325
        %vm3332 = vweird.f32 %v3326
        %vm3333 = vmor %vm3331, %vm3332
        %v3334 = vsel %vm3333, %v3326, %v3330
        %v3335 = vand.u32 2147483647, %v3325
        %vm3336 = vcmp.eq.f32.partialorder %v3335, 8.507059e+37
        %v3337 = vand.u32 %v3325, 2147483648
        %v3338 = vor.u32 1.1754944e-38, %v3337
        %v3339 = vsel %vm3336, %v3338, %v3334
        %v3340 = vmul.f32 %v3315, %v3339
        %v3341 = vmin.f32 %v3340, 1.0
        %v3342 = vmax.f32 %v3341, -1.0
        %v3343 = vpack.c.bf16 %v3262, %v3262
        %v3344 = vpack.c.bf16 %v3302, %v3302
        %v3345 = vpack.c.bf16 %v3342, %v3342
        %v3346 = vunpack.c.l.bf16 %v3343
        %v3347 = vunpack.c.l.bf16 %v3344
        %v3348 = vunpack.c.l.bf16 %v3345
        %v3349 = vadd.f32 %v3346, 1.0
        %v3350 = vadd.f32 %v3347, 1.0
        %v3351 = vadd.f32 %v3348, 1.0
        %v3352 = vpack.c.bf16 %v3349, %v3349
        %v3353 = vpack.c.bf16 %v3350, %v3350
        %v3354 = vpack.c.bf16 %v3351, %v3351
        %v3355 = vunpack.c.l.bf16 %v3211
        %v3356 = vunpack.c.l.bf16 %v3212
        %v3357 = vunpack.c.l.bf16 %v3213
        %v3358 = vunpack.c.l.bf16 %v3352
        %v3359 = vunpack.c.l.bf16 %v3353
        %v3360 = vunpack.c.l.bf16 %v3354
        %v3361 = vmul.f32 %v3355, %v3358
        %v3362 = vmul.f32 %v3356, %v3359
        %v3363 = vmul.f32 %v3357, %v3360
        %v3364 = vpack.c.bf16 %v3362, %v3361
        %v3365 = vpack.c.bf16 %v3363, %v3363
        %s3366 = scalar_lea.vmem [#allocation4], 192
        %v3367 = vld [vmem:[%s3366] sm:$0xf]
        %v3368 = vld [vmem:[%s3366 + $0x4] sm:$0xf]
        %v3369 = vld [vmem:[%s3366 + $0x8] sm:$0xf]
        %v3370 = vld [vmem:[%s3366 + $0xc] sm:$0xf]
        %v3371 = vld [vmem:[%s3366 + $0x10] sm:$0xf]
        %v3372 = vld [vmem:[%s3366 + $0x14] sm:$0xf]
        %v3373 = vld [vmem:[%s3366 + $0x18] sm:$0xf]
        %v3374 = vld [vmem:[%s3366 + $0x1c] sm:$0xf]
        %v3375 = vld [vmem:[%s3366 + $0x20] sm:$0xf]
        %v3376 = vld [vmem:[%s3366 + $0x24] sm:$0xf]
        %v3377 = vld [vmem:[%s3366 + $0x28] sm:$0xf]
        %v3378 = vld [vmem:[%s3366 + $0x2c] sm:$0xf]
        %v3379 = vld [vmem:[%s3366 + $0x30] sm:$0xf]
        %v3380 = vld [vmem:[%s3366 + $0x34] sm:$0xf]
        %v3381 = vld [vmem:[%s3366 + $0x38] sm:$0xf]
        %v3382 = vld [vmem:[%s3366 + $0x3c] sm:$0xf]
        %v3383 = vld [vmem:[%s8 + $0x3] sm:$0x1]
        %v3384 = vperm.slane %v3383, 0
        %v3401 = vunpack.c.l.b16 %v3367
        %v3402 = vunpack.c.l.b16 %v3368
        %v3403 = vunpack.c.l.b16 %v3369
        %v3404 = vunpack.c.l.b16 %v3370
        %v3405 = vunpack.c.l.b16 %v3371
        %v3406 = vunpack.c.l.b16 %v3372
        %v3407 = vunpack.c.l.b16 %v3373
        %v3408 = vunpack.c.l.b16 %v3374
        %v3409 = vunpack.c.l.b16 %v3375
        %v3410 = vunpack.c.l.b16 %v3376
        %v3411 = vunpack.c.l.b16 %v3377
        %v3412 = vunpack.c.l.b16 %v3378
        %v3413 = vunpack.c.l.b16 %v3379
        %v3414 = vunpack.c.l.b16 %v3380
        %v3415 = vunpack.c.l.b16 %v3381
        %v3416 = vunpack.c.l.b16 %v3382
        %v3417 = vpack.c.b16 %v3402, %v3401
        %v3418 = vpack.c.b16 %v3404, %v3403
        %v3419 = vpack.c.b16 %v3406, %v3405
        %v3420 = vpack.c.b16 %v3408, %v3407
        %v3421 = vpack.c.b16 %v3410, %v3409
        %v3422 = vpack.c.b16 %v3412, %v3411
        %v3423 = vpack.c.b16 %v3414, %v3413
        %v3424 = vpack.c.b16 %v3416, %v3415
        %3433 = vmatpush.bf16.msra.mxu0 %v3424
        %3434 = vmatpush.bf16.msra.mxu0 %v3423
        %3435 = vmatpush.bf16.msra.mxu0 %v3422
        %3436 = vmatpush.bf16.msra.mxu0 %v3421
        %3437 = vmatpush.bf16.msra.mxu0 %v3420
        %3438 = vmatpush.bf16.msra.mxu0 %v3419
        %3439 = vmatpush.bf16.msra.mxu0 %v3418
        %3440 = vmatpush.bf16.msra.mxu0 %v3417
        %3441 = vmatmul.bf16.gmra.mxu0 %v3364
        %v3442 = vpop.f32.mrf.mxu0
        %v3443 = vadd.f32 %v3384, %v3442
        %v3444 = vpop.f32.mrf.mxu0
        %v3445 = vadd.f32 %v3384, %v3444
        %3446 = vmatmul.bf16.gmra.mxu0 %v3365
        %v3447 = vpop.f32.mrf.mxu0
        %v3448 = vadd.f32 %v3384, %v3447
        %v3449 = vpop.f32.mrf.mxu0
        %3450 = vdwg.mxu0
        %v3454 = vrot.slane %v3443, 2
        %v3455 = vrot.slane %v3445, 2
        %v3456 = vsel %vm2149, %v3454, %v3455
        %v3457 = vrot.slane %v3448, 2
        %v3458 = vsel %vm2149, %v3455, %v3457
        %v3463 = vadd.f32 %v2803, %v3454
        %v3464 = vadd.f32 %v2804, %v3456
        %v3465 = vadd.f32 %v2805, %v3458
        %v3466 = vadd.f32 %v2806, %v3457
        %v3467 = vmul.f32 %v3463, %v623
        %v3468 = vmul.f32 %v3464, %v624
        %v3469 = vmul.f32 %v3465, %v625
        %v3470 = vmul.f32 %v3466, %v626
        %v3471 = vmul.f32 %v3467, %v623
        %v3472 = vmul.f32 %v3468, %v624
        %v3473 = vmul.f32 %v3469, %v625
        %v3474 = vmul.f32 %v3470, %v626
        %v3475 = vld [vmem:[%s3 + $0x4] sm:$0x1]
        %v3476 = vld [vmem:[%s4 + $0x4] sm:$0x1]
        %vm3477 = vcmask 1047558
        %v3478 = vsel %vm3477, %v3471, 0.0
        %3479 = vadd.xlane.f32.xlu0 %v3478
        %v3480 = vpop.xlane.xlu0 %3479
        %3481 = vadd.xlane.f32.xlu0 %v3472
        %v3482 = vpop.xlane.xlu0 %3481
        %3483 = vadd.xlane.f32.xlu0 %v3473
        %v3484 = vpop.xlane.xlu0 %3483
        %v3485 = vsel %vm2119, %v3474, 0.0
        %3486 = vadd.xlane.f32.xlu0 %v3485
        %v3487 = vpop.xlane.xlu0 %3486
        %v3488 = vmul.f32 %v3480, 0.020833334
        %v3489 = vmul.f32 %v3482, 0.020833334
        %v3490 = vmul.f32 %v3484, 0.020833334
        %v3491 = vmul.f32 %v3487, 0.020833334
        %v3492 = vsub.f32 %v3471, %v3488
        %v3493 = vsub.f32 %v3472, %v3489
        %v3494 = vsub.f32 %v3473, %v3490
        %v3495 = vsub.f32 %v3474, %v3491
        %v3496 = vmul.f32 %v3492, %v598
        %v3497 = vmul.f32 %v3493, %v598
        %v3498 = vmul.f32 %v3494, %v598
        %v3499 = vmul.f32 %v3495, %v598
        %v3500 = vmul.f32 %v3496, %v3496
        %v3501 = vmul.f32 %v3497, %v3497
        %v3502 = vmul.f32 %v3498, %v3498
        %v3503 = vmul.f32 %v3499, %v3499
        %v3504 = vsel %vm3477, %v3500, 0.0
        %3505 = vadd.xlane.f32.xlu0 %v3504
        %v3506 = vpop.xlane.xlu0 %3505
        %3507 = vadd.xlane.f32.xlu0 %v3501
        %v3508 = vpop.xlane.xlu0 %3507
        %3509 = vadd.xlane.f32.xlu0 %v3502
        %v3510 = vpop.xlane.xlu0 %3509
        %v3511 = vsel %vm2119, %v3503, 0.0
        %3512 = vadd.xlane.f32.xlu0 %v3511
        %v3513 = vpop.xlane.xlu0 %3512
        %v3514 = vmul.f32 %v3506, 0.020833334
        %v3515 = vmul.f32 %v3508, 0.020833334
        %v3516 = vmul.f32 %v3510, 0.020833334
        %v3517 = vmul.f32 %v3513, 0.020833334
        %v3518 = vadd.f32 %v3514, 1e-05
        %v3519 = vadd.f32 %v3515, 1e-05
        %v3520 = vadd.f32 %v3516, 1e-05
        %v3521 = vadd.f32 %v3517, 1e-05
        %v3522 = vrsqrt.pop %v3518
        %v3523 = vmul.f32 %v3522, %v3518
        %v3524 = vmul.f32 %v3523, %v3522
        %v3525 = vmul.f32 0.5, %v3524
        %v3526 = vsub.f32 1.5, %v3525
        %v3527 = vmul.f32 %v3522, %v3526
        %vm3528 = vweird.f32 %v3518
        %vm3529 = vweird.f32 %v3522
        %vm3530 = vmor %vm3528, %vm3529
        %v3531 = vsel %vm3530, %v3522, %v3527
        %v3532 = vrsqrt.pop %v3519
        %v3533 = vmul.f32 %v3532, %v3519
        %v3534 = vmul.f32 %v3533, %v3532
        %v3535 = vmul.f32 0.5, %v3534
        %v3536 = vsub.f32 1.5, %v3535
        %v3537 = vmul.f32 %v3532, %v3536
        %vm3538 = vweird.f32 %v3519
        %vm3539 = vweird.f32 %v3532
        %vm3540 = vmor %vm3538, %vm3539
        %v3541 = vsel %vm3540, %v3532, %v3537
        %v3542 = vrsqrt.pop %v3520
        %v3543 = vmul.f32 %v3542, %v3520
        %v3544 = vmul.f32 %v3543, %v3542
        %v3545 = vmul.f32 0.5, %v3544
        %v3546 = vsub.f32 1.5, %v3545
        %v3547 = vmul.f32 %v3542, %v3546
        %vm3548 = vweird.f32 %v3520
        %vm3549 = vweird.f32 %v3542
        %vm3550 = vmor %vm3548, %vm3549
        %v3551 = vsel %vm3550, %v3542, %v3547
        %v3552 = vrsqrt.pop %v3521
        %v3553 = vmul.f32 %v3552, %v3521
        %v3554 = vmul.f32 %v3553, %v3552
        %v3555 = vmul.f32 0.5, %v3554
        %v3556 = vsub.f32 1.5, %v3555
        %v3557 = vmul.f32 %v3552, %v3556
        %vm3558 = vweird.f32 %v3521
        %vm3559 = vweird.f32 %v3552
        %vm3560 = vmor %vm3558, %vm3559
        %v3561 = vsel %vm3560, %v3552, %v3557
        %v3562 = vmul.f32 %v3496, %v3531
        %v3563 = vmul.f32 %v3497, %v3541
        %v3564 = vmul.f32 %v3498, %v3551
        %v3565 = vmul.f32 %v3499, %v3561
        %v3566 = vperm.slane %v3475, 0
        %v3567 = vmul.f32 %v3562, %v3566
        %v3568 = vmul.f32 %v3563, %v3566
        %v3569 = vmul.f32 %v3564, %v3566
        %v3570 = vmul.f32 %v3565, %v3566
        %v3571 = vperm.slane %v3476, 0
        %v3572 = vadd.f32 %v3567, %v3571
        %v3573 = vadd.f32 %v3568, %v3571
        %v3574 = vadd.f32 %v3569, %v3571
        %v3575 = vadd.f32 %v3570, %v3571
        %v3576 = vmul.f32 %v3572, %v623
        %v3577 = vmul.f32 %v3573, %v624
        %v3578 = vmul.f32 %v3574, %v625
        %v3579 = vmul.f32 %v3575, %v626
        %v3580 = vmul.f32 %v3576, %v655
        %v3581 = vmul.f32 %v3577, %v656
        %v3582 = vmul.f32 %v3578, %v657
        %v3583 = vmul.f32 %v3579, %v658
        %v3584 = vpack.c.bf16 %v3580, %v3580
        %v3585 = vpack.c.bf16 %v3581, %v3581
        %v3586 = vpack.c.bf16 %v3582, %v3582
        %v3587 = vpack.c.bf16 %v3583, %v3583
        %v3588 = vld [vmem:[%s10] sm:$0x1]
        %v3590 = vperm.slane %v3588, 0
        %v3592 = vadd.f32 %v3590, 0.0
        %v3593 = vld [vmem:[#allocation6] sm:$0xf]
        %v3594 = vld [vmem:[#allocation6 + $0x4] sm:$0xf]
        %v3595 = vld [vmem:[#allocation6 + $0x8] sm:$0xf]
        %v3596 = vld [vmem:[#allocation6 + $0xc] sm:$0xf]
        %v3597 = vld [vmem:[#allocation6 + $0x10] sm:$0xf]
        %v3598 = vld [vmem:[#allocation6 + $0x14] sm:$0xf]
        %v3599 = vld [vmem:[#allocation6 + $0x18] sm:$0xf]
        %v3600 = vld [vmem:[#allocation6 + $0x1c] sm:$0xf]
        %v3601 = vld [vmem:[#allocation6 + $0x20] sm:$0xf]
        %v3602 = vld [vmem:[#allocation6 + $0x24] sm:$0xf]
        %v3603 = vld [vmem:[#allocation6 + $0x28] sm:$0xf]
        %v3604 = vld [vmem:[#allocation6 + $0x2c] sm:$0xf]
        %v3605 = vld [vmem:[#allocation6 + $0x30] sm:$0xf]
        %v3606 = vld [vmem:[#allocation6 + $0x34] sm:$0xf]
        %v3607 = vld [vmem:[#allocation6 + $0x38] sm:$0xf]
        %v3608 = vld [vmem:[#allocation6 + $0x3c] sm:$0xf]
        %v3612 = vunpack.c.l.b16 %v3584
        %v3613 = vunpack.c.l.b16 %v3585
        %v3614 = vunpack.c.l.b16 %v3586
        %v3615 = vpack.c.b16 %v3613, %v3612
        %v3616 = vpack.c.b16 %v3614, %v3614
        %v3617 = vrot.slane %v3615, 3
        %v3618 = vrot.slane %v3616, 3
        %v3619 = vsel %vm2462, %v3617, %v3618
        %v3638 = vunpack.c.l.b16 %v3593
        %v3639 = vunpack.c.l.b16 %v3594
        %v3640 = vunpack.c.l.b16 %v3595
        %v3641 = vunpack.c.l.b16 %v3596
        %v3642 = vunpack.c.l.b16 %v3597
        %v3643 = vunpack.c.l.b16 %v3598
        %v3644 = vunpack.c.l.b16 %v3599
        %v3645 = vunpack.c.l.b16 %v3600
        %v3646 = vunpack.c.l.b16 %v3601
        %v3647 = vunpack.c.l.b16 %v3602
        %v3648 = vunpack.c.l.b16 %v3603
        %v3649 = vunpack.c.l.b16 %v3604
        %v3650 = vunpack.c.l.b16 %v3605
        %v3651 = vunpack.c.l.b16 %v3606
        %v3652 = vunpack.c.l.b16 %v3607
        %v3653 = vunpack.c.l.b16 %v3608
        %v3654 = vpack.c.b16 %v3639, %v3638
        %v3655 = vpack.c.b16 %v3641, %v3640
        %v3656 = vpack.c.b16 %v3643, %v3642
        %v3657 = vpack.c.b16 %v3645, %v3644
        %v3658 = vpack.c.b16 %v3647, %v3646
        %v3659 = vpack.c.b16 %v3649, %v3648
        %v3660 = vpack.c.b16 %v3651, %v3650
        %v3661 = vpack.c.b16 %v3653, %v3652
        %3670 = vmatpush.bf16.msra.mxu0 %v3661
        %3671 = vmatpush.bf16.msra.mxu0 %v3660
        %3672 = vmatpush.bf16.msra.mxu0 %v3659
        %3673 = vmatpush.bf16.msra.mxu0 %v3658
        %3674 = vmatpush.bf16.msra.mxu0 %v3657
        %3675 = vmatpush.bf16.msra.mxu0 %v3656
        %3676 = vmatpush.bf16.msra.mxu0 %v3655
        %3677 = vmatpush.bf16.msra.mxu0 %v3654
        %3678 = vmatmul.bf16.gmra.mxu0 %v3619
        %v3679 = vpop.f32.mrf.mxu0
        %v3680 = vadd.f32 0.0, %v3679
        %v3681 = vpop.f32.mrf.mxu0
        %v3682 = vadd.f32 0.0, %v3681
        %3683 = vmatmul.bf16.gmra.mxu0 %v3618
        %v3684 = vpop.f32.mrf.mxu0
        %v3685 = vadd.f32 0.0, %v3684
        %v3686 = vpop.f32.mrf.mxu0
        %3687 = vdwg.mxu0
        %v3688 = vadd.f32 %v3592, %v3680
        %v3689 = vadd.f32 %v3592, %v3682
        %v3690 = vadd.f32 %v3592, %v3685
        %s3691 = scalar_lea.vmem [#allocation6], 64
        %v3692 = vld [vmem:[%s3691] sm:$0xf]
        %v3693 = vld [vmem:[%s3691 + $0x4] sm:$0xf]
        %v3694 = vld [vmem:[%s3691 + $0x8] sm:$0xf]
        %v3695 = vld [vmem:[%s3691 + $0xc] sm:$0xf]
        %v3696 = vld [vmem:[%s3691 + $0x10] sm:$0xf]
        %v3697 = vld [vmem:[%s3691 + $0x14] sm:$0xf]
        %v3698 = vld [vmem:[%s3691 + $0x18] sm:$0xf]
        %v3699 = vld [vmem:[%s3691 + $0x1c] sm:$0xf]
        %v3700 = vld [vmem:[%s3691 + $0x20] sm:$0xf]
        %v3701 = vld [vmem:[%s3691 + $0x24] sm:$0xf]
        %v3702 = vld [vmem:[%s3691 + $0x28] sm:$0xf]
        %v3703 = vld [vmem:[%s3691 + $0x2c] sm:$0xf]
        %v3704 = vld [vmem:[%s3691 + $0x30] sm:$0xf]
        %v3705 = vld [vmem:[%s3691 + $0x34] sm:$0xf]
        %v3706 = vld [vmem:[%s3691 + $0x38] sm:$0xf]
        %v3707 = vld [vmem:[%s3691 + $0x3c] sm:$0xf]
        %v3709 = vunpack.c.l.b16 %v3587
        %v3710 = vpack.c.b16 %v3709, %v3614
        %vm3711 = vsmask.f32 4352
        %v3713 = vshrl.u32 %v3615, 16
        %v3715 = vrot.slane %v3713, 3
        %v3716 = vshll.u32 %v3615, 16
        %v3718 = vrot.slane %v3716, 4
        %v3719 = vor.u32 %v3715, %v3718
        %v3721 = vshrl.u32 %v3710, 16
        %v3723 = vrot.slane %v3721, 3
        %v3724 = vshll.u32 %v3710, 16
        %v3726 = vrot.slane %v3724, 4
        %v3727 = vor.u32 %v3723, %v3726
        %v3728 = vsel %vm3711, %v3719, %v3727
        %v3747 = vunpack.c.l.b16 %v3692
        %v3748 = vunpack.c.l.b16 %v3693
        %v3749 = vunpack.c.l.b16 %v3694
        %v3750 = vunpack.c.l.b16 %v3695
        %v3751 = vunpack.c.l.b16 %v3696
        %v3752 = vunpack.c.l.b16 %v3697
        %v3753 = vunpack.c.l.b16 %v3698
        %v3754 = vunpack.c.l.b16 %v3699
        %v3755 = vunpack.c.l.b16 %v3700
        %v3756 = vunpack.c.l.b16 %v3701
        %v3757 = vunpack.c.l.b16 %v3702
        %v3758 = vunpack.c.l.b16 %v3703
        %v3759 = vunpack.c.l.b16 %v3704
        %v3760 = vunpack.c.l.b16 %v3705
        %v3761 = vunpack.c.l.b16 %v3706
        %v3762 = vunpack.c.l.b16 %v3707
        %v3763 = vpack.c.b16 %v3748, %v3747
        %v3764 = vpack.c.b16 %v3750, %v3749
        %v3765 = vpack.c.b16 %v3752, %v3751
        %v3766 = vpack.c.b16 %v3754, %v3753
        %v3767 = vpack.c.b16 %v3756, %v3755
        %v3768 = vpack.c.b16 %v3758, %v3757
        %v3769 = vpack.c.b16 %v3760, %v3759
        %v3770 = vpack.c.b16 %v3762, %v3761
        %3779 = vmatpush.bf16.msra.mxu0 %v3770
        %3780 = vmatpush.bf16.msra.mxu0 %v3769
        %3781 = vmatpush.bf16.msra.mxu0 %v3768
        %3782 = vmatpush.bf16.msra.mxu0 %v3767
        %3783 = vmatpush.bf16.msra.mxu0 %v3766
        %3784 = vmatpush.bf16.msra.mxu0 %v3765
        %3785 = vmatpush.bf16.msra.mxu0 %v3764
        %3786 = vmatpush.bf16.msra.mxu0 %v3763
        %3787 = vmatmul.bf16.gmra.mxu0 %v3728
        %v3788 = vpop.f32.mrf.mxu0
        %v3789 = vadd.f32 0.0, %v3788
        %v3790 = vpop.f32.mrf.mxu0
        %v3791 = vadd.f32 0.0, %v3790
        %3792 = vmatmul.bf16.gmra.mxu0 %v3727
        %v3793 = vpop.f32.mrf.mxu0
        %v3794 = vadd.f32 0.0, %v3793
        %v3795 = vpop.f32.mrf.mxu0
        %3796 = vdwg.mxu0
        %v3797 = vadd.f32 %v3688, %v3789
        %v3798 = vadd.f32 %v3689, %v3791
        %v3799 = vadd.f32 %v3690, %v3794
        %s3800 = scalar_lea.vmem [#allocation6], 128
        %v3801 = vld [vmem:[%s3800] sm:$0xf]
        %v3802 = vld [vmem:[%s3800 + $0x4] sm:$0xf]
        %v3803 = vld [vmem:[%s3800 + $0x8] sm:$0xf]
        %v3804 = vld [vmem:[%s3800 + $0xc] sm:$0xf]
        %v3805 = vld [vmem:[%s3800 + $0x10] sm:$0xf]
        %v3806 = vld [vmem:[%s3800 + $0x14] sm:$0xf]
        %v3807 = vld [vmem:[%s3800 + $0x18] sm:$0xf]
        %v3808 = vld [vmem:[%s3800 + $0x1c] sm:$0xf]
        %v3809 = vld [vmem:[%s3800 + $0x20] sm:$0xf]
        %v3810 = vld [vmem:[%s3800 + $0x24] sm:$0xf]
        %v3811 = vld [vmem:[%s3800 + $0x28] sm:$0xf]
        %v3812 = vld [vmem:[%s3800 + $0x2c] sm:$0xf]
        %v3813 = vld [vmem:[%s3800 + $0x30] sm:$0xf]
        %v3814 = vld [vmem:[%s3800 + $0x34] sm:$0xf]
        %v3815 = vld [vmem:[%s3800 + $0x38] sm:$0xf]
        %v3816 = vld [vmem:[%s3800 + $0x3c] sm:$0xf]
        %v3817 = vpack.c.b16 %v3614, %v3613
        %v3818 = vpack.c.b16 %v3709, %v3709
        %v3837 = vunpack.c.l.b16 %v3801
        %v3838 = vunpack.c.l.b16 %v3802
        %v3839 = vunpack.c.l.b16 %v3803
        %v3840 = vunpack.c.l.b16 %v3804
        %v3841 = vunpack.c.l.b16 %v3805
        %v3842 = vunpack.c.l.b16 %v3806
        %v3843 = vunpack.c.l.b16 %v3807
        %v3844 = vunpack.c.l.b16 %v3808
        %v3845 = vunpack.c.l.b16 %v3809
        %v3846 = vunpack.c.l.b16 %v3810
        %v3847 = vunpack.c.l.b16 %v3811
        %v3848 = vunpack.c.l.b16 %v3812
        %v3849 = vunpack.c.l.b16 %v3813
        %v3850 = vunpack.c.l.b16 %v3814
        %v3851 = vunpack.c.l.b16 %v3815
        %v3852 = vunpack.c.l.b16 %v3816
        %v3853 = vpack.c.b16 %v3838, %v3837
        %v3854 = vpack.c.b16 %v3840, %v3839
        %v3855 = vpack.c.b16 %v3842, %v3841
        %v3856 = vpack.c.b16 %v3844, %v3843
        %v3857 = vpack.c.b16 %v3846, %v3845
        %v3858 = vpack.c.b16 %v3848, %v3847
        %v3859 = vpack.c.b16 %v3850, %v3849
        %v3860 = vpack.c.b16 %v3852, %v3851
        %3869 = vmatpush.bf16.msra.mxu0 %v3860
        %3870 = vmatpush.bf16.msra.mxu0 %v3859
        %3871 = vmatpush.bf16.msra.mxu0 %v3858
        %3872 = vmatpush.bf16.msra.mxu0 %v3857
        %3873 = vmatpush.bf16.msra.mxu0 %v3856
        %3874 = vmatpush.bf16.msra.mxu0 %v3855
        %3875 = vmatpush.bf16.msra.mxu0 %v3854
        %3876 = vmatpush.bf16.msra.mxu0 %v3853
        %3877 = vmatmul.bf16.gmra.mxu0 %v3817
        %v3878 = vpop.f32.mrf.mxu0
        %v3879 = vadd.f32 0.0, %v3878
        %v3880 = vpop.f32.mrf.mxu0
        %v3881 = vadd.f32 0.0, %v3880
        %3882 = vmatmul.bf16.gmra.mxu0 %v3818
        %v3883 = vpop.f32.mrf.mxu0
        %v3884 = vadd.f32 0.0, %v3883
        %v3885 = vpop.f32.mrf.mxu0
        %3886 = vdwg.mxu0
        %v3887 = vadd.f32 %v3797, %v3879
        %v3888 = vadd.f32 %v3798, %v3881
        %v3889 = vadd.f32 %v3799, %v3884
        %v3894 = vrot.slane %v623, 7
        %v3895 = vrot.slane %v624, 7
        %v3896 = vsel %vm1372, %v3894, %v3895
        %v3897 = vrot.slane %v625, 7
        %v3898 = vsel %vm1372, %v3895, %v3897
        %v3899 = vrot.slane %v626, 7
        %v3900 = vsel %vm1372, %v3897, %v3899
        %v3904 = vmul.f32 %v3887, %v3896
        %v3905 = vmul.f32 %v3888, %v3898
        %v3906 = vmul.f32 %v3889, %v3900
        %3907 = vst [vmem:[%s592 - $0x1] sm:$0xfe] %v3904
        %3908 = vst [vmem:[%s592 + $0x7] sm:$0xff] %v3905
        %3909 = vst [vmem:[%s592 + $0xf] sm:$0x1] %v3906
        %s3910 = smul.u32 2, %s28
        %p3911 = scmp.lt.s32.totalorder %s29, 1
        %s3912 = scalar_select %p3911, %s29, 1
        %p3913 = scmp.lt.s32.totalorder %s3910, 5
        %s3914 = scalar_select %p3913, %s3910, 5
        %s3915 = smul.addr %s3912, 6
        %s3916 = sadd.s32 %s3914, %s3915
        %s3917 = smul.addr %s3916, 8
        %s3918 = scalar_lea.vmem %s11, %s3917
        // Predicated region
        $region77: #{conv_blocks_forward.1} parent=63 // pred_check
          %p3919 = pneg %p324
        $region78: #{conv_blocks_forward.1} parent=63 // pred_check_branch
          %3921 = sbr.rel (%p3919) target = $region80
        $region79: #{conv_blocks_forward.1} parent=63 // pred_region
          %s3922 = smul.u32 2, %s28
        $region80: #{conv_blocks_forward.1} parent=63 // pred_fallthru
          _
      $region64: #{conv_blocks_forward.1} parent=5 // pred_fallthru
        _
      %p3923 = scmp.le.s32.totalorder 2, %s19
      // Predicated region
      $region81: #{conv_blocks_forward.1} parent=5 // pred_check
        %p3924 = pneg %p3923
      $region82: #{conv_blocks_forward.1} parent=5 // pred_check_branch
        %3926 = sbr.rel (%p3924) target = $region84
      $region83: #{conv_blocks_forward.1} parent=5 // pred_region
        %s3927 = ssub.s32 %s19, 2
        // Predicated region
        $region85: #{conv_blocks_forward.1} parent=83 // pred_check
          %p3928 = pneg %p330
        $region86: #{conv_blocks_forward.1} parent=83 // pred_check_branch
          %3930 = sbr.rel (%p3928) target = $region88
        $region87: #{conv_blocks_forward.1} parent=83 // pred_region
          %s3931 = smul.u32 2, %s30
          %p3932 = scmp.lt.s32.totalorder %s31, 1
          %s3933 = scalar_select %p3932, %s31, 1
          %p3934 = scmp.lt.s32.totalorder %s3931, 5
          %s3935 = scalar_select %p3934, %s3931, 5
          %s3936 = smul.addr %s3933, 6
          %s3937 = sadd.s32 %s3935, %s3936
          %s3938 = smul.addr %s3937, 8
          %s3939 = scalar_lea.vmem %s11, %s3938
        $region88: #{conv_blocks_forward.1} parent=83 // pred_fallthru
          _
      $region84: #{conv_blocks_forward.1} parent=5 // pred_fallthru
        _
    $region6: #{conv_blocks_forward.1} parent=1 // loop_footer
      %s23 = sadd.s32 1, %s19
    $region7: #{conv_blocks_forward.1} parent=1 // loop_footer_branch
      %18 = sbr.rel target = $region3
    $region8: #{conv_blocks_forward.1} parent=1 // loop_exit
      _
    %3940 = vsyncpa [#allocation3], 1
    %s3941 = scalar_lea.sflag [#allocation3], 1
    %3942 = vsyncpa %s3941, 1
    %3943 = vsyncpa [#allocation5], 1

</llo_original>
